<compile_context>
chip_gen: v7x
topology: tpu7x:2x2x1
jax: 0.10.0
libtpu: 0.0.40
codegen_flags: <defaults>
</compile_context>

<pallas_src>
import math
import functools

import jax
import jax.numpy as jnp
from jax.experimental import pallas as pl
from jax.experimental.pallas import tpu as pltpu


# ----------------------------- helpers -----------------------------

def _choose_tile(dim, target):
    """Return (tile, padded_dim).  tile == dim for small dims (full-extent block, no alignment
    requirement) or `target` (a multiple of 8/128) with the dim padded to a multiple of it."""
    if dim <= target:
        return dim, dim
    pad = (-dim) % target
    return target, dim + pad


# ----------------------------- tiled linear: x @ w + b (+ReLU) -----------------------------

def _linear_kernel(x_ref, w_ref, b_ref, o_ref, acc_ref, *, relu):
    @pl.when(pl.program_id(2) == 0)
    def _():
        acc_ref[...] = jnp.zeros_like(acc_ref)

    acc_ref[...] += jnp.dot(x_ref[...], w_ref[...],
                            preferred_element_type=jnp.float32)   # bf16 x bf16 -> f32 acc (MXU)

    @pl.when(pl.program_id(2) == pl.num_programs(2) - 1)
    def _():
        y = acc_ref[...] + b_ref[...]
        if relu:
            y = jnp.maximum(y, 0.0)
        o_ref[...] = y.astype(o_ref.dtype)


def linear(x, w, b, relu=False, out_dtype=jnp.float32, tm=512, tn=512, tk=1024):
    """x: (M, K) @ w: (K, N) + b(f32): (1, N) -> (M, N) `out_dtype`, optional fused ReLU.
    x / w are cast to bf16 (no-op if already bf16); accumulation is f32."""
    x = x.astype(jnp.bfloat16)
    w = w.astype(jnp.bfloat16)
    M, K = x.shape
    N = w.shape[1]
    tm, Mp = _choose_tile(M, tm)
    tn, Np = _choose_tile(N, tn)
    tk, Kp = _choose_tile(K, tk)
    if Mp != M or Kp != K:
        x = jnp.pad(x, ((0, Mp - M), (0, Kp - K)))
    if Kp != K or Np != N:     # weights are pre-sized bf16 at init; this only triggers for huge dims
        w = jnp.pad(w, ((0, Kp - K), (0, Np - N)))
    if Np != N:
        b = jnp.pad(b, ((0, 0), (0, Np - N)))

    out = pl.pallas_call(
        functools.partial(_linear_kernel, relu=relu),
        out_shape=jax.ShapeDtypeStruct((Mp, Np), out_dtype),
        grid=(Mp // tm, Np // tn, Kp // tk),
        in_specs=[
            pl.BlockSpec((tm, tk), lambda i, j, k: (i, k)),
            pl.BlockSpec((tk, tn), lambda i, j, k: (k, j)),
            pl.BlockSpec((1, tn), lambda i, j, k: (0, j)),
        ],
        out_specs=pl.BlockSpec((tm, tn), lambda i, j, k: (i, j)),
        scratch_shapes=[pltpu.VMEM((tm, tn), jnp.float32)],
        compiler_params=pltpu.CompilerParams(
            dimension_semantics=("parallel", "parallel", "arbitrary")),
    )(x, w, b)
    if Mp != M or Np != N:
        out = out[:M, :N]
    return out


# ------------------ fused: (x @ w + b + residual) -> LayerNorm, dual f32/bf16 output ------------------

def _linear_add_ln_kernel(x_ref, w_ref, b_ref, r_ref, g_ref, beta_ref,
                          o32_ref, obf_ref, acc_ref, *, eps):
    @pl.when(pl.program_id(1) == 0)
    def _():
        acc_ref[...] = jnp.zeros_like(acc_ref)

    acc_ref[...] += jnp.dot(x_ref[...], w_ref[...],
                            preferred_element_type=jnp.float32)

    @pl.when(pl.program_id(1) == pl.num_programs(1) - 1)
    def _():
        y = acc_ref[...] + b_ref[...] + r_ref[...]                 # bias + residual, f32
        mu = jnp.mean(y, axis=-1, keepdims=True)
        var = jnp.mean(jnp.square(y - mu), axis=-1, keepdims=True)
        z = (y - mu) * jax.lax.rsqrt(var + eps) * g_ref[...] + beta_ref[...]
        o32_ref[...] = z                                           # residual stream (f32)
        obf_ref[...] = z.astype(jnp.bfloat16)                      # next-matmul operand (bf16)


def linear_add_ln(x, w, b, residual, g, beta, tm=256, tk=1024, eps=1e-5):
    """LayerNorm(x @ w + b + residual).  Returns (f32 copy, bf16 copy) of shape (M, N).
    N (= model dim) is kept whole per output tile so LayerNorm sees the full row; tm<=256 keeps the
    double-buffered tile set v7x-safe even at large E."""
    x = x.astype(jnp.bfloat16)
    w = w.astype(jnp.bfloat16)
    M, K = x.shape
    N = w.shape[1]
    tm, Mp = _choose_tile(M, tm)
    tk, Kp = _choose_tile(K, tk)
    if Mp != M or Kp != K:
        x = jnp.pad(x, ((0, Mp - M), (0, Kp - K)))
    if Kp != K:
        w = jnp.pad(w, ((0, Kp - K), (0, 0)))
    if Mp != M:
        residual = jnp.pad(residual, ((0, Mp - M), (0, 0)))

    out32, outbf = pl.pallas_call(
        functools.partial(_linear_add_ln_kernel, eps=eps),
        out_shape=(jax.ShapeDtypeStruct((Mp, N), jnp.float32),
                   jax.ShapeDtypeStruct((Mp, N), jnp.bfloat16)),
        grid=(Mp // tm, Kp // tk),
        in_specs=[
            pl.BlockSpec((tm, tk), lambda i, k: (i, k)),
            pl.BlockSpec((tk, N), lambda i, k: (k, 0)),
            pl.BlockSpec((1, N), lambda i, k: (0, 0)),
            pl.BlockSpec((tm, N), lambda i, k: (i, 0)),
            pl.BlockSpec((1, N), lambda i, k: (0, 0)),
            pl.BlockSpec((1, N), lambda i, k: (0, 0)),
        ],
        out_specs=(pl.BlockSpec((tm, N), lambda i, k: (i, 0)),
                   pl.BlockSpec((tm, N), lambda i, k: (i, 0))),
        scratch_shapes=[pltpu.VMEM((tm, N), jnp.float32)],
        compiler_params=pltpu.CompilerParams(
            dimension_semantics=("parallel", "arbitrary")),
    )(x, w, b, residual, g, beta)
    if Mp != M:
        out32 = out32[:M]
        outbf = outbf[:M]
    return out32, outbf


# ----------------------------- final LayerNorm (row-tiled) -----------------------------

def _ln_kernel(x_ref, g_ref, b_ref, o_ref):
    x = x_ref[...]
    mu = jnp.mean(x, axis=-1, keepdims=True)
    var = jnp.mean(jnp.square(x - mu), axis=-1, keepdims=True)
    o_ref[...] = (x - mu) * jax.lax.rsqrt(var + 1e-5) * g_ref[...] + b_ref[...]


def layernorm(x, g, b, tm_target=256):
    """LayerNorm(x); x: (B, S, E) f32; g, b: (1, E) f32."""
    B, S, E = x.shape
    M = B * S
    xr = x.reshape(M, E)
    tm, Mp = _choose_tile(M, tm_target)
    if Mp != M:
        xr = jnp.pad(xr, ((0, Mp - M), (0, 0)))
    out = pl.pallas_call(
        _ln_kernel,
        out_shape=jax.ShapeDtypeStruct((Mp, E), jnp.float32),
        grid=(Mp // tm,),
        in_specs=[pl.BlockSpec((tm, E), lambda i: (i, 0)),
                  pl.BlockSpec((1, E), lambda i: (0, 0)),
                  pl.BlockSpec((1, E), lambda i: (0, 0))],
        out_specs=pl.BlockSpec((tm, E), lambda i: (i, 0)),
        compiler_params=pltpu.CompilerParams(dimension_semantics=("parallel",)),
    )(xr, g, b)
    if Mp != M:
        out = out[:M]
    return out.reshape(B, S, E)


# ------------------ multi-head attention (all heads per batch element, packed inputs) ------------------

def _mha_self_kernel(qkv_ref, o_ref, acc_ref, *, n_heads, scale):
    """Causal self-attention.  qkv_ref: (1, S, 3E) bf16 (packed q|k|v per row).  No key-padding
    input at all — the triangular mask is generated in-kernel from broadcasted_iota."""
    qkv = qkv_ref[0]                                   # (S, 3E) bf16
    S = qkv.shape[0]
    E = qkv.shape[1] // 3
    Dh = E // n_heads

    # Additive causal bias, built ONCE (keep where key_pos <= query_pos).
    row = jax.lax.broadcasted_iota(jnp.int32, (S, S), 0)
    col = jax.lax.broadcasted_iota(jnp.int32, (S, S), 1)
    bias = jnp.where(col > row, jnp.float32(-1e9), jnp.float32(0.0))

    for h in range(n_heads):                           # heads in-kernel: no HBM transposes
        lo = h * Dh
        q = qkv[:, lo:lo + Dh] * scale                 # scale folded into (S, Dh) q slice
        k = qkv[:, E + lo:E + lo + Dh]
        v = qkv[:, 2 * E + lo:2 * E + lo + Dh]
        s = jax.lax.dot_general(q, k, (((1,), (1,)), ((), ())),
                                preferred_element_type=jnp.float32) + bias    # (S, S) f32
        s = s - jnp.max(s, axis=-1, keepdims=True)
        p = jnp.exp(s)
        p = p * pl.reciprocal(jnp.sum(p, axis=-1, keepdims=True), approx=True)
        # per-head write into VMEM scratch (bounded live ranges; no concatenate)
        acc_ref[:, lo:lo + Dh] = jnp.dot(p.astype(jnp.bfloat16), v,
                                         preferred_element_type=jnp.float32)
    o_ref[0] = acc_ref[...].astype(jnp.bfloat16)       # single lane-dense (S, E) store


def _mha_cross_kernel(q_ref, kv_ref, kpm_ref, o_ref, acc_ref, *, n_heads, scale):
    """Cross-attention.  q_ref: (1, Sq, E) bf16; kv_ref: (1, Sk, 2E) bf16 (packed k|v);
    kpm_ref: (1, 1, Sk) int32 key-padding mask, PyTorch convention (0 = masked, nonzero = keep)."""
    q_all = q_ref[0]                                   # (Sq, E) bf16
    kv = kv_ref[0]                                     # (Sk, 2E) bf16
    Sq, E = q_all.shape
    Dh = E // n_heads

    # Additive key-padding bias, built ONCE; broadcasts over the query axis.
    bias = jnp.where(kpm_ref[0] == 0, jnp.float32(-1e9), jnp.float32(0.0))    # (1, Sk)

    for h in range(n_heads):
        lo = h * Dh
        q = q_all[:, lo:lo + Dh] * scale
        k = kv[:, lo:lo + Dh]
        v = kv[:, E + lo:E + lo + Dh]
        s = jax.lax.dot_general(q, k, (((1,), (1,)), ((), ())),
                                preferred_element_type=jnp.float32) + bias    # (Sq, Sk) f32
        s = s - jnp.max(s, axis=-1, keepdims=True)
        p = jnp.exp(s)
        p = p * pl.reciprocal(jnp.sum(p, axis=-1, keepdims=True), approx=True)
        acc_ref[:, lo:lo + Dh] = jnp.dot(p.astype(jnp.bfloat16), v,
                                         preferred_element_type=jnp.float32)
    o_ref[0] = acc_ref[...].astype(jnp.bfloat16)


def mha_self(qkv, n_heads, scale):
    """qkv: (B, S, 3E) bf16 packed projections -> (B, S, E) bf16."""
    B, S, threeE = qkv.shape
    E = threeE // 3
    return pl.pallas_call(
        functools.partial(_mha_self_kernel, n_heads=n_heads, scale=scale),
        out_shape=jax.ShapeDtypeStruct((B, S, E), jnp.bfloat16),
        grid=(B,),
        in_specs=[pl.BlockSpec((1, S, 3 * E), lambda b: (b, 0, 0))],
        out_specs=pl.BlockSpec((1, S, E), lambda b: (b, 0, 0)),
        scratch_shapes=[pltpu.VMEM((S, E), jnp.float32)],
        compiler_params=pltpu.CompilerParams(dimension_semantics=("parallel",)),
    )(qkv)


def mha_cross(q, kv, key_mask, n_heads, scale):
    """q: (B, Sq, E) bf16; kv: (B, Sk, 2E) bf16; key_mask: (B, 1, Sk) int32 (0 = masked)."""
    B, Sq, E = q.shape
    Sk = kv.shape[1]
    return pl.pallas_call(
        functools.partial(_mha_cross_kernel, n_heads=n_heads, scale=scale),
        out_shape=jax.ShapeDtypeStruct((B, Sq, E), jnp.bfloat16),
        grid=(B,),
        in_specs=[
            pl.BlockSpec((1, Sq, E), lambda b: (b, 0, 0)),
            pl.BlockSpec((1, Sk, 2 * E), lambda b: (b, 0, 0)),
            pl.BlockSpec((1, 1, Sk), lambda b: (b, 0, 0)),
        ],
        out_specs=pl.BlockSpec((1, Sq, E), lambda b: (b, 0, 0)),
        scratch_shapes=[pltpu.VMEM((Sq, E), jnp.float32)],
        compiler_params=pltpu.CompilerParams(dimension_semantics=("parallel",)),
    )(q, kv, key_mask)


# ----------------------------- Decoder forward (plain-JAX glue) -----------------------------

def decoder_forward(trg_tokens, src_memory, src_mask, params, n_heads):
    """
    trg_tokens: (B, S_de) int32 token ids               (PyTorch `x`)
    src_memory: (B, S_en, E) float32 encoder output     (PyTorch `src`)
    src_mask:   (B, S_en) int/bool key-padding mask — PyTorch convention: nonzero = keep, 0 = masked.
                (None means all keys kept.)
    The triangular trg_mask is generated inside the self-attention kernel.
    """
    B, S = trg_tokens.shape
    S_src = src_memory.shape[1]
    E = params["tok_emb"].shape[1]
    scale = 1.0 / math.sqrt(E // n_heads)

    # Encoding: token embedding * sqrt(E) + learned positional embedding (plain-JAX gather).
    # TODO(synk): dropout (train-mode) not implemented — eval-mode forward only.
    x = (params["tok_emb"][trg_tokens] * math.sqrt(E)
         + params["pos_emb"][:S][None, :, :]).reshape(B * S, E)     # f32 residual stream
    x_bf = x.astype(jnp.bfloat16)                                    # bf16 matmul operand

    if src_mask is None:
        src_kpm = jnp.ones((B, 1, S_src), jnp.int32)
    else:
        src_kpm = src_mask.reshape(B, 1, S_src).astype(jnp.int32)

    src_bf = src_memory.reshape(B * S_src, E).astype(jnp.bfloat16)   # cast once, reused every layer

    for lp in params["layers"]:
        # --- masked (causal) self-attention: fused QKV projection, packed straight into mha ---
        qkv = linear(x_bf, lp["self"]["wqkv"], lp["self"]["bqkv"], out_dtype=jnp.bfloat16)
        a = mha_self(qkv.reshape(B, S, 3 * E), n_heads, scale)                    # (B, S, E) bf16
        x, x_bf = linear_add_ln(a.reshape(B * S, E), lp["self"]["wo"], lp["self"]["bo"],
                                x, lp["ln1_g"], lp["ln1_b"])

        # --- cross-attention over encoder memory: fused KV projection, packed into mha ---
        q = linear(x_bf, lp["cross"]["wq"], lp["cross"]["bq"], out_dtype=jnp.bfloat16)
        kv = linear(src_bf, lp["cross"]["wkv"], lp["cross"]["bkv"], out_dtype=jnp.bfloat16)
        c = mha_cross(q.reshape(B, S, E), kv.reshape(B, S_src, 2 * E), src_kpm, n_heads, scale)
        x, x_bf = linear_add_ln(c.reshape(B * S, E), lp["cross"]["wo"], lp["cross"]["bo"],
                                x, lp["ln2_g"], lp["ln2_b"])

        # --- position-wise feed-forward (ReLU fused in first matmul, LN fused in second) ---
        h = linear(x_bf, lp["ffn"]["w1"], lp["ffn"]["b1"], relu=True, out_dtype=jnp.bfloat16)
        x, x_bf = linear_add_ln(h, lp["ffn"]["w2"], lp["ffn"]["b2"],
                                x, lp["ln3_g"], lp["ln3_b"])

    # final LayerNorm (self.layer_norm in the PyTorch Decoder)
    return layernorm(x.reshape(B, S, E), params["ln_g"], params["ln_b"])


# ----------------------------- deterministic init -----------------------------

def init_decoder_params(key, vocab, E, FF, n_layers, max_len):
    std = 0.02

    def rnd(k, shape):                                 # matmul weights stored bf16 (MXU-native)
        return (jax.random.normal(k, shape, jnp.float32) * std).astype(jnp.bfloat16)

    def layer_params(k):
        k1, k2, k3, k4, k5, k6, k7 = jax.random.split(k, 7)
        return {
            "self": {"wqkv": rnd(k1, (E, 3 * E)), "bqkv": jnp.zeros((1, 3 * E), jnp.float32),
                     "wo": rnd(k2, (E, E)), "bo": jnp.zeros((1, E), jnp.float32)},
            "cross": {"wq": rnd(k3, (E, E)), "bq": jnp.zeros((1, E), jnp.float32),
                      "wkv": rnd(k4, (E, 2 * E)), "bkv": jnp.zeros((1, 2 * E), jnp.float32),
                      "wo": rnd(k5, (E, E)), "bo": jnp.zeros((1, E), jnp.float32)},
            "ffn": {"w1": rnd(k6, (E, FF)), "b1": jnp.zeros((1, FF), jnp.float32),
                    "w2": rnd(k7, (FF, E)), "b2": jnp.zeros((1, E), jnp.float32)},
            "ln1_g": jnp.ones((1, E), jnp.float32), "ln1_b": jnp.zeros((1, E), jnp.float32),
            "ln2_g": jnp.ones((1, E), jnp.float32), "ln2_b": jnp.zeros((1, E), jnp.float32),
            "ln3_g": jnp.ones((1, E), jnp.float32), "ln3_b": jnp.zeros((1, E), jnp.float32),
        }

    ks = jax.random.split(key, 3)
    return {
        "tok_emb": jax.random.normal(ks[0], (vocab, E), jnp.float32) * std,
        "pos_emb": jax.random.normal(ks[1], (max_len, E), jnp.float32) * std,
        "layers": [layer_params(k) for k in jax.random.split(ks[2], n_layers)],
        "ln_g": jnp.ones((1, E), jnp.float32),
        "ln_b": jnp.zeros((1, E), jnp.float32),
    }


# ----------------------------- main -----------------------------

if __name__ == "__main__":
    key = jax.random.PRNGKey(0)
    B, S_de, S_en = 2, 8, 12
    vocab, E, FF, n_heads, n_layers, max_len = 32, 32, 64, 4, 2, 64

    kp, kt, km = jax.random.split(key, 3)
    params = init_decoder_params(kp, vocab, E, FF, n_layers, max_len)
    trg = jax.random.randint(kt, (B, S_de), 0, vocab, dtype=jnp.int32)
    src_memory = jax.random.normal(km, (B, S_en, E), jnp.float32)
    # encoder-side key-padding mask, PyTorch convention (0 = masked): last two src positions of
    # batch 0 are padding.
    src_mask = jnp.ones((B, S_en), jnp.int32).at[0, -2:].set(0)

    fwd = jax.jit(functools.partial(decoder_forward, n_heads=n_heads))
    out = fwd(trg, src_memory, src_mask, params)
    out = jax.block_until_ready(out)
    assert out.shape == (B, S_de, E), out.shape
    assert bool(jnp.all(jnp.isfinite(out)))
    print("KERNEL_OK")
</pallas_src>

<mosaic_0001>
module attributes {stable_mosaic.version = 11 : i64} {
  func.func @_linear_kernel(%arg0: i32, %arg1: i32, %arg2: i32, %arg3: memref<16x32xbf16, #tpu.memory_space<vmem>>, %arg4: memref<32x96xbf16, #tpu.memory_space<vmem>>, %arg5: memref<1x96xf32, #tpu.memory_space<vmem>>, %arg6: memref<16x96xbf16, #tpu.memory_space<vmem>>, %arg7: memref<16x96xf32, #tpu.memory_space<vmem>>) attributes {dimension_semantics = [#tpu.dimension_semantics<parallel>, #tpu.dimension_semantics<parallel>, #tpu.dimension_semantics<arbitrary>], iteration_bounds = array<i64: 1, 1, 1>, scalar_prefetch = 0 : i64, scratch_operands = 1 : i64, tpu.core_type = #tpu.core_type<tc>, window_params = [{transform_indices = @transform_0, window_bounds = array<i64: 16, 32>}, {transform_indices = @transform_1, window_bounds = array<i64: 32, 96>}, {transform_indices = @transform_2, window_bounds = array<i64: 1, 96>}, {transform_indices = @transform_3, window_bounds = array<i64: 16, 96>}]} {
    %c0_i32 = arith.constant 0 : i32
    %0 = arith.cmpi eq, %arg2, %c0_i32 : i32
    %1 = arith.extui %0 : i1 to i32
    %c0_i32_0 = arith.constant 0 : i32
    %2 = arith.cmpi ne, %1, %c0_i32_0 : i32
    scf.if %2 {
      %cst_10 = arith.constant 0.000000e+00 : f32
      %12 = vector.broadcast %cst_10 : f32 to vector<16x96xf32>
      %c0_11 = arith.constant 0 : index
      %c0_12 = arith.constant 0 : index
      %13 = vector.load %arg7[%c0_11, %c0_12] : memref<16x96xf32, #tpu.memory_space<vmem>>, vector<16x96xf32>
      tpu.vector_store %arg7[%c0_11, %c0_12], %12 {strides = array<i32>} : memref<16x96xf32, #tpu.memory_space<vmem>>, vector<16x96xf32>,
    } else {
    }
    %c0 = arith.constant 0 : index
    %c0_1 = arith.constant 0 : index
    %3 = vector.load %arg7[%c0, %c0_1] : memref<16x96xf32, #tpu.memory_space<vmem>>, vector<16x96xf32>
    %c0_2 = arith.constant 0 : index
    %c0_3 = arith.constant 0 : index
    %4 = vector.load %arg3[%c0_2, %c0_3] : memref<16x32xbf16, #tpu.memory_space<vmem>>, vector<16x32xbf16>
    %c0_4 = arith.constant 0 : index
    %c0_5 = arith.constant 0 : index
    %5 = vector.load %arg4[%c0_4, %c0_5] : memref<32x96xbf16, #tpu.memory_space<vmem>>, vector<32x96xbf16>
    %cst = arith.constant dense<0.000000e+00> : vector<16x96xf32>
    %6 = tpu.matmul %4, %5, %cst {dimension_numbers = #tpu.dot_dimension_numbers<[1], [0], [0], [1], [0, 0, 1, 1], [], []>} : vector<16x32xbf16>, vector<32x96xbf16>, vector<16x96xf32> -> vector<16x96xf32>
    %7 = arith.addf %3, %6 : vector<16x96xf32>
    %c0_6 = arith.constant 0 : index
    %c0_7 = arith.constant 0 : index
    %8 = vector.load %arg7[%c0_6, %c0_7] : memref<16x96xf32, #tpu.memory_space<vmem>>, vector<16x96xf32>
    tpu.vector_store %arg7[%c0_6, %c0_7], %7 {strides = array<i32>} : memref<16x96xf32, #tpu.memory_space<vmem>>, vector<16x96xf32>,
    %c0_i32_8 = arith.constant 0 : i32
    %9 = arith.cmpi eq, %arg2, %c0_i32_8 : i32
    %10 = arith.extui %9 : i1 to i32
    %c0_i32_9 = arith.constant 0 : i32
    %11 = arith.cmpi ne, %10, %c0_i32_9 : i32
    scf.if %11 {
      %c0_10 = arith.constant 0 : index
      %c0_11 = arith.constant 0 : index
      %12 = vector.load %arg7[%c0_10, %c0_11] : memref<16x96xf32, #tpu.memory_space<vmem>>, vector<16x96xf32>
      %c0_12 = arith.constant 0 : index
      %c0_13 = arith.constant 0 : index
      %13 = vector.load %arg5[%c0_12, %c0_13] : memref<1x96xf32, #tpu.memory_space<vmem>>, vector<1x96xf32>
      %14 = vector.broadcast %13 : vector<1x96xf32> to vector<16x96xf32>
      %15 = arith.addf %12, %14 : vector<16x96xf32>
      %16 = arith.truncf %15 : vector<16x96xf32> to vector<16x96xbf16>
      %c0_14 = arith.constant 0 : index
      %c0_15 = arith.constant 0 : index
      %17 = vector.load %arg6[%c0_14, %c0_15] : memref<16x96xbf16, #tpu.memory_space<vmem>>, vector<16x96xbf16>
      tpu.vector_store %arg6[%c0_14, %c0_15], %16 {strides = array<i32>} : memref<16x96xbf16, #tpu.memory_space<vmem>>, vector<16x96xbf16>,
    } else {
    }
    return
  }
  func.func @transform_0(%arg0: i32, %arg1: i32, %arg2: i32) -> (i32, i32) {
    %c0_i32 = arith.constant 0 : i32
    return %arg0, %arg2 : i32, i32
  }
  func.func @transform_1(%arg0: i32, %arg1: i32, %arg2: i32) -> (i32, i32) {
    %c0_i32 = arith.constant 0 : i32
    return %arg2, %arg1 : i32, i32
  }
  func.func @transform_2(%arg0: i32, %arg1: i32, %arg2: i32) -> (i32, i32) {
    %c0_i32 = arith.constant 0 : i32
    %c0_i32_0 = arith.constant 0 : i32
    return %c0_i32, %arg1 : i32, i32
  }
  func.func @transform_3(%arg0: i32, %arg1: i32, %arg2: i32) -> (i32, i32) {
    %c0_i32 = arith.constant 0 : i32
    return %arg0, %arg1 : i32, i32
  }
}

module attributes {stable_mosaic.version = 11 : i64} {
  func.func @_linear_add_ln_kernel(%arg0: i32, %arg1: i32, %arg2: memref<16x32xbf16, #tpu.memory_space<vmem>>, %arg3: memref<32x32xbf16, #tpu.memory_space<vmem>>, %arg4: memref<1x32xf32, #tpu.memory_space<vmem>>, %arg5: memref<16x32xf32, #tpu.memory_space<vmem>>, %arg6: memref<1x32xf32, #tpu.memory_space<vmem>>, %arg7: memref<1x32xf32, #tpu.memory_space<vmem>>, %arg8: memref<16x32xf32, #tpu.memory_space<vmem>>, %arg9: memref<16x32xbf16, #tpu.memory_space<vmem>>, %arg10: memref<16x32xf32, #tpu.memory_space<vmem>>) attributes {dimension_semantics = [#tpu.dimension_semantics<parallel>, #tpu.dimension_semantics<arbitrary>], iteration_bounds = array<i64: 1, 1>, scalar_prefetch = 0 : i64, scratch_operands = 1 : i64, tpu.core_type = #tpu.core_type<tc>, window_params = [{transform_indices = @transform_0, window_bounds = array<i64: 16, 32>}, {transform_indices = @transform_1, window_bounds = array<i64: 32, 32>}, {pipeline_mode = #tpu.pipeline_mode<synchronous>, transform_indices = @transform_2, window_bounds = array<i64: 1, 32>}, {transform_indices = @transform_3, window_bounds = array<i64: 16, 32>}, {pipeline_mode = #tpu.pipeline_mode<synchronous>, transform_indices = @transform_4, window_bounds = array<i64: 1, 32>}, {pipeline_mode = #tpu.pipeline_mode<synchronous>, transform_indices = @transform_5, window_bounds = array<i64: 1, 32>}, {transform_indices = @transform_6, window_bounds = array<i64: 16, 32>}, {transform_indices = @transform_7, window_bounds = array<i64: 16, 32>}]} {
    %c0_i32 = arith.constant 0 : i32
    %0 = arith.cmpi eq, %arg1, %c0_i32 : i32
    %1 = arith.extui %0 : i1 to i32
    %c0_i32_0 = arith.constant 0 : i32
    %2 = arith.cmpi ne, %1, %c0_i32_0 : i32
    scf.if %2 {
      %cst_10 = arith.constant 0.000000e+00 : f32
      %12 = vector.broadcast %cst_10 : f32 to vector<16x32xf32>
      %c0_11 = arith.constant 0 : index
      %c0_12 = arith.constant 0 : index
      %13 = vector.load %arg10[%c0_11, %c0_12] : memref<16x32xf32, #tpu.memory_space<vmem>>, vector<16x32xf32>
      tpu.vector_store %arg10[%c0_11, %c0_12], %12 {strides = array<i32>} : memref<16x32xf32, #tpu.memory_space<vmem>>, vector<16x32xf32>,
    } else {
    }
    %c0 = arith.constant 0 : index
    %c0_1 = arith.constant 0 : index
    %3 = vector.load %arg10[%c0, %c0_1] : memref<16x32xf32, #tpu.memory_space<vmem>>, vector<16x32xf32>
    %c0_2 = arith.constant 0 : index
    %c0_3 = arith.constant 0 : index
    %4 = vector.load %arg2[%c0_2, %c0_3] : memref<16x32xbf16, #tpu.memory_space<vmem>>, vector<16x32xbf16>
    %c0_4 = arith.constant 0 : index
    %c0_5 = arith.constant 0 : index
    %5 = vector.load %arg3[%c0_4, %c0_5] : memref<32x32xbf16, #tpu.memory_space<vmem>>, vector<32x32xbf16>
    %cst = arith.constant dense<0.000000e+00> : vector<16x32xf32>
    %6 = tpu.matmul %4, %5, %cst {dimension_numbers = #tpu.dot_dimension_numbers<[1], [0], [0], [1], [0, 0, 1, 1], [], []>} : vector<16x32xbf16>, vector<32x32xbf16>, vector<16x32xf32> -> vector<16x32xf32>
    %7 = arith.addf %3, %6 : vector<16x32xf32>
    %c0_6 = arith.constant 0 : index
    %c0_7 = arith.constant 0 : index
    %8 = vector.load %arg10[%c0_6, %c0_7] : memref<16x32xf32, #tpu.memory_space<vmem>>, vector<16x32xf32>
    tpu.vector_store %arg10[%c0_6, %c0_7], %7 {strides = array<i32>} : memref<16x32xf32, #tpu.memory_space<vmem>>, vector<16x32xf32>,
    %c0_i32_8 = arith.constant 0 : i32
    %9 = arith.cmpi eq, %arg1, %c0_i32_8 : i32
    %10 = arith.extui %9 : i1 to i32
    %c0_i32_9 = arith.constant 0 : i32
    %11 = arith.cmpi ne, %10, %c0_i32_9 : i32
    scf.if %11 {
      %c0_10 = arith.constant 0 : index
      %c0_11 = arith.constant 0 : index
      %12 = vector.load %arg10[%c0_10, %c0_11] : memref<16x32xf32, #tpu.memory_space<vmem>>, vector<16x32xf32>
      %c0_12 = arith.constant 0 : index
      %c0_13 = arith.constant 0 : index
      %13 = vector.load %arg4[%c0_12, %c0_13] : memref<1x32xf32, #tpu.memory_space<vmem>>, vector<1x32xf32>
      %14 = vector.broadcast %13 : vector<1x32xf32> to vector<16x32xf32>
      %15 = arith.addf %12, %14 : vector<16x32xf32>
      %c0_14 = arith.constant 0 : index
      %c0_15 = arith.constant 0 : index
      %16 = vector.load %arg5[%c0_14, %c0_15] : memref<16x32xf32, #tpu.memory_space<vmem>>, vector<16x32xf32>
      %17 = arith.addf %15, %16 : vector<16x32xf32>
      %cst_16 = arith.constant dense<0.000000e+00> : vector<16xf32>
      %18 = vector.multi_reduction <add>, %17, %cst_16 [1] : vector<16x32xf32> to vector<16xf32>
      %19 = vector.shape_cast %18 : vector<16xf32> to vector<16x1xf32>
      %cst_17 = arith.constant 3.200000e+01 : f32
      %20 = vector.broadcast %cst_17 : f32 to vector<16x1xf32>
      %21 = arith.divf %19, %20 : vector<16x1xf32>
      %22 = vector.broadcast %21 : vector<16x1xf32> to vector<16x32xf32>
      %23 = arith.subf %17, %22 : vector<16x32xf32>
      %24 = arith.mulf %23, %23 : vector<16x32xf32>
      %cst_18 = arith.constant dense<0.000000e+00> : vector<16xf32>
      %25 = vector.multi_reduction <add>, %24, %cst_18 [1] : vector<16x32xf32> to vector<16xf32>
      %26 = vector.shape_cast %25 : vector<16xf32> to vector<16x1xf32>
      %cst_19 = arith.constant 3.200000e+01 : f32
      %27 = vector.broadcast %cst_19 : f32 to vector<16x1xf32>
      %28 = arith.divf %26, %27 : vector<16x1xf32>
      %29 = vector.broadcast %21 : vector<16x1xf32> to vector<16x32xf32>
      %30 = arith.subf %17, %29 : vector<16x32xf32>
      %cst_20 = arith.constant 9.99999974E-6 : f32
      %31 = vector.broadcast %cst_20 : f32 to vector<16x1xf32>
      %32 = arith.addf %28, %31 : vector<16x1xf32>
      %33 = math.rsqrt %32 : vector<16x1xf32>
      %34 = vector.broadcast %33 : vector<16x1xf32> to vector<16x32xf32>
      %35 = arith.mulf %30, %34 : vector<16x32xf32>
      %c0_21 = arith.constant 0 : index
      %c0_22 = arith.constant 0 : index
      %36 = vector.load %arg6[%c0_21, %c0_22] : memref<1x32xf32, #tpu.memory_space<vmem>>, vector<1x32xf32>
      %37 = vector.broadcast %36 : vector<1x32xf32> to vector<16x32xf32>
      %38 = arith.mulf %35, %37 : vector<16x32xf32>
      %c0_23 = arith.constant 0 : index
      %c0_24 = arith.constant 0 : index
      %39 = vector.load %arg7[%c0_23, %c0_24] : memref<1x32xf32, #tpu.memory_space<vmem>>, vector<1x32xf32>
      %40 = vector.broadcast %39 : vector<1x32xf32> to vector<16x32xf32>
      %41 = arith.addf %38, %40 : vector<16x32xf32>
      %c0_25 = arith.constant 0 : index
      %c0_26 = arith.constant 0 : index
      %42 = vector.load %arg8[%c0_25, %c0_26] : memref<16x32xf32, #tpu.memory_space<vmem>>, vector<16x32xf32>
      tpu.vector_store %arg8[%c0_25, %c0_26], %41 {strides = array<i32>} : memref<16x32xf32, #tpu.memory_space<vmem>>, vector<16x32xf32>,
      %43 = arith.truncf %41 : vector<16x32xf32> to vector<16x32xbf16>
      %c0_27 = arith.constant 0 : index
      %c0_28 = arith.constant 0 : index
      %44 = vector.load %arg9[%c0_27, %c0_28] : memref<16x32xbf16, #tpu.memory_space<vmem>>, vector<16x32xbf16>
      tpu.vector_store %arg9[%c0_27, %c0_28], %43 {strides = array<i32>} : memref<16x32xbf16, #tpu.memory_space<vmem>>, vector<16x32xbf16>,
    } else {
    }
    return
  }
  func.func @transform_0(%arg0: i32, %arg1: i32) -> (i32, i32) {
    %c0_i32 = arith.constant 0 : i32
    return %arg0, %arg1 : i32, i32
  }
  func.func @transform_1(%arg0: i32, %arg1: i32) -> (i32, i32) {
    %c0_i32 = arith.constant 0 : i32
    %c0_i32_0 = arith.constant 0 : i32
    return %arg1, %c0_i32 : i32, i32
  }
  func.func @transform_2(%arg0: i32, %arg1: i32) -> (i32, i32) {
    %c0_i32 = arith.constant 0 : i32
    %c0_i32_0 = arith.constant 0 : i32
    %c0_i32_1 = arith.constant 0 : i32
    return %c0_i32, %c0_i32_0 : i32, i32
  }
  func.func @transform_3(%arg0: i32, %arg1: i32) -> (i32, i32) {
    %c0_i32 = arith.constant 0 : i32
    %c0_i32_0 = arith.constant 0 : i32
    return %arg0, %c0_i32 : i32, i32
  }
  func.func @transform_4(%arg0: i32, %arg1: i32) -> (i32, i32) {
    %c0_i32 = arith.constant 0 : i32
    %c0_i32_0 = arith.constant 0 : i32
    %c0_i32_1 = arith.constant 0 : i32
    return %c0_i32, %c0_i32_0 : i32, i32
  }
  func.func @transform_5(%arg0: i32, %arg1: i32) -> (i32, i32) {
    %c0_i32 = arith.constant 0 : i32
    %c0_i32_0 = arith.constant 0 : i32
    %c0_i32_1 = arith.constant 0 : i32
    return %c0_i32, %c0_i32_0 : i32, i32
  }
  func.func @transform_6(%arg0: i32, %arg1: i32) -> (i32, i32) {
    %c0_i32 = arith.constant 0 : i32
    %c0_i32_0 = arith.constant 0 : i32
    return %arg0, %c0_i32 : i32, i32
  }
  func.func @transform_7(%arg0: i32, %arg1: i32) -> (i32, i32) {
    %c0_i32 = arith.constant 0 : i32
    %c0_i32_0 = arith.constant 0 : i32
    return %arg0, %c0_i32 : i32, i32
  }
}

module attributes {stable_mosaic.version = 11 : i64} {
  func.func @_linear_kernel(%arg0: i32, %arg1: i32, %arg2: i32, %arg3: memref<16x32xbf16, #tpu.memory_space<vmem>>, %arg4: memref<32x32xbf16, #tpu.memory_space<vmem>>, %arg5: memref<1x32xf32, #tpu.memory_space<vmem>>, %arg6: memref<16x32xbf16, #tpu.memory_space<vmem>>, %arg7: memref<16x32xf32, #tpu.memory_space<vmem>>) attributes {dimension_semantics = [#tpu.dimension_semantics<parallel>, #tpu.dimension_semantics<parallel>, #tpu.dimension_semantics<arbitrary>], iteration_bounds = array<i64: 1, 1, 1>, scalar_prefetch = 0 : i64, scratch_operands = 1 : i64, tpu.core_type = #tpu.core_type<tc>, window_params = [{transform_indices = @transform_0, window_bounds = array<i64: 16, 32>}, {transform_indices = @transform_1, window_bounds = array<i64: 32, 32>}, {transform_indices = @transform_2, window_bounds = array<i64: 1, 32>}, {transform_indices = @transform_3, window_bounds = array<i64: 16, 32>}]} {
    %c0_i32 = arith.constant 0 : i32
    %0 = arith.cmpi eq, %arg2, %c0_i32 : i32
    %1 = arith.extui %0 : i1 to i32
    %c0_i32_0 = arith.constant 0 : i32
    %2 = arith.cmpi ne, %1, %c0_i32_0 : i32
    scf.if %2 {
      %cst_10 = arith.constant 0.000000e+00 : f32
      %12 = vector.broadcast %cst_10 : f32 to vector<16x32xf32>
      %c0_11 = arith.constant 0 : index
      %c0_12 = arith.constant 0 : index
      %13 = vector.load %arg7[%c0_11, %c0_12] : memref<16x32xf32, #tpu.memory_space<vmem>>, vector<16x32xf32>
      tpu.vector_store %arg7[%c0_11, %c0_12], %12 {strides = array<i32>} : memref<16x32xf32, #tpu.memory_space<vmem>>, vector<16x32xf32>,
    } else {
    }
    %c0 = arith.constant 0 : index
    %c0_1 = arith.constant 0 : index
    %3 = vector.load %arg7[%c0, %c0_1] : memref<16x32xf32, #tpu.memory_space<vmem>>, vector<16x32xf32>
    %c0_2 = arith.constant 0 : index
    %c0_3 = arith.constant 0 : index
    %4 = vector.load %arg3[%c0_2, %c0_3] : memref<16x32xbf16, #tpu.memory_space<vmem>>, vector<16x32xbf16>
    %c0_4 = arith.constant 0 : index
    %c0_5 = arith.constant 0 : index
    %5 = vector.load %arg4[%c0_4, %c0_5] : memref<32x32xbf16, #tpu.memory_space<vmem>>, vector<32x32xbf16>
    %cst = arith.constant dense<0.000000e+00> : vector<16x32xf32>
    %6 = tpu.matmul %4, %5, %cst {dimension_numbers = #tpu.dot_dimension_numbers<[1], [0], [0], [1], [0, 0, 1, 1], [], []>} : vector<16x32xbf16>, vector<32x32xbf16>, vector<16x32xf32> -> vector<16x32xf32>
    %7 = arith.addf %3, %6 : vector<16x32xf32>
    %c0_6 = arith.constant 0 : index
    %c0_7 = arith.constant 0 : index
    %8 = vector.load %arg7[%c0_6, %c0_7] : memref<16x32xf32, #tpu.memory_space<vmem>>, vector<16x32xf32>
    tpu.vector_store %arg7[%c0_6, %c0_7], %7 {strides = array<i32>} : memref<16x32xf32, #tpu.memory_space<vmem>>, vector<16x32xf32>,
    %c0_i32_8 = arith.constant 0 : i32
    %9 = arith.cmpi eq, %arg2, %c0_i32_8 : i32
    %10 = arith.extui %9 : i1 to i32
    %c0_i32_9 = arith.constant 0 : i32
    %11 = arith.cmpi ne, %10, %c0_i32_9 : i32
    scf.if %11 {
      %c0_10 = arith.constant 0 : index
      %c0_11 = arith.constant 0 : index
      %12 = vector.load %arg7[%c0_10, %c0_11] : memref<16x32xf32, #tpu.memory_space<vmem>>, vector<16x32xf32>
      %c0_12 = arith.constant 0 : index
      %c0_13 = arith.constant 0 : index
      %13 = vector.load %arg5[%c0_12, %c0_13] : memref<1x32xf32, #tpu.memory_space<vmem>>, vector<1x32xf32>
      %14 = vector.broadcast %13 : vector<1x32xf32> to vector<16x32xf32>
      %15 = arith.addf %12, %14 : vector<16x32xf32>
      %16 = arith.truncf %15 : vector<16x32xf32> to vector<16x32xbf16>
      %c0_14 = arith.constant 0 : index
      %c0_15 = arith.constant 0 : index
      %17 = vector.load %arg6[%c0_14, %c0_15] : memref<16x32xbf16, #tpu.memory_space<vmem>>, vector<16x32xbf16>
      tpu.vector_store %arg6[%c0_14, %c0_15], %16 {strides = array<i32>} : memref<16x32xbf16, #tpu.memory_space<vmem>>, vector<16x32xbf16>,
    } else {
    }
    return
  }
  func.func @transform_0(%arg0: i32, %arg1: i32, %arg2: i32) -> (i32, i32) {
    %c0_i32 = arith.constant 0 : i32
    return %arg0, %arg2 : i32, i32
  }
  func.func @transform_1(%arg0: i32, %arg1: i32, %arg2: i32) -> (i32, i32) {
    %c0_i32 = arith.constant 0 : i32
    return %arg2, %arg1 : i32, i32
  }
  func.func @transform_2(%arg0: i32, %arg1: i32, %arg2: i32) -> (i32, i32) {
    %c0_i32 = arith.constant 0 : i32
    %c0_i32_0 = arith.constant 0 : i32
    return %c0_i32, %arg1 : i32, i32
  }
  func.func @transform_3(%arg0: i32, %arg1: i32, %arg2: i32) -> (i32, i32) {
    %c0_i32 = arith.constant 0 : i32
    return %arg0, %arg1 : i32, i32
  }
}

module attributes {stable_mosaic.version = 11 : i64} {
  func.func @_mha_self_kernel(%arg0: i32, %arg1: memref<1x8x96xbf16, #tpu.memory_space<vmem>>, %arg2: memref<1x8x32xbf16, #tpu.memory_space<vmem>>, %arg3: memref<8x32xf32, #tpu.memory_space<vmem>>) attributes {dimension_semantics = [#tpu.dimension_semantics<parallel>], iteration_bounds = array<i64: 2>, scalar_prefetch = 0 : i64, scratch_operands = 1 : i64, tpu.core_type = #tpu.core_type<tc>, window_params = [{transform_indices = @transform_0, window_bounds = array<i64: 1, 8, 96>}, {transform_indices = @transform_1, window_bounds = array<i64: 1, 8, 32>}]} {
    %c0 = arith.constant 0 : index
    %c0_0 = arith.constant 0 : index
    %c0_1 = arith.constant 0 : index
    %0 = vector.load %arg1[%c0, %c0_0, %c0_1] : memref<1x8x96xbf16, #tpu.memory_space<vmem>>, vector<1x8x96xbf16>
    %1 = vector.shape_cast %0 : vector<1x8x96xbf16> to vector<8x96xbf16>
    %2 = tpu.iota {dimensions = array<i32: 0>} : vector<8x8xi32>
    %3 = tpu.iota {dimensions = array<i32: 1>} : vector<8x8xi32>
    %4 = arith.cmpi sgt, %3, %2 : vector<8x8xi32>
    %cst = arith.constant -1.000000e+09 : f32
    %cst_2 = arith.constant 0.000000e+00 : f32
    %5 = vector.broadcast %cst : f32 to vector<8x8xf32>
    %6 = vector.broadcast %cst_2 : f32 to vector<8x8xf32>
    %7 = arith.select %4, %5, %6 : vector<8x8xi1>, vector<8x8xf32>
    %8 = vector.extract_strided_slice %1 {offsets = [0, 0], sizes = [8, 8], strides = [1, 1]} : vector<8x96xbf16> to vector<8x8xbf16>
    %cst_3 = arith.constant 3.535160e-01 : bf16
    %9 = vector.broadcast %cst_3 : bf16 to vector<8x8xbf16>
    %10 = arith.mulf %8, %9 : vector<8x8xbf16>
    %11 = vector.extract_strided_slice %1 {offsets = [0, 32], sizes = [8, 8], strides = [1, 1]} : vector<8x96xbf16> to vector<8x8xbf16>
    %12 = vector.extract_strided_slice %1 {offsets = [0, 64], sizes = [8, 8], strides = [1, 1]} : vector<8x96xbf16> to vector<8x8xbf16>
    %cst_4 = arith.constant dense<0.000000e+00> : vector<8x8xf32>
    %13 = tpu.matmul %10, %11, %cst_4 {dimension_numbers = #tpu.dot_dimension_numbers<[1], [1], [0], [0], [0, 0, 1, 0], [], []>} : vector<8x8xbf16>, vector<8x8xbf16>, vector<8x8xf32> -> vector<8x8xf32>
    %14 = arith.addf %13, %7 : vector<8x8xf32>
    %cst_5 = arith.constant dense<0xFF800000> : vector<8xf32>
    %15 = vector.multi_reduction <maximumf>, %14, %cst_5 [1] : vector<8x8xf32> to vector<8xf32>
    %16 = vector.shape_cast %15 : vector<8xf32> to vector<8x1xf32>
    %17 = vector.broadcast %16 : vector<8x1xf32> to vector<8x8xf32>
    %18 = arith.subf %14, %17 : vector<8x8xf32>
    %19 = math.exp %18 : vector<8x8xf32>
    %cst_6 = arith.constant dense<0.000000e+00> : vector<8xf32>
    %20 = vector.multi_reduction <add>, %19, %cst_6 [1] : vector<8x8xf32> to vector<8xf32>
    %21 = vector.shape_cast %20 : vector<8xf32> to vector<8x1xf32>
    %22 = tpu.reciprocal %21 {approx = true} : vector<8x1xf32> -> vector<8x1xf32>
    %23 = vector.broadcast %22 : vector<8x1xf32> to vector<8x8xf32>
    %24 = arith.mulf %19, %23 : vector<8x8xf32>
    %25 = arith.truncf %24 : vector<8x8xf32> to vector<8x8xbf16>
    %cst_7 = arith.constant dense<0.000000e+00> : vector<8x8xf32>
    %26 = tpu.matmul %25, %12, %cst_7 {dimension_numbers = #tpu.dot_dimension_numbers<[1], [0], [0], [1], [0, 0, 1, 1], [], []>} : vector<8x8xbf16>, vector<8x8xbf16>, vector<8x8xf32> -> vector<8x8xf32>
    %c0_8 = arith.constant 0 : index
    %c0_9 = arith.constant 0 : index
    %27 = vector.load %arg3[%c0_8, %c0_9] : memref<8x32xf32, #tpu.memory_space<vmem>>, vector<8x8xf32>
    tpu.vector_store %arg3[%c0_8, %c0_9], %26 {strides = array<i32>} : memref<8x32xf32, #tpu.memory_space<vmem>>, vector<8x8xf32>,
    %28 = vector.extract_strided_slice %1 {offsets = [0, 8], sizes = [8, 8], strides = [1, 1]} : vector<8x96xbf16> to vector<8x8xbf16>
    %cst_10 = arith.constant 3.535160e-01 : bf16
    %29 = vector.broadcast %cst_10 : bf16 to vector<8x8xbf16>
    %30 = arith.mulf %28, %29 : vector<8x8xbf16>
    %31 = vector.extract_strided_slice %1 {offsets = [0, 40], sizes = [8, 8], strides = [1, 1]} : vector<8x96xbf16> to vector<8x8xbf16>
    %32 = vector.extract_strided_slice %1 {offsets = [0, 72], sizes = [8, 8], strides = [1, 1]} : vector<8x96xbf16> to vector<8x8xbf16>
    %cst_11 = arith.constant dense<0.000000e+00> : vector<8x8xf32>
    %33 = tpu.matmul %30, %31, %cst_11 {dimension_numbers = #tpu.dot_dimension_numbers<[1], [1], [0], [0], [0, 0, 1, 0], [], []>} : vector<8x8xbf16>, vector<8x8xbf16>, vector<8x8xf32> -> vector<8x8xf32>
    %34 = arith.addf %33, %7 : vector<8x8xf32>
    %cst_12 = arith.constant dense<0xFF800000> : vector<8xf32>
    %35 = vector.multi_reduction <maximumf>, %34, %cst_12 [1] : vector<8x8xf32> to vector<8xf32>
    %36 = vector.shape_cast %35 : vector<8xf32> to vector<8x1xf32>
    %37 = vector.broadcast %36 : vector<8x1xf32> to vector<8x8xf32>
    %38 = arith.subf %34, %37 : vector<8x8xf32>
    %39 = math.exp %38 : vector<8x8xf32>
    %cst_13 = arith.constant dense<0.000000e+00> : vector<8xf32>
    %40 = vector.multi_reduction <add>, %39, %cst_13 [1] : vector<8x8xf32> to vector<8xf32>
    %41 = vector.shape_cast %40 : vector<8xf32> to vector<8x1xf32>
    %42 = tpu.reciprocal %41 {approx = true} : vector<8x1xf32> -> vector<8x1xf32>
    %43 = vector.broadcast %42 : vector<8x1xf32> to vector<8x8xf32>
    %44 = arith.mulf %39, %43 : vector<8x8xf32>
    %45 = arith.truncf %44 : vector<8x8xf32> to vector<8x8xbf16>
    %cst_14 = arith.constant dense<0.000000e+00> : vector<8x8xf32>
    %46 = tpu.matmul %45, %32, %cst_14 {dimension_numbers = #tpu.dot_dimension_numbers<[1], [0], [0], [1], [0, 0, 1, 1], [], []>} : vector<8x8xbf16>, vector<8x8xbf16>, vector<8x8xf32> -> vector<8x8xf32>
    %c0_15 = arith.constant 0 : index
    %c8 = arith.constant 8 : index
    %47 = vector.load %arg3[%c0_15, %c8] : memref<8x32xf32, #tpu.memory_space<vmem>>, vector<8x8xf32>
    tpu.vector_store %arg3[%c0_15, %c8], %46 {strides = array<i32>} : memref<8x32xf32, #tpu.memory_space<vmem>>, vector<8x8xf32>,
    %48 = vector.extract_strided_slice %1 {offsets = [0, 16], sizes = [8, 8], strides = [1, 1]} : vector<8x96xbf16> to vector<8x8xbf16>
    %cst_16 = arith.constant 3.535160e-01 : bf16
    %49 = vector.broadcast %cst_16 : bf16 to vector<8x8xbf16>
    %50 = arith.mulf %48, %49 : vector<8x8xbf16>
    %51 = vector.extract_strided_slice %1 {offsets = [0, 48], sizes = [8, 8], strides = [1, 1]} : vector<8x96xbf16> to vector<8x8xbf16>
    %52 = vector.extract_strided_slice %1 {offsets = [0, 80], sizes = [8, 8], strides = [1, 1]} : vector<8x96xbf16> to vector<8x8xbf16>
    %cst_17 = arith.constant dense<0.000000e+00> : vector<8x8xf32>
    %53 = tpu.matmul %50, %51, %cst_17 {dimension_numbers = #tpu.dot_dimension_numbers<[1], [1], [0], [0], [0, 0, 1, 0], [], []>} : vector<8x8xbf16>, vector<8x8xbf16>, vector<8x8xf32> -> vector<8x8xf32>
    %54 = arith.addf %53, %7 : vector<8x8xf32>
    %cst_18 = arith.constant dense<0xFF800000> : vector<8xf32>
    %55 = vector.multi_reduction <maximumf>, %54, %cst_18 [1] : vector<8x8xf32> to vector<8xf32>
    %56 = vector.shape_cast %55 : vector<8xf32> to vector<8x1xf32>
    %57 = vector.broadcast %56 : vector<8x1xf32> to vector<8x8xf32>
    %58 = arith.subf %54, %57 : vector<8x8xf32>
    %59 = math.exp %58 : vector<8x8xf32>
    %cst_19 = arith.constant dense<0.000000e+00> : vector<8xf32>
    %60 = vector.multi_reduction <add>, %59, %cst_19 [1] : vector<8x8xf32> to vector<8xf32>
    %61 = vector.shape_cast %60 : vector<8xf32> to vector<8x1xf32>
    %62 = tpu.reciprocal %61 {approx = true} : vector<8x1xf32> -> vector<8x1xf32>
    %63 = vector.broadcast %62 : vector<8x1xf32> to vector<8x8xf32>
    %64 = arith.mulf %59, %63 : vector<8x8xf32>
    %65 = arith.truncf %64 : vector<8x8xf32> to vector<8x8xbf16>
    %cst_20 = arith.constant dense<0.000000e+00> : vector<8x8xf32>
    %66 = tpu.matmul %65, %52, %cst_20 {dimension_numbers = #tpu.dot_dimension_numbers<[1], [0], [0], [1], [0, 0, 1, 1], [], []>} : vector<8x8xbf16>, vector<8x8xbf16>, vector<8x8xf32> -> vector<8x8xf32>
    %c0_21 = arith.constant 0 : index
    %c16 = arith.constant 16 : index
    %67 = vector.load %arg3[%c0_21, %c16] : memref<8x32xf32, #tpu.memory_space<vmem>>, vector<8x8xf32>
    tpu.vector_store %arg3[%c0_21, %c16], %66 {strides = array<i32>} : memref<8x32xf32, #tpu.memory_space<vmem>>, vector<8x8xf32>,
    %68 = vector.extract_strided_slice %1 {offsets = [0, 24], sizes = [8, 8], strides = [1, 1]} : vector<8x96xbf16> to vector<8x8xbf16>
    %cst_22 = arith.constant 3.535160e-01 : bf16
    %69 = vector.broadcast %cst_22 : bf16 to vector<8x8xbf16>
    %70 = arith.mulf %68, %69 : vector<8x8xbf16>
    %71 = vector.extract_strided_slice %1 {offsets = [0, 56], sizes = [8, 8], strides = [1, 1]} : vector<8x96xbf16> to vector<8x8xbf16>
    %72 = vector.extract_strided_slice %1 {offsets = [0, 88], sizes = [8, 8], strides = [1, 1]} : vector<8x96xbf16> to vector<8x8xbf16>
    %cst_23 = arith.constant dense<0.000000e+00> : vector<8x8xf32>
    %73 = tpu.matmul %70, %71, %cst_23 {dimension_numbers = #tpu.dot_dimension_numbers<[1], [1], [0], [0], [0, 0, 1, 0], [], []>} : vector<8x8xbf16>, vector<8x8xbf16>, vector<8x8xf32> -> vector<8x8xf32>
    %74 = arith.addf %73, %7 : vector<8x8xf32>
    %cst_24 = arith.constant dense<0xFF800000> : vector<8xf32>
    %75 = vector.multi_reduction <maximumf>, %74, %cst_24 [1] : vector<8x8xf32> to vector<8xf32>
    %76 = vector.shape_cast %75 : vector<8xf32> to vector<8x1xf32>
    %77 = vector.broadcast %76 : vector<8x1xf32> to vector<8x8xf32>
    %78 = arith.subf %74, %77 : vector<8x8xf32>
    %79 = math.exp %78 : vector<8x8xf32>
    %cst_25 = arith.constant dense<0.000000e+00> : vector<8xf32>
    %80 = vector.multi_reduction <add>, %79, %cst_25 [1] : vector<8x8xf32> to vector<8xf32>
    %81 = vector.shape_cast %80 : vector<8xf32> to vector<8x1xf32>
    %82 = tpu.reciprocal %81 {approx = true} : vector<8x1xf32> -> vector<8x1xf32>
    %83 = vector.broadcast %82 : vector<8x1xf32> to vector<8x8xf32>
    %84 = arith.mulf %79, %83 : vector<8x8xf32>
    %85 = arith.truncf %84 : vector<8x8xf32> to vector<8x8xbf16>
    %cst_26 = arith.constant dense<0.000000e+00> : vector<8x8xf32>
    %86 = tpu.matmul %85, %72, %cst_26 {dimension_numbers = #tpu.dot_dimension_numbers<[1], [0], [0], [1], [0, 0, 1, 1], [], []>} : vector<8x8xbf16>, vector<8x8xbf16>, vector<8x8xf32> -> vector<8x8xf32>
    %c0_27 = arith.constant 0 : index
    %c24 = arith.constant 24 : index
    %87 = vector.load %arg3[%c0_27, %c24] : memref<8x32xf32, #tpu.memory_space<vmem>>, vector<8x8xf32>
    tpu.vector_store %arg3[%c0_27, %c24], %86 {strides = array<i32>} : memref<8x32xf32, #tpu.memory_space<vmem>>, vector<8x8xf32>,
    %c0_28 = arith.constant 0 : index
    %c0_29 = arith.constant 0 : index
    %88 = vector.load %arg3[%c0_28, %c0_29] : memref<8x32xf32, #tpu.memory_space<vmem>>, vector<8x32xf32>
    %89 = arith.truncf %88 : vector<8x32xf32> to vector<8x32xbf16>
    %c0_30 = arith.constant 0 : index
    %c0_31 = arith.constant 0 : index
    %c0_32 = arith.constant 0 : index
    %90 = vector.load %arg2[%c0_30, %c0_31, %c0_32] : memref<1x8x32xbf16, #tpu.memory_space<vmem>>, vector<1x8x32xbf16>
    %91 = vector.shape_cast %90 : vector<1x8x32xbf16> to vector<8x32xbf16>
    %92 = vector.shape_cast %89 : vector<8x32xbf16> to vector<1x8x32xbf16>
    tpu.vector_store %arg2[%c0_30, %c0_31, %c0_32], %92 {strides = array<i32>} : memref<1x8x32xbf16, #tpu.memory_space<vmem>>, vector<1x8x32xbf16>,
    return
  }
  func.func @transform_0(%arg0: i32) -> (i32, i32, i32) {
    %c0_i32 = arith.constant 0 : i32
    %c0_i32_0 = arith.constant 0 : i32
    %c0_i32_1 = arith.constant 0 : i32
    return %arg0, %c0_i32, %c0_i32_0 : i32, i32, i32
  }
  func.func @transform_1(%arg0: i32) -> (i32, i32, i32) {
    %c0_i32 = arith.constant 0 : i32
    %c0_i32_0 = arith.constant 0 : i32
    %c0_i32_1 = arith.constant 0 : i32
    return %arg0, %c0_i32, %c0_i32_0 : i32, i32, i32
  }
}

module attributes {stable_mosaic.version = 11 : i64} {
  func.func @_linear_kernel(%arg0: i32, %arg1: i32, %arg2: i32, %arg3: memref<24x32xbf16, #tpu.memory_space<vmem>>, %arg4: memref<32x64xbf16, #tpu.memory_space<vmem>>, %arg5: memref<1x64xf32, #tpu.memory_space<vmem>>, %arg6: memref<24x64xbf16, #tpu.memory_space<vmem>>, %arg7: memref<24x64xf32, #tpu.memory_space<vmem>>) attributes {dimension_semantics = [#tpu.dimension_semantics<parallel>, #tpu.dimension_semantics<parallel>, #tpu.dimension_semantics<arbitrary>], iteration_bounds = array<i64: 1, 1, 1>, scalar_prefetch = 0 : i64, scratch_operands = 1 : i64, tpu.core_type = #tpu.core_type<tc>, window_params = [{transform_indices = @transform_0, window_bounds = array<i64: 24, 32>}, {transform_indices = @transform_1, window_bounds = array<i64: 32, 64>}, {transform_indices = @transform_2, window_bounds = array<i64: 1, 64>}, {transform_indices = @transform_3, window_bounds = array<i64: 24, 64>}]} {
    %c0_i32 = arith.constant 0 : i32
    %0 = arith.cmpi eq, %arg2, %c0_i32 : i32
    %1 = arith.extui %0 : i1 to i32
    %c0_i32_0 = arith.constant 0 : i32
    %2 = arith.cmpi ne, %1, %c0_i32_0 : i32
    scf.if %2 {
      %cst_10 = arith.constant 0.000000e+00 : f32
      %12 = vector.broadcast %cst_10 : f32 to vector<24x64xf32>
      %c0_11 = arith.constant 0 : index
      %c0_12 = arith.constant 0 : index
      %13 = vector.load %arg7[%c0_11, %c0_12] : memref<24x64xf32, #tpu.memory_space<vmem>>, vector<24x64xf32>
      tpu.vector_store %arg7[%c0_11, %c0_12], %12 {strides = array<i32>} : memref<24x64xf32, #tpu.memory_space<vmem>>, vector<24x64xf32>,
    } else {
    }
    %c0 = arith.constant 0 : index
    %c0_1 = arith.constant 0 : index
    %3 = vector.load %arg7[%c0, %c0_1] : memref<24x64xf32, #tpu.memory_space<vmem>>, vector<24x64xf32>
    %c0_2 = arith.constant 0 : index
    %c0_3 = arith.constant 0 : index
    %4 = vector.load %arg3[%c0_2, %c0_3] : memref<24x32xbf16, #tpu.memory_space<vmem>>, vector<24x32xbf16>
    %c0_4 = arith.constant 0 : index
    %c0_5 = arith.constant 0 : index
    %5 = vector.load %arg4[%c0_4, %c0_5] : memref<32x64xbf16, #tpu.memory_space<vmem>>, vector<32x64xbf16>
    %cst = arith.constant dense<0.000000e+00> : vector<24x64xf32>
    %6 = tpu.matmul %4, %5, %cst {dimension_numbers = #tpu.dot_dimension_numbers<[1], [0], [0], [1], [0, 0, 1, 1], [], []>} : vector<24x32xbf16>, vector<32x64xbf16>, vector<24x64xf32> -> vector<24x64xf32>
    %7 = arith.addf %3, %6 : vector<24x64xf32>
    %c0_6 = arith.constant 0 : index
    %c0_7 = arith.constant 0 : index
    %8 = vector.load %arg7[%c0_6, %c0_7] : memref<24x64xf32, #tpu.memory_space<vmem>>, vector<24x64xf32>
    tpu.vector_store %arg7[%c0_6, %c0_7], %7 {strides = array<i32>} : memref<24x64xf32, #tpu.memory_space<vmem>>, vector<24x64xf32>,
    %c0_i32_8 = arith.constant 0 : i32
    %9 = arith.cmpi eq, %arg2, %c0_i32_8 : i32
    %10 = arith.extui %9 : i1 to i32
    %c0_i32_9 = arith.constant 0 : i32
    %11 = arith.cmpi ne, %10, %c0_i32_9 : i32
    scf.if %11 {
      %c0_10 = arith.constant 0 : index
      %c0_11 = arith.constant 0 : index
      %12 = vector.load %arg7[%c0_10, %c0_11] : memref<24x64xf32, #tpu.memory_space<vmem>>, vector<24x64xf32>
      %c0_12 = arith.constant 0 : index
      %c0_13 = arith.constant 0 : index
      %13 = vector.load %arg5[%c0_12, %c0_13] : memref<1x64xf32, #tpu.memory_space<vmem>>, vector<1x64xf32>
      %14 = vector.broadcast %13 : vector<1x64xf32> to vector<24x64xf32>
      %15 = arith.addf %12, %14 : vector<24x64xf32>
      %16 = arith.truncf %15 : vector<24x64xf32> to vector<24x64xbf16>
      %c0_14 = arith.constant 0 : index
      %c0_15 = arith.constant 0 : index
      %17 = vector.load %arg6[%c0_14, %c0_15] : memref<24x64xbf16, #tpu.memory_space<vmem>>, vector<24x64xbf16>
      tpu.vector_store %arg6[%c0_14, %c0_15], %16 {strides = array<i32>} : memref<24x64xbf16, #tpu.memory_space<vmem>>, vector<24x64xbf16>,
    } else {
    }
    return
  }
  func.func @transform_0(%arg0: i32, %arg1: i32, %arg2: i32) -> (i32, i32) {
    %c0_i32 = arith.constant 0 : i32
    return %arg0, %arg2 : i32, i32
  }
  func.func @transform_1(%arg0: i32, %arg1: i32, %arg2: i32) -> (i32, i32) {
    %c0_i32 = arith.constant 0 : i32
    return %arg2, %arg1 : i32, i32
  }
  func.func @transform_2(%arg0: i32, %arg1: i32, %arg2: i32) -> (i32, i32) {
    %c0_i32 = arith.constant 0 : i32
    %c0_i32_0 = arith.constant 0 : i32
    return %c0_i32, %arg1 : i32, i32
  }
  func.func @transform_3(%arg0: i32, %arg1: i32, %arg2: i32) -> (i32, i32) {
    %c0_i32 = arith.constant 0 : i32
    return %arg0, %arg1 : i32, i32
  }
}

module attributes {stable_mosaic.version = 11 : i64} {
  func.func @_linear_kernel(%arg0: i32, %arg1: i32, %arg2: i32, %arg3: memref<16x32xbf16, #tpu.memory_space<vmem>>, %arg4: memref<32x64xbf16, #tpu.memory_space<vmem>>, %arg5: memref<1x64xf32, #tpu.memory_space<vmem>>, %arg6: memref<16x64xbf16, #tpu.memory_space<vmem>>, %arg7: memref<16x64xf32, #tpu.memory_space<vmem>>) attributes {dimension_semantics = [#tpu.dimension_semantics<parallel>, #tpu.dimension_semantics<parallel>, #tpu.dimension_semantics<arbitrary>], iteration_bounds = array<i64: 1, 1, 1>, scalar_prefetch = 0 : i64, scratch_operands = 1 : i64, tpu.core_type = #tpu.core_type<tc>, window_params = [{transform_indices = @transform_0, window_bounds = array<i64: 16, 32>}, {transform_indices = @transform_1, window_bounds = array<i64: 32, 64>}, {transform_indices = @transform_2, window_bounds = array<i64: 1, 64>}, {transform_indices = @transform_3, window_bounds = array<i64: 16, 64>}]} {
    %c0_i32 = arith.constant 0 : i32
    %0 = arith.cmpi eq, %arg2, %c0_i32 : i32
    %1 = arith.extui %0 : i1 to i32
    %c0_i32_0 = arith.constant 0 : i32
    %2 = arith.cmpi ne, %1, %c0_i32_0 : i32
    scf.if %2 {
      %cst_10 = arith.constant 0.000000e+00 : f32
      %12 = vector.broadcast %cst_10 : f32 to vector<16x64xf32>
      %c0_11 = arith.constant 0 : index
      %c0_12 = arith.constant 0 : index
      %13 = vector.load %arg7[%c0_11, %c0_12] : memref<16x64xf32, #tpu.memory_space<vmem>>, vector<16x64xf32>
      tpu.vector_store %arg7[%c0_11, %c0_12], %12 {strides = array<i32>} : memref<16x64xf32, #tpu.memory_space<vmem>>, vector<16x64xf32>,
    } else {
    }
    %c0 = arith.constant 0 : index
    %c0_1 = arith.constant 0 : index
    %3 = vector.load %arg7[%c0, %c0_1] : memref<16x64xf32, #tpu.memory_space<vmem>>, vector<16x64xf32>
    %c0_2 = arith.constant 0 : index
    %c0_3 = arith.constant 0 : index
    %4 = vector.load %arg3[%c0_2, %c0_3] : memref<16x32xbf16, #tpu.memory_space<vmem>>, vector<16x32xbf16>
    %c0_4 = arith.constant 0 : index
    %c0_5 = arith.constant 0 : index
    %5 = vector.load %arg4[%c0_4, %c0_5] : memref<32x64xbf16, #tpu.memory_space<vmem>>, vector<32x64xbf16>
    %cst = arith.constant dense<0.000000e+00> : vector<16x64xf32>
    %6 = tpu.matmul %4, %5, %cst {dimension_numbers = #tpu.dot_dimension_numbers<[1], [0], [0], [1], [0, 0, 1, 1], [], []>} : vector<16x32xbf16>, vector<32x64xbf16>, vector<16x64xf32> -> vector<16x64xf32>
    %7 = arith.addf %3, %6 : vector<16x64xf32>
    %c0_6 = arith.constant 0 : index
    %c0_7 = arith.constant 0 : index
    %8 = vector.load %arg7[%c0_6, %c0_7] : memref<16x64xf32, #tpu.memory_space<vmem>>, vector<16x64xf32>
    tpu.vector_store %arg7[%c0_6, %c0_7], %7 {strides = array<i32>} : memref<16x64xf32, #tpu.memory_space<vmem>>, vector<16x64xf32>,
    %c0_i32_8 = arith.constant 0 : i32
    %9 = arith.cmpi eq, %arg2, %c0_i32_8 : i32
    %10 = arith.extui %9 : i1 to i32
    %c0_i32_9 = arith.constant 0 : i32
    %11 = arith.cmpi ne, %10, %c0_i32_9 : i32
    scf.if %11 {
      %c0_10 = arith.constant 0 : index
      %c0_11 = arith.constant 0 : index
      %12 = vector.load %arg7[%c0_10, %c0_11] : memref<16x64xf32, #tpu.memory_space<vmem>>, vector<16x64xf32>
      %c0_12 = arith.constant 0 : index
      %c0_13 = arith.constant 0 : index
      %13 = vector.load %arg5[%c0_12, %c0_13] : memref<1x64xf32, #tpu.memory_space<vmem>>, vector<1x64xf32>
      %14 = vector.broadcast %13 : vector<1x64xf32> to vector<16x64xf32>
      %15 = arith.addf %12, %14 : vector<16x64xf32>
      %cst_14 = arith.constant 0.000000e+00 : f32
      %16 = vector.broadcast %cst_14 : f32 to vector<16x64xf32>
      %17 = arith.maximumf %15, %16 : vector<16x64xf32>
      %18 = arith.truncf %17 : vector<16x64xf32> to vector<16x64xbf16>
      %c0_15 = arith.constant 0 : index
      %c0_16 = arith.constant 0 : index
      %19 = vector.load %arg6[%c0_15, %c0_16] : memref<16x64xbf16, #tpu.memory_space<vmem>>, vector<16x64xbf16>
      tpu.vector_store %arg6[%c0_15, %c0_16], %18 {strides = array<i32>} : memref<16x64xbf16, #tpu.memory_space<vmem>>, vector<16x64xbf16>,
    } else {
    }
    return
  }
  func.func @transform_0(%arg0: i32, %arg1: i32, %arg2: i32) -> (i32, i32) {
    %c0_i32 = arith.constant 0 : i32
    return %arg0, %arg2 : i32, i32
  }
  func.func @transform_1(%arg0: i32, %arg1: i32, %arg2: i32) -> (i32, i32) {
    %c0_i32 = arith.constant 0 : i32
    return %arg2, %arg1 : i32, i32
  }
  func.func @transform_2(%arg0: i32, %arg1: i32, %arg2: i32) -> (i32, i32) {
    %c0_i32 = arith.constant 0 : i32
    %c0_i32_0 = arith.constant 0 : i32
    return %c0_i32, %arg1 : i32, i32
  }
  func.func @transform_3(%arg0: i32, %arg1: i32, %arg2: i32) -> (i32, i32) {
    %c0_i32 = arith.constant 0 : i32
    return %arg0, %arg1 : i32, i32
  }
}

module attributes {stable_mosaic.version = 11 : i64} {
  func.func @_mha_cross_kernel(%arg0: i32, %arg1: memref<1x8x32xbf16, #tpu.memory_space<vmem>>, %arg2: memref<1x12x64xbf16, #tpu.memory_space<vmem>>, %arg3: memref<1x1x12xi32, #tpu.memory_space<vmem>>, %arg4: memref<1x8x32xbf16, #tpu.memory_space<vmem>>, %arg5: memref<8x32xf32, #tpu.memory_space<vmem>>) attributes {dimension_semantics = [#tpu.dimension_semantics<parallel>], iteration_bounds = array<i64: 2>, scalar_prefetch = 0 : i64, scratch_operands = 1 : i64, tpu.core_type = #tpu.core_type<tc>, window_params = [{transform_indices = @transform_0, window_bounds = array<i64: 1, 8, 32>}, {transform_indices = @transform_1, window_bounds = array<i64: 1, 12, 64>}, {transform_indices = @transform_2, window_bounds = array<i64: 1, 1, 12>}, {transform_indices = @transform_3, window_bounds = array<i64: 1, 8, 32>}]} {
    %c0 = arith.constant 0 : index
    %c0_0 = arith.constant 0 : index
    %c0_1 = arith.constant 0 : index
    %0 = vector.load %arg1[%c0, %c0_0, %c0_1] : memref<1x8x32xbf16, #tpu.memory_space<vmem>>, vector<1x8x32xbf16>
    %1 = vector.shape_cast %0 : vector<1x8x32xbf16> to vector<8x32xbf16>
    %c0_2 = arith.constant 0 : index
    %c0_3 = arith.constant 0 : index
    %c0_4 = arith.constant 0 : index
    %2 = vector.load %arg2[%c0_2, %c0_3, %c0_4] : memref<1x12x64xbf16, #tpu.memory_space<vmem>>, vector<1x12x64xbf16>
    %3 = vector.shape_cast %2 : vector<1x12x64xbf16> to vector<12x64xbf16>
    %c0_5 = arith.constant 0 : index
    %c0_6 = arith.constant 0 : index
    %c0_7 = arith.constant 0 : index
    %4 = vector.load %arg3[%c0_5, %c0_6, %c0_7] : memref<1x1x12xi32, #tpu.memory_space<vmem>>, vector<1x1x12xi32>
    %5 = vector.shape_cast %4 : vector<1x1x12xi32> to vector<1x12xi32>
    %c0_i32 = arith.constant 0 : i32
    %6 = vector.broadcast %c0_i32 : i32 to vector<1x12xi32>
    %7 = arith.cmpi eq, %5, %6 : vector<1x12xi32>
    %cst = arith.constant -1.000000e+09 : f32
    %cst_8 = arith.constant 0.000000e+00 : f32
    %8 = vector.broadcast %cst : f32 to vector<1x12xf32>
    %9 = vector.broadcast %cst_8 : f32 to vector<1x12xf32>
    %10 = arith.select %7, %8, %9 : vector<1x12xi1>, vector<1x12xf32>
    %11 = vector.extract_strided_slice %1 {offsets = [0, 0], sizes = [8, 8], strides = [1, 1]} : vector<8x32xbf16> to vector<8x8xbf16>
    %cst_9 = arith.constant 3.535160e-01 : bf16
    %12 = vector.broadcast %cst_9 : bf16 to vector<8x8xbf16>
    %13 = arith.mulf %11, %12 : vector<8x8xbf16>
    %14 = vector.extract_strided_slice %3 {offsets = [0, 0], sizes = [12, 8], strides = [1, 1]} : vector<12x64xbf16> to vector<12x8xbf16>
    %15 = vector.extract_strided_slice %3 {offsets = [0, 32], sizes = [12, 8], strides = [1, 1]} : vector<12x64xbf16> to vector<12x8xbf16>
    %cst_10 = arith.constant dense<0.000000e+00> : vector<8x12xf32>
    %16 = tpu.matmul %13, %14, %cst_10 {dimension_numbers = #tpu.dot_dimension_numbers<[1], [1], [0], [0], [0, 0, 1, 0], [], []>} : vector<8x8xbf16>, vector<12x8xbf16>, vector<8x12xf32> -> vector<8x12xf32>
    %17 = vector.broadcast %10 : vector<1x12xf32> to vector<8x12xf32>
    %18 = arith.addf %16, %17 : vector<8x12xf32>
    %cst_11 = arith.constant dense<0xFF800000> : vector<8xf32>
    %19 = vector.multi_reduction <maximumf>, %18, %cst_11 [1] : vector<8x12xf32> to vector<8xf32>
    %20 = vector.shape_cast %19 : vector<8xf32> to vector<8x1xf32>
    %21 = vector.broadcast %20 : vector<8x1xf32> to vector<8x12xf32>
    %22 = arith.subf %18, %21 : vector<8x12xf32>
    %23 = math.exp %22 : vector<8x12xf32>
    %cst_12 = arith.constant dense<0.000000e+00> : vector<8xf32>
    %24 = vector.multi_reduction <add>, %23, %cst_12 [1] : vector<8x12xf32> to vector<8xf32>
    %25 = vector.shape_cast %24 : vector<8xf32> to vector<8x1xf32>
    %26 = tpu.reciprocal %25 {approx = true} : vector<8x1xf32> -> vector<8x1xf32>
    %27 = vector.broadcast %26 : vector<8x1xf32> to vector<8x12xf32>
    %28 = arith.mulf %23, %27 : vector<8x12xf32>
    %29 = arith.truncf %28 : vector<8x12xf32> to vector<8x12xbf16>
    %cst_13 = arith.constant dense<0.000000e+00> : vector<8x8xf32>
    %30 = tpu.matmul %29, %15, %cst_13 {dimension_numbers = #tpu.dot_dimension_numbers<[1], [0], [0], [1], [0, 0, 1, 1], [], []>} : vector<8x12xbf16>, vector<12x8xbf16>, vector<8x8xf32> -> vector<8x8xf32>
    %c0_14 = arith.constant 0 : index
    %c0_15 = arith.constant 0 : index
    %31 = vector.load %arg5[%c0_14, %c0_15] : memref<8x32xf32, #tpu.memory_space<vmem>>, vector<8x8xf32>
    tpu.vector_store %arg5[%c0_14, %c0_15], %30 {strides = array<i32>} : memref<8x32xf32, #tpu.memory_space<vmem>>, vector<8x8xf32>,
    %32 = vector.extract_strided_slice %1 {offsets = [0, 8], sizes = [8, 8], strides = [1, 1]} : vector<8x32xbf16> to vector<8x8xbf16>
    %cst_16 = arith.constant 3.535160e-01 : bf16
    %33 = vector.broadcast %cst_16 : bf16 to vector<8x8xbf16>
    %34 = arith.mulf %32, %33 : vector<8x8xbf16>
    %35 = vector.extract_strided_slice %3 {offsets = [0, 8], sizes = [12, 8], strides = [1, 1]} : vector<12x64xbf16> to vector<12x8xbf16>
    %36 = vector.extract_strided_slice %3 {offsets = [0, 40], sizes = [12, 8], strides = [1, 1]} : vector<12x64xbf16> to vector<12x8xbf16>
    %cst_17 = arith.constant dense<0.000000e+00> : vector<8x12xf32>
    %37 = tpu.matmul %34, %35, %cst_17 {dimension_numbers = #tpu.dot_dimension_numbers<[1], [1], [0], [0], [0, 0, 1, 0], [], []>} : vector<8x8xbf16>, vector<12x8xbf16>, vector<8x12xf32> -> vector<8x12xf32>
    %38 = vector.broadcast %10 : vector<1x12xf32> to vector<8x12xf32>
    %39 = arith.addf %37, %38 : vector<8x12xf32>
    %cst_18 = arith.constant dense<0xFF800000> : vector<8xf32>
    %40 = vector.multi_reduction <maximumf>, %39, %cst_18 [1] : vector<8x12xf32> to vector<8xf32>
    %41 = vector.shape_cast %40 : vector<8xf32> to vector<8x1xf32>
    %42 = vector.broadcast %41 : vector<8x1xf32> to vector<8x12xf32>
    %43 = arith.subf %39, %42 : vector<8x12xf32>
    %44 = math.exp %43 : vector<8x12xf32>
    %cst_19 = arith.constant dense<0.000000e+00> : vector<8xf32>
    %45 = vector.multi_reduction <add>, %44, %cst_19 [1] : vector<8x12xf32> to vector<8xf32>
    %46 = vector.shape_cast %45 : vector<8xf32> to vector<8x1xf32>
    %47 = tpu.reciprocal %46 {approx = true} : vector<8x1xf32> -> vector<8x1xf32>
    %48 = vector.broadcast %47 : vector<8x1xf32> to vector<8x12xf32>
    %49 = arith.mulf %44, %48 : vector<8x12xf32>
    %50 = arith.truncf %49 : vector<8x12xf32> to vector<8x12xbf16>
    %cst_20 = arith.constant dense<0.000000e+00> : vector<8x8xf32>
    %51 = tpu.matmul %50, %36, %cst_20 {dimension_numbers = #tpu.dot_dimension_numbers<[1], [0], [0], [1], [0, 0, 1, 1], [], []>} : vector<8x12xbf16>, vector<12x8xbf16>, vector<8x8xf32> -> vector<8x8xf32>
    %c0_21 = arith.constant 0 : index
    %c8 = arith.constant 8 : index
    %52 = vector.load %arg5[%c0_21, %c8] : memref<8x32xf32, #tpu.memory_space<vmem>>, vector<8x8xf32>
    tpu.vector_store %arg5[%c0_21, %c8], %51 {strides = array<i32>} : memref<8x32xf32, #tpu.memory_space<vmem>>, vector<8x8xf32>,
    %53 = vector.extract_strided_slice %1 {offsets = [0, 16], sizes = [8, 8], strides = [1, 1]} : vector<8x32xbf16> to vector<8x8xbf16>
    %cst_22 = arith.constant 3.535160e-01 : bf16
    %54 = vector.broadcast %cst_22 : bf16 to vector<8x8xbf16>
    %55 = arith.mulf %53, %54 : vector<8x8xbf16>
    %56 = vector.extract_strided_slice %3 {offsets = [0, 16], sizes = [12, 8], strides = [1, 1]} : vector<12x64xbf16> to vector<12x8xbf16>
    %57 = vector.extract_strided_slice %3 {offsets = [0, 48], sizes = [12, 8], strides = [1, 1]} : vector<12x64xbf16> to vector<12x8xbf16>
    %cst_23 = arith.constant dense<0.000000e+00> : vector<8x12xf32>
    %58 = tpu.matmul %55, %56, %cst_23 {dimension_numbers = #tpu.dot_dimension_numbers<[1], [1], [0], [0], [0, 0, 1, 0], [], []>} : vector<8x8xbf16>, vector<12x8xbf16>, vector<8x12xf32> -> vector<8x12xf32>
    %59 = vector.broadcast %10 : vector<1x12xf32> to vector<8x12xf32>
    %60 = arith.addf %58, %59 : vector<8x12xf32>
    %cst_24 = arith.constant dense<0xFF800000> : vector<8xf32>
    %61 = vector.multi_reduction <maximumf>, %60, %cst_24 [1] : vector<8x12xf32> to vector<8xf32>
    %62 = vector.shape_cast %61 : vector<8xf32> to vector<8x1xf32>
    %63 = vector.broadcast %62 : vector<8x1xf32> to vector<8x12xf32>
    %64 = arith.subf %60, %63 : vector<8x12xf32>
    %65 = math.exp %64 : vector<8x12xf32>
    %cst_25 = arith.constant dense<0.000000e+00> : vector<8xf32>
    %66 = vector.multi_reduction <add>, %65, %cst_25 [1] : vector<8x12xf32> to vector<8xf32>
    %67 = vector.shape_cast %66 : vector<8xf32> to vector<8x1xf32>
    %68 = tpu.reciprocal %67 {approx = true} : vector<8x1xf32> -> vector<8x1xf32>
    %69 = vector.broadcast %68 : vector<8x1xf32> to vector<8x12xf32>
    %70 = arith.mulf %65, %69 : vector<8x12xf32>
    %71 = arith.truncf %70 : vector<8x12xf32> to vector<8x12xbf16>
    %cst_26 = arith.constant dense<0.000000e+00> : vector<8x8xf32>
    %72 = tpu.matmul %71, %57, %cst_26 {dimension_numbers = #tpu.dot_dimension_numbers<[1], [0], [0], [1], [0, 0, 1, 1], [], []>} : vector<8x12xbf16>, vector<12x8xbf16>, vector<8x8xf32> -> vector<8x8xf32>
    %c0_27 = arith.constant 0 : index
    %c16 = arith.constant 16 : index
    %73 = vector.load %arg5[%c0_27, %c16] : memref<8x32xf32, #tpu.memory_space<vmem>>, vector<8x8xf32>
    tpu.vector_store %arg5[%c0_27, %c16], %72 {strides = array<i32>} : memref<8x32xf32, #tpu.memory_space<vmem>>, vector<8x8xf32>,
    %74 = vector.extract_strided_slice %1 {offsets = [0, 24], sizes = [8, 8], strides = [1, 1]} : vector<8x32xbf16> to vector<8x8xbf16>
    %cst_28 = arith.constant 3.535160e-01 : bf16
    %75 = vector.broadcast %cst_28 : bf16 to vector<8x8xbf16>
    %76 = arith.mulf %74, %75 : vector<8x8xbf16>
    %77 = vector.extract_strided_slice %3 {offsets = [0, 24], sizes = [12, 8], strides = [1, 1]} : vector<12x64xbf16> to vector<12x8xbf16>
    %78 = vector.extract_strided_slice %3 {offsets = [0, 56], sizes = [12, 8], strides = [1, 1]} : vector<12x64xbf16> to vector<12x8xbf16>
    %cst_29 = arith.constant dense<0.000000e+00> : vector<8x12xf32>
    %79 = tpu.matmul %76, %77, %cst_29 {dimension_numbers = #tpu.dot_dimension_numbers<[1], [1], [0], [0], [0, 0, 1, 0], [], []>} : vector<8x8xbf16>, vector<12x8xbf16>, vector<8x12xf32> -> vector<8x12xf32>
    %80 = vector.broadcast %10 : vector<1x12xf32> to vector<8x12xf32>
    %81 = arith.addf %79, %80 : vector<8x12xf32>
    %cst_30 = arith.constant dense<0xFF800000> : vector<8xf32>
    %82 = vector.multi_reduction <maximumf>, %81, %cst_30 [1] : vector<8x12xf32> to vector<8xf32>
    %83 = vector.shape_cast %82 : vector<8xf32> to vector<8x1xf32>
    %84 = vector.broadcast %83 : vector<8x1xf32> to vector<8x12xf32>
    %85 = arith.subf %81, %84 : vector<8x12xf32>
    %86 = math.exp %85 : vector<8x12xf32>
    %cst_31 = arith.constant dense<0.000000e+00> : vector<8xf32>
    %87 = vector.multi_reduction <add>, %86, %cst_31 [1] : vector<8x12xf32> to vector<8xf32>
    %88 = vector.shape_cast %87 : vector<8xf32> to vector<8x1xf32>
    %89 = tpu.reciprocal %88 {approx = true} : vector<8x1xf32> -> vector<8x1xf32>
    %90 = vector.broadcast %89 : vector<8x1xf32> to vector<8x12xf32>
    %91 = arith.mulf %86, %90 : vector<8x12xf32>
    %92 = arith.truncf %91 : vector<8x12xf32> to vector<8x12xbf16>
    %cst_32 = arith.constant dense<0.000000e+00> : vector<8x8xf32>
    %93 = tpu.matmul %92, %78, %cst_32 {dimension_numbers = #tpu.dot_dimension_numbers<[1], [0], [0], [1], [0, 0, 1, 1], [], []>} : vector<8x12xbf16>, vector<12x8xbf16>, vector<8x8xf32> -> vector<8x8xf32>
    %c0_33 = arith.constant 0 : index
    %c24 = arith.constant 24 : index
    %94 = vector.load %arg5[%c0_33, %c24] : memref<8x32xf32, #tpu.memory_space<vmem>>, vector<8x8xf32>
    tpu.vector_store %arg5[%c0_33, %c24], %93 {strides = array<i32>} : memref<8x32xf32, #tpu.memory_space<vmem>>, vector<8x8xf32>,
    %c0_34 = arith.constant 0 : index
    %c0_35 = arith.constant 0 : index
    %95 = vector.load %arg5[%c0_34, %c0_35] : memref<8x32xf32, #tpu.memory_space<vmem>>, vector<8x32xf32>
    %96 = arith.truncf %95 : vector<8x32xf32> to vector<8x32xbf16>
    %c0_36 = arith.constant 0 : index
    %c0_37 = arith.constant 0 : index
    %c0_38 = arith.constant 0 : index
    %97 = vector.load %arg4[%c0_36, %c0_37, %c0_38] : memref<1x8x32xbf16, #tpu.memory_space<vmem>>, vector<1x8x32xbf16>
    %98 = vector.shape_cast %97 : vector<1x8x32xbf16> to vector<8x32xbf16>
    %99 = vector.shape_cast %96 : vector<8x32xbf16> to vector<1x8x32xbf16>
    tpu.vector_store %arg4[%c0_36, %c0_37, %c0_38], %99 {strides = array<i32>} : memref<1x8x32xbf16, #tpu.memory_space<vmem>>, vector<1x8x32xbf16>,
    return
  }
  func.func @transform_0(%arg0: i32) -> (i32, i32, i32) {
    %c0_i32 = arith.constant 0 : i32
    %c0_i32_0 = arith.constant 0 : i32
    %c0_i32_1 = arith.constant 0 : i32
    return %arg0, %c0_i32, %c0_i32_0 : i32, i32, i32
  }
  func.func @transform_1(%arg0: i32) -> (i32, i32, i32) {
    %c0_i32 = arith.constant 0 : i32
    %c0_i32_0 = arith.constant 0 : i32
    %c0_i32_1 = arith.constant 0 : i32
    return %arg0, %c0_i32, %c0_i32_0 : i32, i32, i32
  }
  func.func @transform_2(%arg0: i32) -> (i32, i32, i32) {
    %c0_i32 = arith.constant 0 : i32
    %c0_i32_0 = arith.constant 0 : i32
    %c0_i32_1 = arith.constant 0 : i32
    return %arg0, %c0_i32, %c0_i32_0 : i32, i32, i32
  }
  func.func @transform_3(%arg0: i32) -> (i32, i32, i32) {
    %c0_i32 = arith.constant 0 : i32
    %c0_i32_0 = arith.constant 0 : i32
    %c0_i32_1 = arith.constant 0 : i32
    return %arg0, %c0_i32, %c0_i32_0 : i32, i32, i32
  }
}

module attributes {stable_mosaic.version = 11 : i64} {
  func.func @_linear_add_ln_kernel(%arg0: i32, %arg1: i32, %arg2: memref<16x64xbf16, #tpu.memory_space<vmem>>, %arg3: memref<64x32xbf16, #tpu.memory_space<vmem>>, %arg4: memref<1x32xf32, #tpu.memory_space<vmem>>, %arg5: memref<16x32xf32, #tpu.memory_space<vmem>>, %arg6: memref<1x32xf32, #tpu.memory_space<vmem>>, %arg7: memref<1x32xf32, #tpu.memory_space<vmem>>, %arg8: memref<16x32xf32, #tpu.memory_space<vmem>>, %arg9: memref<16x32xbf16, #tpu.memory_space<vmem>>, %arg10: memref<16x32xf32, #tpu.memory_space<vmem>>) attributes {dimension_semantics = [#tpu.dimension_semantics<parallel>, #tpu.dimension_semantics<arbitrary>], iteration_bounds = array<i64: 1, 1>, scalar_prefetch = 0 : i64, scratch_operands = 1 : i64, tpu.core_type = #tpu.core_type<tc>, window_params = [{transform_indices = @transform_0, window_bounds = array<i64: 16, 64>}, {transform_indices = @transform_1, window_bounds = array<i64: 64, 32>}, {pipeline_mode = #tpu.pipeline_mode<synchronous>, transform_indices = @transform_2, window_bounds = array<i64: 1, 32>}, {transform_indices = @transform_3, window_bounds = array<i64: 16, 32>}, {pipeline_mode = #tpu.pipeline_mode<synchronous>, transform_indices = @transform_4, window_bounds = array<i64: 1, 32>}, {pipeline_mode = #tpu.pipeline_mode<synchronous>, transform_indices = @transform_5, window_bounds = array<i64: 1, 32>}, {transform_indices = @transform_6, window_bounds = array<i64: 16, 32>}, {transform_indices = @transform_7, window_bounds = array<i64: 16, 32>}]} {
    %c0_i32 = arith.constant 0 : i32
    %0 = arith.cmpi eq, %arg1, %c0_i32 : i32
    %1 = arith.extui %0 : i1 to i32
    %c0_i32_0 = arith.constant 0 : i32
    %2 = arith.cmpi ne, %1, %c0_i32_0 : i32
    scf.if %2 {
      %cst_10 = arith.constant 0.000000e+00 : f32
      %12 = vector.broadcast %cst_10 : f32 to vector<16x32xf32>
      %c0_11 = arith.constant 0 : index
      %c0_12 = arith.constant 0 : index
      %13 = vector.load %arg10[%c0_11, %c0_12] : memref<16x32xf32, #tpu.memory_space<vmem>>, vector<16x32xf32>
      tpu.vector_store %arg10[%c0_11, %c0_12], %12 {strides = array<i32>} : memref<16x32xf32, #tpu.memory_space<vmem>>, vector<16x32xf32>,
    } else {
    }
    %c0 = arith.constant 0 : index
    %c0_1 = arith.constant 0 : index
    %3 = vector.load %arg10[%c0, %c0_1] : memref<16x32xf32, #tpu.memory_space<vmem>>, vector<16x32xf32>
    %c0_2 = arith.constant 0 : index
    %c0_3 = arith.constant 0 : index
    %4 = vector.load %arg2[%c0_2, %c0_3] : memref<16x64xbf16, #tpu.memory_space<vmem>>, vector<16x64xbf16>
    %c0_4 = arith.constant 0 : index
    %c0_5 = arith.constant 0 : index
    %5 = vector.load %arg3[%c0_4, %c0_5] : memref<64x32xbf16, #tpu.memory_space<vmem>>, vector<64x32xbf16>
    %cst = arith.constant dense<0.000000e+00> : vector<16x32xf32>
    %6 = tpu.matmul %4, %5, %cst {dimension_numbers = #tpu.dot_dimension_numbers<[1], [0], [0], [1], [0, 0, 1, 1], [], []>} : vector<16x64xbf16>, vector<64x32xbf16>, vector<16x32xf32> -> vector<16x32xf32>
    %7 = arith.addf %3, %6 : vector<16x32xf32>
    %c0_6 = arith.constant 0 : index
    %c0_7 = arith.constant 0 : index
    %8 = vector.load %arg10[%c0_6, %c0_7] : memref<16x32xf32, #tpu.memory_space<vmem>>, vector<16x32xf32>
    tpu.vector_store %arg10[%c0_6, %c0_7], %7 {strides = array<i32>} : memref<16x32xf32, #tpu.memory_space<vmem>>, vector<16x32xf32>,
    %c0_i32_8 = arith.constant 0 : i32
    %9 = arith.cmpi eq, %arg1, %c0_i32_8 : i32
    %10 = arith.extui %9 : i1 to i32
    %c0_i32_9 = arith.constant 0 : i32
    %11 = arith.cmpi ne, %10, %c0_i32_9 : i32
    scf.if %11 {
      %c0_10 = arith.constant 0 : index
      %c0_11 = arith.constant 0 : index
      %12 = vector.load %arg10[%c0_10, %c0_11] : memref<16x32xf32, #tpu.memory_space<vmem>>, vector<16x32xf32>
      %c0_12 = arith.constant 0 : index
      %c0_13 = arith.constant 0 : index
      %13 = vector.load %arg4[%c0_12, %c0_13] : memref<1x32xf32, #tpu.memory_space<vmem>>, vector<1x32xf32>
      %14 = vector.broadcast %13 : vector<1x32xf32> to vector<16x32xf32>
      %15 = arith.addf %12, %14 : vector<16x32xf32>
      %c0_14 = arith.constant 0 : index
      %c0_15 = arith.constant 0 : index
      %16 = vector.load %arg5[%c0_14, %c0_15] : memref<16x32xf32, #tpu.memory_space<vmem>>, vector<16x32xf32>
      %17 = arith.addf %15, %16 : vector<16x32xf32>
      %cst_16 = arith.constant dense<0.000000e+00> : vector<16xf32>
      %18 = vector.multi_reduction <add>, %17, %cst_16 [1] : vector<16x32xf32> to vector<16xf32>
      %19 = vector.shape_cast %18 : vector<16xf32> to vector<16x1xf32>
      %cst_17 = arith.constant 3.200000e+01 : f32
      %20 = vector.broadcast %cst_17 : f32 to vector<16x1xf32>
      %21 = arith.divf %19, %20 : vector<16x1xf32>
      %22 = vector.broadcast %21 : vector<16x1xf32> to vector<16x32xf32>
      %23 = arith.subf %17, %22 : vector<16x32xf32>
      %24 = arith.mulf %23, %23 : vector<16x32xf32>
      %cst_18 = arith.constant dense<0.000000e+00> : vector<16xf32>
      %25 = vector.multi_reduction <add>, %24, %cst_18 [1] : vector<16x32xf32> to vector<16xf32>
      %26 = vector.shape_cast %25 : vector<16xf32> to vector<16x1xf32>
      %cst_19 = arith.constant 3.200000e+01 : f32
      %27 = vector.broadcast %cst_19 : f32 to vector<16x1xf32>
      %28 = arith.divf %26, %27 : vector<16x1xf32>
      %29 = vector.broadcast %21 : vector<16x1xf32> to vector<16x32xf32>
      %30 = arith.subf %17, %29 : vector<16x32xf32>
      %cst_20 = arith.constant 9.99999974E-6 : f32
      %31 = vector.broadcast %cst_20 : f32 to vector<16x1xf32>
      %32 = arith.addf %28, %31 : vector<16x1xf32>
      %33 = math.rsqrt %32 : vector<16x1xf32>
      %34 = vector.broadcast %33 : vector<16x1xf32> to vector<16x32xf32>
      %35 = arith.mulf %30, %34 : vector<16x32xf32>
      %c0_21 = arith.constant 0 : index
      %c0_22 = arith.constant 0 : index
      %36 = vector.load %arg6[%c0_21, %c0_22] : memref<1x32xf32, #tpu.memory_space<vmem>>, vector<1x32xf32>
      %37 = vector.broadcast %36 : vector<1x32xf32> to vector<16x32xf32>
      %38 = arith.mulf %35, %37 : vector<16x32xf32>
      %c0_23 = arith.constant 0 : index
      %c0_24 = arith.constant 0 : index
      %39 = vector.load %arg7[%c0_23, %c0_24] : memref<1x32xf32, #tpu.memory_space<vmem>>, vector<1x32xf32>
      %40 = vector.broadcast %39 : vector<1x32xf32> to vector<16x32xf32>
      %41 = arith.addf %38, %40 : vector<16x32xf32>
      %c0_25 = arith.constant 0 : index
      %c0_26 = arith.constant 0 : index
      %42 = vector.load %arg8[%c0_25, %c0_26] : memref<16x32xf32, #tpu.memory_space<vmem>>, vector<16x32xf32>
      tpu.vector_store %arg8[%c0_25, %c0_26], %41 {strides = array<i32>} : memref<16x32xf32, #tpu.memory_space<vmem>>, vector<16x32xf32>,
      %43 = arith.truncf %41 : vector<16x32xf32> to vector<16x32xbf16>
      %c0_27 = arith.constant 0 : index
      %c0_28 = arith.constant 0 : index
      %44 = vector.load %arg9[%c0_27, %c0_28] : memref<16x32xbf16, #tpu.memory_space<vmem>>, vector<16x32xbf16>
      tpu.vector_store %arg9[%c0_27, %c0_28], %43 {strides = array<i32>} : memref<16x32xbf16, #tpu.memory_space<vmem>>, vector<16x32xbf16>,
    } else {
    }
    return
  }
  func.func @transform_0(%arg0: i32, %arg1: i32) -> (i32, i32) {
    %c0_i32 = arith.constant 0 : i32
    return %arg0, %arg1 : i32, i32
  }
  func.func @transform_1(%arg0: i32, %arg1: i32) -> (i32, i32) {
    %c0_i32 = arith.constant 0 : i32
    %c0_i32_0 = arith.constant 0 : i32
    return %arg1, %c0_i32 : i32, i32
  }
  func.func @transform_2(%arg0: i32, %arg1: i32) -> (i32, i32) {
    %c0_i32 = arith.constant 0 : i32
    %c0_i32_0 = arith.constant 0 : i32
    %c0_i32_1 = arith.constant 0 : i32
    return %c0_i32, %c0_i32_0 : i32, i32
  }
  func.func @transform_3(%arg0: i32, %arg1: i32) -> (i32, i32) {
    %c0_i32 = arith.constant 0 : i32
    %c0_i32_0 = arith.constant 0 : i32
    return %arg0, %c0_i32 : i32, i32
  }
  func.func @transform_4(%arg0: i32, %arg1: i32) -> (i32, i32) {
    %c0_i32 = arith.constant 0 : i32
    %c0_i32_0 = arith.constant 0 : i32
    %c0_i32_1 = arith.constant 0 : i32
    return %c0_i32, %c0_i32_0 : i32, i32
  }
  func.func @transform_5(%arg0: i32, %arg1: i32) -> (i32, i32) {
    %c0_i32 = arith.constant 0 : i32
    %c0_i32_0 = arith.constant 0 : i32
    %c0_i32_1 = arith.constant 0 : i32
    return %c0_i32, %c0_i32_0 : i32, i32
  }
  func.func @transform_6(%arg0: i32, %arg1: i32) -> (i32, i32) {
    %c0_i32 = arith.constant 0 : i32
    %c0_i32_0 = arith.constant 0 : i32
    return %arg0, %c0_i32 : i32, i32
  }
  func.func @transform_7(%arg0: i32, %arg1: i32) -> (i32, i32) {
    %c0_i32 = arith.constant 0 : i32
    %c0_i32_0 = arith.constant 0 : i32
    return %arg0, %c0_i32 : i32, i32
  }
}

module attributes {stable_mosaic.version = 11 : i64} {
  func.func @_linear_add_ln_kernel(%arg0: i32, %arg1: i32, %arg2: memref<16x64xbf16, #tpu.memory_space<vmem>>, %arg3: memref<64x32xbf16, #tpu.memory_space<vmem>>, %arg4: memref<1x32xf32, #tpu.memory_space<vmem>>, %arg5: memref<16x32xf32, #tpu.memory_space<vmem>>, %arg6: memref<1x32xf32, #tpu.memory_space<vmem>>, %arg7: memref<1x32xf32, #tpu.memory_space<vmem>>, %arg8: memref<16x32xf32, #tpu.memory_space<vmem>>, %arg9: memref<16x32xbf16, #tpu.memory_space<vmem>>, %arg10: memref<16x32xf32, #tpu.memory_space<vmem>>) attributes {dimension_semantics = [#tpu.dimension_semantics<parallel>, #tpu.dimension_semantics<arbitrary>], iteration_bounds = array<i64: 1, 1>, scalar_prefetch = 0 : i64, scratch_operands = 1 : i64, tpu.core_type = #tpu.core_type<tc>, window_params = [{transform_indices = @transform_0, window_bounds = array<i64: 16, 64>}, {transform_indices = @transform_1, window_bounds = array<i64: 64, 32>}, {pipeline_mode = #tpu.pipeline_mode<synchronous>, transform_indices = @transform_2, window_bounds = array<i64: 1, 32>}, {transform_indices = @transform_3, window_bounds = array<i64: 16, 32>}, {pipeline_mode = #tpu.pipeline_mode<synchronous>, transform_indices = @transform_4, window_bounds = array<i64: 1, 32>}, {pipeline_mode = #tpu.pipeline_mode<synchronous>, transform_indices = @transform_5, window_bounds = array<i64: 1, 32>}, {transform_indices = @transform_6, window_bounds = array<i64: 16, 32>}, {transform_indices = @transform_7, window_bounds = array<i64: 16, 32>}]} {
    %c0_i32 = arith.constant 0 : i32
    %0 = arith.cmpi eq, %arg1, %c0_i32 : i32
    %1 = arith.extui %0 : i1 to i32
    %c0_i32_0 = arith.constant 0 : i32
    %2 = arith.cmpi ne, %1, %c0_i32_0 : i32
    scf.if %2 {
      %cst_10 = arith.constant 0.000000e+00 : f32
      %12 = vector.broadcast %cst_10 : f32 to vector<16x32xf32>
      %c0_11 = arith.constant 0 : index
      %c0_12 = arith.constant 0 : index
      %13 = vector.load %arg10[%c0_11, %c0_12] : memref<16x32xf32, #tpu.memory_space<vmem>>, vector<16x32xf32>
      tpu.vector_store %arg10[%c0_11, %c0_12], %12 {strides = array<i32>} : memref<16x32xf32, #tpu.memory_space<vmem>>, vector<16x32xf32>,
    } else {
    }
    %c0 = arith.constant 0 : index
    %c0_1 = arith.constant 0 : index
    %3 = vector.load %arg10[%c0, %c0_1] : memref<16x32xf32, #tpu.memory_space<vmem>>, vector<16x32xf32>
    %c0_2 = arith.constant 0 : index
    %c0_3 = arith.constant 0 : index
    %4 = vector.load %arg2[%c0_2, %c0_3] : memref<16x64xbf16, #tpu.memory_space<vmem>>, vector<16x64xbf16>
    %c0_4 = arith.constant 0 : index
    %c0_5 = arith.constant 0 : index
    %5 = vector.load %arg3[%c0_4, %c0_5] : memref<64x32xbf16, #tpu.memory_space<vmem>>, vector<64x32xbf16>
    %cst = arith.constant dense<0.000000e+00> : vector<16x32xf32>
    %6 = tpu.matmul %4, %5, %cst {dimension_numbers = #tpu.dot_dimension_numbers<[1], [0], [0], [1], [0, 0, 1, 1], [], []>} : vector<16x64xbf16>, vector<64x32xbf16>, vector<16x32xf32> -> vector<16x32xf32>
    %7 = arith.addf %3, %6 : vector<16x32xf32>
    %c0_6 = arith.constant 0 : index
    %c0_7 = arith.constant 0 : index
    %8 = vector.load %arg10[%c0_6, %c0_7] : memref<16x32xf32, #tpu.memory_space<vmem>>, vector<16x32xf32>
    tpu.vector_store %arg10[%c0_6, %c0_7], %7 {strides = array<i32>} : memref<16x32xf32, #tpu.memory_space<vmem>>, vector<16x32xf32>,
    %c0_i32_8 = arith.constant 0 : i32
    %9 = arith.cmpi eq, %arg1, %c0_i32_8 : i32
    %10 = arith.extui %9 : i1 to i32
    %c0_i32_9 = arith.constant 0 : i32
    %11 = arith.cmpi ne, %10, %c0_i32_9 : i32
    scf.if %11 {
      %c0_10 = arith.constant 0 : index
      %c0_11 = arith.constant 0 : index
      %12 = vector.load %arg10[%c0_10, %c0_11] : memref<16x32xf32, #tpu.memory_space<vmem>>, vector<16x32xf32>
      %c0_12 = arith.constant 0 : index
      %c0_13 = arith.constant 0 : index
      %13 = vector.load %arg4[%c0_12, %c0_13] : memref<1x32xf32, #tpu.memory_space<vmem>>, vector<1x32xf32>
      %14 = vector.broadcast %13 : vector<1x32xf32> to vector<16x32xf32>
      %15 = arith.addf %12, %14 : vector<16x32xf32>
      %c0_14 = arith.constant 0 : index
      %c0_15 = arith.constant 0 : index
      %16 = vector.load %arg5[%c0_14, %c0_15] : memref<16x32xf32, #tpu.memory_space<vmem>>, vector<16x32xf32>
      %17 = arith.addf %15, %16 : vector<16x32xf32>
      %cst_16 = arith.constant dense<0.000000e+00> : vector<16xf32>
      %18 = vector.multi_reduction <add>, %17, %cst_16 [1] : vector<16x32xf32> to vector<16xf32>
      %19 = vector.shape_cast %18 : vector<16xf32> to vector<16x1xf32>
      %cst_17 = arith.constant 3.200000e+01 : f32
      %20 = vector.broadcast %cst_17 : f32 to vector<16x1xf32>
      %21 = arith.divf %19, %20 : vector<16x1xf32>
      %22 = vector.broadcast %21 : vector<16x1xf32> to vector<16x32xf32>
      %23 = arith.subf %17, %22 : vector<16x32xf32>
      %24 = arith.mulf %23, %23 : vector<16x32xf32>
      %cst_18 = arith.constant dense<0.000000e+00> : vector<16xf32>
      %25 = vector.multi_reduction <add>, %24, %cst_18 [1] : vector<16x32xf32> to vector<16xf32>
      %26 = vector.shape_cast %25 : vector<16xf32> to vector<16x1xf32>
      %cst_19 = arith.constant 3.200000e+01 : f32
      %27 = vector.broadcast %cst_19 : f32 to vector<16x1xf32>
      %28 = arith.divf %26, %27 : vector<16x1xf32>
      %29 = vector.broadcast %21 : vector<16x1xf32> to vector<16x32xf32>
      %30 = arith.subf %17, %29 : vector<16x32xf32>
      %cst_20 = arith.constant 9.99999974E-6 : f32
      %31 = vector.broadcast %cst_20 : f32 to vector<16x1xf32>
      %32 = arith.addf %28, %31 : vector<16x1xf32>
      %33 = math.rsqrt %32 : vector<16x1xf32>
      %34 = vector.broadcast %33 : vector<16x1xf32> to vector<16x32xf32>
      %35 = arith.mulf %30, %34 : vector<16x32xf32>
      %c0_21 = arith.constant 0 : index
      %c0_22 = arith.constant 0 : index
      %36 = vector.load %arg6[%c0_21, %c0_22] : memref<1x32xf32, #tpu.memory_space<vmem>>, vector<1x32xf32>
      %37 = vector.broadcast %36 : vector<1x32xf32> to vector<16x32xf32>
      %38 = arith.mulf %35, %37 : vector<16x32xf32>
      %c0_23 = arith.constant 0 : index
      %c0_24 = arith.constant 0 : index
      %39 = vector.load %arg7[%c0_23, %c0_24] : memref<1x32xf32, #tpu.memory_space<vmem>>, vector<1x32xf32>
      %40 = vector.broadcast %39 : vector<1x32xf32> to vector<16x32xf32>
      %41 = arith.addf %38, %40 : vector<16x32xf32>
      %c0_25 = arith.constant 0 : index
      %c0_26 = arith.constant 0 : index
      %42 = vector.load %arg8[%c0_25, %c0_26] : memref<16x32xf32, #tpu.memory_space<vmem>>, vector<16x32xf32>
      tpu.vector_store %arg8[%c0_25, %c0_26], %41 {strides = array<i32>} : memref<16x32xf32, #tpu.memory_space<vmem>>, vector<16x32xf32>,
      %43 = arith.truncf %41 : vector<16x32xf32> to vector<16x32xbf16>
      %c0_27 = arith.constant 0 : index
      %c0_28 = arith.constant 0 : index
      %44 = vector.load %arg9[%c0_27, %c0_28] : memref<16x32xbf16, #tpu.memory_space<vmem>>, vector<16x32xbf16>
      tpu.vector_store %arg9[%c0_27, %c0_28], %43 {strides = array<i32>} : memref<16x32xbf16, #tpu.memory_space<vmem>>, vector<16x32xbf16>,
    } else {
    }
    return
  }
  func.func @transform_0(%arg0: i32, %arg1: i32) -> (i32, i32) {
    %c0_i32 = arith.constant 0 : i32
    return %arg0, %arg1 : i32, i32
  }
  func.func @transform_1(%arg0: i32, %arg1: i32) -> (i32, i32) {
    %c0_i32 = arith.constant 0 : i32
    %c0_i32_0 = arith.constant 0 : i32
    return %arg1, %c0_i32 : i32, i32
  }
  func.func @transform_2(%arg0: i32, %arg1: i32) -> (i32, i32) {
    %c0_i32 = arith.constant 0 : i32
    %c0_i32_0 = arith.constant 0 : i32
    %c0_i32_1 = arith.constant 0 : i32
    return %c0_i32, %c0_i32_0 : i32, i32
  }
  func.func @transform_3(%arg0: i32, %arg1: i32) -> (i32, i32) {
    %c0_i32 = arith.constant 0 : i32
    %c0_i32_0 = arith.constant 0 : i32
    return %arg0, %c0_i32 : i32, i32
  }
  func.func @transform_4(%arg0: i32, %arg1: i32) -> (i32, i32) {
    %c0_i32 = arith.constant 0 : i32
    %c0_i32_0 = arith.constant 0 : i32
    %c0_i32_1 = arith.constant 0 : i32
    return %c0_i32, %c0_i32_0 : i32, i32
  }
  func.func @transform_5(%arg0: i32, %arg1: i32) -> (i32, i32) {
    %c0_i32 = arith.constant 0 : i32
    %c0_i32_0 = arith.constant 0 : i32
    %c0_i32_1 = arith.constant 0 : i32
    return %c0_i32, %c0_i32_0 : i32, i32
  }
  func.func @transform_6(%arg0: i32, %arg1: i32) -> (i32, i32) {
    %c0_i32 = arith.constant 0 : i32
    %c0_i32_0 = arith.constant 0 : i32
    return %arg0, %c0_i32 : i32, i32
  }
  func.func @transform_7(%arg0: i32, %arg1: i32) -> (i32, i32) {
    %c0_i32 = arith.constant 0 : i32
    %c0_i32_0 = arith.constant 0 : i32
    return %arg0, %c0_i32 : i32, i32
  }
}

module attributes {stable_mosaic.version = 11 : i64} {
  func.func @_ln_kernel(%arg0: i32, %arg1: memref<16x32xf32, #tpu.memory_space<vmem>>, %arg2: memref<1x32xf32, #tpu.memory_space<vmem>>, %arg3: memref<1x32xf32, #tpu.memory_space<vmem>>, %arg4: memref<16x32xf32, #tpu.memory_space<vmem>>) attributes {dimension_semantics = [#tpu.dimension_semantics<parallel>], iteration_bounds = array<i64: 1>, scalar_prefetch = 0 : i64, scratch_operands = 0 : i64, tpu.core_type = #tpu.core_type<tc>, window_params = [{transform_indices = @transform_0, window_bounds = array<i64: 16, 32>}, {pipeline_mode = #tpu.pipeline_mode<synchronous>, transform_indices = @transform_1, window_bounds = array<i64: 1, 32>}, {pipeline_mode = #tpu.pipeline_mode<synchronous>, transform_indices = @transform_2, window_bounds = array<i64: 1, 32>}, {transform_indices = @transform_3, window_bounds = array<i64: 16, 32>}]} {
    %c0 = arith.constant 0 : index
    %c0_0 = arith.constant 0 : index
    %0 = vector.load %arg1[%c0, %c0_0] : memref<16x32xf32, #tpu.memory_space<vmem>>, vector<16x32xf32>
    %cst = arith.constant dense<0.000000e+00> : vector<16xf32>
    %1 = vector.multi_reduction <add>, %0, %cst [1] : vector<16x32xf32> to vector<16xf32>
    %2 = vector.shape_cast %1 : vector<16xf32> to vector<16x1xf32>
    %cst_1 = arith.constant 3.200000e+01 : f32
    %3 = vector.broadcast %cst_1 : f32 to vector<16x1xf32>
    %4 = arith.divf %2, %3 : vector<16x1xf32>
    %5 = vector.broadcast %4 : vector<16x1xf32> to vector<16x32xf32>
    %6 = arith.subf %0, %5 : vector<16x32xf32>
    %7 = arith.mulf %6, %6 : vector<16x32xf32>
    %cst_2 = arith.constant dense<0.000000e+00> : vector<16xf32>
    %8 = vector.multi_reduction <add>, %7, %cst_2 [1] : vector<16x32xf32> to vector<16xf32>
    %9 = vector.shape_cast %8 : vector<16xf32> to vector<16x1xf32>
    %cst_3 = arith.constant 3.200000e+01 : f32
    %10 = vector.broadcast %cst_3 : f32 to vector<16x1xf32>
    %11 = arith.divf %9, %10 : vector<16x1xf32>
    %12 = vector.broadcast %4 : vector<16x1xf32> to vector<16x32xf32>
    %13 = arith.subf %0, %12 : vector<16x32xf32>
    %cst_4 = arith.constant 9.99999974E-6 : f32
    %14 = vector.broadcast %cst_4 : f32 to vector<16x1xf32>
    %15 = arith.addf %11, %14 : vector<16x1xf32>
    %16 = math.rsqrt %15 : vector<16x1xf32>
    %17 = vector.broadcast %16 : vector<16x1xf32> to vector<16x32xf32>
    %18 = arith.mulf %13, %17 : vector<16x32xf32>
    %c0_5 = arith.constant 0 : index
    %c0_6 = arith.constant 0 : index
    %19 = vector.load %arg2[%c0_5, %c0_6] : memref<1x32xf32, #tpu.memory_space<vmem>>, vector<1x32xf32>
    %20 = vector.broadcast %19 : vector<1x32xf32> to vector<16x32xf32>
    %21 = arith.mulf %18, %20 : vector<16x32xf32>
    %c0_7 = arith.constant 0 : index
    %c0_8 = arith.constant 0 : index
    %22 = vector.load %arg3[%c0_7, %c0_8] : memref<1x32xf32, #tpu.memory_space<vmem>>, vector<1x32xf32>
    %23 = vector.broadcast %22 : vector<1x32xf32> to vector<16x32xf32>
    %24 = arith.addf %21, %23 : vector<16x32xf32>
    %c0_9 = arith.constant 0 : index
    %c0_10 = arith.constant 0 : index
    %25 = vector.load %arg4[%c0_9, %c0_10] : memref<16x32xf32, #tpu.memory_space<vmem>>, vector<16x32xf32>
    tpu.vector_store %arg4[%c0_9, %c0_10], %24 {strides = array<i32>} : memref<16x32xf32, #tpu.memory_space<vmem>>, vector<16x32xf32>,
    return
  }
  func.func @transform_0(%arg0: i32) -> (i32, i32) {
    %c0_i32 = arith.constant 0 : i32
    %c0_i32_0 = arith.constant 0 : i32
    return %arg0, %c0_i32 : i32, i32
  }
  func.func @transform_1(%arg0: i32) -> (i32, i32) {
    %c0_i32 = arith.constant 0 : i32
    %c0_i32_0 = arith.constant 0 : i32
    %c0_i32_1 = arith.constant 0 : i32
    return %c0_i32, %c0_i32_0 : i32, i32
  }
  func.func @transform_2(%arg0: i32) -> (i32, i32) {
    %c0_i32 = arith.constant 0 : i32
    %c0_i32_0 = arith.constant 0 : i32
    %c0_i32_1 = arith.constant 0 : i32
    return %c0_i32, %c0_i32_0 : i32, i32
  }
  func.func @transform_3(%arg0: i32) -> (i32, i32) {
    %c0_i32 = arith.constant 0 : i32
    %c0_i32_0 = arith.constant 0 : i32
    return %arg0, %c0_i32 : i32, i32
  }
}

</mosaic_0001>

<llo_original>
// kernel: decoder_forward.19
$region0: #{decoder_forward.19}
  #allocation0 [shape = 'u32[]', space=smem, size = 0x4, offset = 0x4, fixed_abs, tag = 'smem constant byte address 0x4 - core index']
  #allocation1 [shape = 'u32[144,128]{1,0:T(1,128)}', space=vmem, size = 0x12000, scoped, tag = 'internal scratch']
  #allocation2 [shape = 'f32[16,96]{1,0:T(8,128)}', space=vmem, size = 0x2000, scoped, tag = 'scratch operand']
  %s0 = inlined_call_operand.vmem [shape: bf16[16,32], index: 0, kind: input, shape index: {}]
  %s1 = inlined_call_operand.vmem [shape: bf16[32,96], index: 1, kind: input, shape index: {}]
  %s2 = inlined_call_operand.vmem [shape: f32[1,96], index: 2, kind: input, shape index: {}]
  %s3 = inlined_call_operand.vmem [shape: bf16[16,96], index: 3, kind: output, shape index: {}]
  %s4 = sld [smem:[#allocation0]]
  $region30: #{decoder_forward.19} parent=0
    _
  %s6 = ssub.s32 1, %s4
  %s7 = scalar_select 0, %s6, %s4
  // Predicated region
  $region2: #{decoder_forward.19} parent=0 // pred_check
    _
  $region3: #{decoder_forward.19} parent=0 // pred_check_branch
    %9 = sbr.rel (0) target = $region5
  $region4: #{decoder_forward.19} parent=0 // pred_region
    _
  $region5: #{decoder_forward.19} parent=0 // pred_fallthru
    _
  // Predicated region
  $region6: #{decoder_forward.19} parent=0 // pred_check
    _
  $region7: #{decoder_forward.19} parent=0 // pred_check_branch
    %11 = sbr.rel (0) target = $region9
  $region8: #{decoder_forward.19} parent=0 // pred_region
    _
  $region9: #{decoder_forward.19} parent=0 // pred_fallthru
    _
  // Predicated region
  $region10: #{decoder_forward.19} parent=0 // pred_check
    _
  $region11: #{decoder_forward.19} parent=0 // pred_check_branch
    %13 = sbr.rel (0) target = $region13
  $region12: #{decoder_forward.19} parent=0 // pred_region
    _
  $region13: #{decoder_forward.19} parent=0 // pred_fallthru
    _
  %p15 = scmp.eq.s32.totalorder 0, 0
  // Predicated region
  $region14: #{decoder_forward.19} parent=0 // pred_check
    %p16 = pneg %p15
  $region15: #{decoder_forward.19} parent=0 // pred_check_branch
    %18 = sbr.rel (%p16) target = $region17
  $region16: #{decoder_forward.19} parent=0 // pred_region
    %vm19 = vcmask 785408
    %20 = vst.msk [vmem:[#allocation2] sm:$0xff] %vm19, 0.0
    %21 = vst.msk [vmem:[#allocation2 + $0x8] sm:$0xff] %vm19, 0.0
  $region17: #{decoder_forward.19} parent=0 // pred_fallthru
    _
  %v22 = vld [vmem:[#allocation2] sm:$0xff]
  %v23 = vld [vmem:[#allocation2 + $0x8] sm:$0xff]
  %v24 = vld [vmem:[%s0] sm:$0xf]
  %v25 = vld [vmem:[%s0 + $0x4] sm:$0xf]
  %v26 = vld [vmem:[%s1] sm:$0xf]
  %v27 = vld [vmem:[%s1 + $0x4] sm:$0xf]
  %v28 = vld [vmem:[%s1 + $0x8] sm:$0xf]
  %v29 = vld [vmem:[%s1 + $0xc] sm:$0xf]
  %v32 = vunpack.c.l.b16 %v24
  %v33 = vunpack.c.l.b16 %v25
  %v34 = vpack.c.b16 %v33, %v32
  %v39 = vunpack.c.l.b16 %v26
  %v40 = vunpack.c.l.b16 %v27
  %v41 = vunpack.c.l.b16 %v28
  %v42 = vunpack.c.l.b16 %v29
  %v43 = vpack.c.b16 %v40, %v39
  %v44 = vpack.c.b16 %v42, %v41
  %vm47 = vcmask 261120
  %v49 = vsel %vm47, %v34, 0
  %51 = vmatprep.subr.bf16.mxu0 0
  %52 = vmatpush1.bf16.msra.mxu0 %v43
  %53 = vmatprep.subr.bf16.mxu0 0
  %54 = vmatpush1.bf16.msra.mxu0 %v44
  %55 = vmatprep.subr.bf16.mxu0 0
  %56 = vmatpush1.bf16.msra.mxu0 0
  %57 = vmatprep.subr.bf16.mxu0 0
  %58 = vmatpush1.bf16.msra.mxu0 0
  %59 = vmatprep.subr.bf16.mxu0 0
  %60 = vmatpush1.bf16.msra.mxu0 0
  %61 = vmatprep.subr.bf16.mxu0 0
  %62 = vmatpush1.bf16.msra.mxu0 0
  %63 = vmatprep.subr.bf16.mxu0 0
  %64 = vmatpush1.bf16.msra.mxu0 0
  %65 = vmatprep.subr.bf16.mxu0 0
  %66 = vmatpush1.bf16.msra.mxu0 0
  %67 = vmatprep.subr.bf16.mxu0 0
  %68 = vmatpush1.bf16.msra.mxu0 0
  %69 = vmatprep.subr.bf16.mxu0 0
  %70 = vmatpush1.bf16.msra.mxu0 0
  %71 = vmatprep.subr.bf16.mxu0 0
  %72 = vmatpush1.bf16.msra.mxu0 0
  %73 = vmatprep.subr.bf16.mxu0 0
  %74 = vmatpush1.bf16.msra.mxu0 0
  %75 = vmatprep.subr.bf16.mxu0 0
  %76 = vmatpush1.bf16.msra.mxu0 0
  %77 = vmatprep.subr.bf16.mxu0 0
  %78 = vmatpush1.bf16.msra.mxu0 0
  %79 = vmatprep.subr.bf16.mxu0 0
  %80 = vmatpush1.bf16.msra.mxu0 0
  %81 = vmatprep.subr.bf16.mxu0 0
  %82 = vmatpush1.bf16.msra.mxu0 0
  %83 = vmatprep.mubr.bf16.mxu0 0
  %84 = vmatmul.mubr.bf16.gmra.mrb[0].mxu0 %v49
  %v85 = vpop.f32.mrb[0].mxu0
  %v86 = vadd.f32 0.0, %v85
  %v87 = vpop.f32.mrb[0].mxu0
  %v88 = vpop.f32.mrb[0].mxu0
  %v89 = vadd.f32 0.0, %v88
  %v90 = vpop.f32.mrb[0].mxu0
  %91 = vdwg.mxu0
  %v92 = vadd.f32 %v22, %v86
  %v93 = vadd.f32 %v23, %v89
  %vm94 = vcmask 785408
  %95 = vst.msk [vmem:[#allocation2] sm:$0xff] %vm94, %v92
  %96 = vst.msk [vmem:[#allocation2 + $0x8] sm:$0xff] %vm94, %v93
  // Predicated region
  $region18: #{decoder_forward.19} parent=0 // pred_check
    %p97 = pneg %p15
  $region19: #{decoder_forward.19} parent=0 // pred_check_branch
    %99 = sbr.rel (%p97) target = $region21
  $region20: #{decoder_forward.19} parent=0 // pred_region
    %v100 = vld [vmem:[#allocation2] sm:$0xff]
    %v101 = vld [vmem:[#allocation2 + $0x8] sm:$0xff]
    %v102 = vld [vmem:[%s2] sm:$0x1]
    %v104 = vlaneseq
    %v105 = vshrl.u32 %v104, 7
    %v106 = vsub.s32 0, %v105
    %v107 = vrot.slane %v102, %v106
    %v109 = vadd.f32 %v100, %v107
    %v110 = vadd.f32 %v101, %v107
    %v111 = vpack.c.bf16 %v110, %v109
    %v113 = vunpack.c.l.b16 %v111
    %v114 = vunpack.c.h.b16 %v111
    %v115 = vpack.c.b16 %v113, %v113
    %v116 = vpack.c.b16 %v114, %v114
    %vm119 = vcmask 781312
    %120 = vst.msk [vmem:[%s3] sm:$0xf] %vm119, %v115
    %121 = vst.msk [vmem:[%s3 + $0x4] sm:$0xf] %vm119, %v116
  $region21: #{decoder_forward.19} parent=0 // pred_fallthru
    _
  // Predicated region
  $region22: #{decoder_forward.19} parent=0 // pred_check
    _
  $region23: #{decoder_forward.19} parent=0 // pred_check_branch
    %123 = sbr.rel (0) target = $region25
  $region24: #{decoder_forward.19} parent=0 // pred_region
    _
  $region25: #{decoder_forward.19} parent=0 // pred_fallthru
    _
  // Predicated region
  $region26: #{decoder_forward.19} parent=0 // pred_check
    _
  $region27: #{decoder_forward.19} parent=0 // pred_check_branch
    %125 = sbr.rel (0) target = $region29
  $region28: #{decoder_forward.19} parent=0 // pred_region
    _
  $region29: #{decoder_forward.19} parent=0 // pred_fallthru
    _

// kernel: decoder_forward.22
$region0: #{decoder_forward.22}
  #allocation0 [shape = 'u32[]', space=smem, size = 0x4, offset = 0x4, fixed_abs, tag = 'smem constant byte address 0x4 - core index']
  #allocation1 [shape = 'u32[144,128]{1,0:T(1,128)}', space=vmem, size = 0x12000, scoped, tag = 'internal scratch']
  #allocation2 [shape = 'f32[16,32]{1,0:T(8,128)}', space=vmem, size = 0x2000, scoped, tag = 'scratch operand']
  %s0 = inlined_call_operand.vmem [shape: bf16[16,32], index: 0, kind: input, shape index: {}]
  %s1 = inlined_call_operand.vmem [shape: bf16[32,32], index: 1, kind: input, shape index: {}]
  %s2 = inlined_call_operand.vmem [shape: f32[1,32], index: 2, kind: input, shape index: {}]
  %s3 = inlined_call_operand.vmem [shape: bf16[16,32], index: 3, kind: output, shape index: {}]
  %s4 = sld [smem:[#allocation0]]
  $region30: #{decoder_forward.22} parent=0
    _
  %s6 = ssub.s32 1, %s4
  %s7 = scalar_select 0, %s6, %s4
  // Predicated region
  $region2: #{decoder_forward.22} parent=0 // pred_check
    _
  $region3: #{decoder_forward.22} parent=0 // pred_check_branch
    %9 = sbr.rel (0) target = $region5
  $region4: #{decoder_forward.22} parent=0 // pred_region
    _
  $region5: #{decoder_forward.22} parent=0 // pred_fallthru
    _
  // Predicated region
  $region6: #{decoder_forward.22} parent=0 // pred_check
    _
  $region7: #{decoder_forward.22} parent=0 // pred_check_branch
    %11 = sbr.rel (0) target = $region9
  $region8: #{decoder_forward.22} parent=0 // pred_region
    _
  $region9: #{decoder_forward.22} parent=0 // pred_fallthru
    _
  // Predicated region
  $region10: #{decoder_forward.22} parent=0 // pred_check
    _
  $region11: #{decoder_forward.22} parent=0 // pred_check_branch
    %13 = sbr.rel (0) target = $region13
  $region12: #{decoder_forward.22} parent=0 // pred_region
    _
  $region13: #{decoder_forward.22} parent=0 // pred_fallthru
    _
  %p15 = scmp.eq.s32.totalorder 0, 0
  // Predicated region
  $region14: #{decoder_forward.22} parent=0 // pred_check
    %p16 = pneg %p15
  $region15: #{decoder_forward.22} parent=0 // pred_check_branch
    %18 = sbr.rel (%p16) target = $region17
  $region16: #{decoder_forward.22} parent=0 // pred_region
    %vm19 = vcmask 261120
    %20 = vst.msk [vmem:[#allocation2] sm:$0xff] %vm19, 0.0
    %21 = vst.msk [vmem:[#allocation2 + $0x8] sm:$0xff] %vm19, 0.0
  $region17: #{decoder_forward.22} parent=0 // pred_fallthru
    _
  %v22 = vld [vmem:[#allocation2] sm:$0xff]
  %v23 = vld [vmem:[#allocation2 + $0x8] sm:$0xff]
  %v24 = vld [vmem:[%s0] sm:$0xf]
  %v25 = vld [vmem:[%s0 + $0x4] sm:$0xf]
  %v26 = vld [vmem:[%s1] sm:$0xf]
  %v27 = vld [vmem:[%s1 + $0x4] sm:$0xf]
  %v28 = vld [vmem:[%s1 + $0x8] sm:$0xf]
  %v29 = vld [vmem:[%s1 + $0xc] sm:$0xf]
  %v32 = vunpack.c.l.b16 %v24
  %v33 = vunpack.c.l.b16 %v25
  %v34 = vpack.c.b16 %v33, %v32
  %v39 = vunpack.c.l.b16 %v26
  %v40 = vunpack.c.l.b16 %v27
  %v41 = vunpack.c.l.b16 %v28
  %v42 = vunpack.c.l.b16 %v29
  %v43 = vpack.c.b16 %v40, %v39
  %v44 = vpack.c.b16 %v42, %v41
  %vm47 = vcmask 261120
  %v49 = vsel %vm47, %v34, 0
  %51 = vmatprep.subr.bf16.mxu0 0
  %52 = vmatpush1.bf16.msra.mxu0 %v43
  %53 = vmatprep.subr.bf16.mxu0 0
  %54 = vmatpush1.bf16.msra.mxu0 %v44
  %55 = vmatprep.subr.bf16.mxu0 0
  %56 = vmatpush1.bf16.msra.mxu0 0
  %57 = vmatprep.subr.bf16.mxu0 0
  %58 = vmatpush1.bf16.msra.mxu0 0
  %59 = vmatprep.subr.bf16.mxu0 0
  %60 = vmatpush1.bf16.msra.mxu0 0
  %61 = vmatprep.subr.bf16.mxu0 0
  %62 = vmatpush1.bf16.msra.mxu0 0
  %63 = vmatprep.subr.bf16.mxu0 0
  %64 = vmatpush1.bf16.msra.mxu0 0
  %65 = vmatprep.subr.bf16.mxu0 0
  %66 = vmatpush1.bf16.msra.mxu0 0
  %67 = vmatprep.subr.bf16.mxu0 0
  %68 = vmatpush1.bf16.msra.mxu0 0
  %69 = vmatprep.subr.bf16.mxu0 0
  %70 = vmatpush1.bf16.msra.mxu0 0
  %71 = vmatprep.subr.bf16.mxu0 0
  %72 = vmatpush1.bf16.msra.mxu0 0
  %73 = vmatprep.subr.bf16.mxu0 0
  %74 = vmatpush1.bf16.msra.mxu0 0
  %75 = vmatprep.subr.bf16.mxu0 0
  %76 = vmatpush1.bf16.msra.mxu0 0
  %77 = vmatprep.subr.bf16.mxu0 0
  %78 = vmatpush1.bf16.msra.mxu0 0
  %79 = vmatprep.subr.bf16.mxu0 0
  %80 = vmatpush1.bf16.msra.mxu0 0
  %81 = vmatprep.subr.bf16.mxu0 0
  %82 = vmatpush1.bf16.msra.mxu0 0
  %83 = vmatprep.mubr.bf16.mxu0 0
  %84 = vmatmul.mubr.bf16.gmra.mrb[0].mxu0 %v49
  %v85 = vpop.f32.mrb[0].mxu0
  %v86 = vadd.f32 0.0, %v85
  %v87 = vpop.f32.mrb[0].mxu0
  %v88 = vpop.f32.mrb[0].mxu0
  %v89 = vadd.f32 0.0, %v88
  %v90 = vpop.f32.mrb[0].mxu0
  %91 = vdwg.mxu0
  %v92 = vadd.f32 %v22, %v86
  %v93 = vadd.f32 %v23, %v89
  %94 = vst.msk [vmem:[#allocation2] sm:$0xff] %vm47, %v92
  %95 = vst.msk [vmem:[#allocation2 + $0x8] sm:$0xff] %vm47, %v93
  // Predicated region
  $region18: #{decoder_forward.22} parent=0 // pred_check
    %p96 = pneg %p15
  $region19: #{decoder_forward.22} parent=0 // pred_check_branch
    %98 = sbr.rel (%p96) target = $region21
  $region20: #{decoder_forward.22} parent=0 // pred_region
    %v99 = vld [vmem:[#allocation2] sm:$0xff]
    %v100 = vld [vmem:[#allocation2 + $0x8] sm:$0xff]
    %v101 = vld [vmem:[%s2] sm:$0x1]
    %v103 = vlaneseq
    %v104 = vshrl.u32 %v103, 7
    %v105 = vsub.s32 0, %v104
    %v106 = vrot.slane %v101, %v105
    %v108 = vadd.f32 %v99, %v106
    %v109 = vadd.f32 %v100, %v106
    %v110 = vpack.c.bf16 %v109, %v108
    %v112 = vunpack.c.l.b16 %v110
    %v113 = vunpack.c.h.b16 %v110
    %v114 = vpack.c.b16 %v112, %v112
    %v115 = vpack.c.b16 %v113, %v113
    %vm118 = vcmask 257024
    %119 = vst.msk [vmem:[%s3] sm:$0xf] %vm118, %v114
    %120 = vst.msk [vmem:[%s3 + $0x4] sm:$0xf] %vm118, %v115
  $region21: #{decoder_forward.22} parent=0 // pred_fallthru
    _
  // Predicated region
  $region22: #{decoder_forward.22} parent=0 // pred_check
    _
  $region23: #{decoder_forward.22} parent=0 // pred_check_branch
    %122 = sbr.rel (0) target = $region25
  $region24: #{decoder_forward.22} parent=0 // pred_region
    _
  $region25: #{decoder_forward.22} parent=0 // pred_fallthru
    _
  // Predicated region
  $region26: #{decoder_forward.22} parent=0 // pred_check
    _
  $region27: #{decoder_forward.22} parent=0 // pred_check_branch
    %124 = sbr.rel (0) target = $region29
  $region28: #{decoder_forward.22} parent=0 // pred_region
    _
  $region29: #{decoder_forward.22} parent=0 // pred_fallthru
    _

// kernel: decoder_forward.21
$region0: #{decoder_forward.21}
  #allocation0 [shape = 'u32[]', space=smem, size = 0x4, offset = 0x4, fixed_abs, tag = 'smem constant byte address 0x4 - core index']
  #allocation1 [shape = 'u32[144,128]{1,0:T(1,128)}', space=vmem, size = 0x12000, scoped, tag = 'internal scratch']
  #allocation2 [shape = 'f32[16,32]{1,0:T(8,128)}', space=vmem, size = 0x2000, scoped, tag = 'scratch operand']
  %s0 = inlined_call_operand.vmem [shape: bf16[16,32], index: 0, kind: input, shape index: {}]
  %s1 = inlined_call_operand.vmem [shape: bf16[32,32], index: 1, kind: input, shape index: {}]
  %s2 = inlined_call_operand.vmem [shape: f32[1,32], index: 2, kind: input, shape index: {}]
  %s3 = inlined_call_operand.vmem [shape: f32[16,32], index: 3, kind: input, shape index: {}]
  %s4 = inlined_call_operand.vmem [shape: f32[1,32], index: 4, kind: input, shape index: {}]
  %s5 = inlined_call_operand.vmem [shape: f32[1,32], index: 5, kind: input, shape index: {}]
  %s6 = inlined_call_operand.vmem [shape: f32[16,32], index: 6, kind: output, shape index: {0}]
  %s7 = inlined_call_operand.vmem [shape: bf16[16,32], index: 7, kind: output, shape index: {1}]
  %8 = xla_tuple %s6, %s7
  %s9 = sld [smem:[#allocation0]]
  $region50: #{decoder_forward.21} parent=0
    _
  %s11 = ssub.s32 1, %s9
  %s12 = scalar_select 0, %s11, %s9
  // Predicated region
  $region2: #{decoder_forward.21} parent=0 // pred_check
    _
  $region3: #{decoder_forward.21} parent=0 // pred_check_branch
    %14 = sbr.rel (0) target = $region5
  $region4: #{decoder_forward.21} parent=0 // pred_region
    _
  $region5: #{decoder_forward.21} parent=0 // pred_fallthru
    _
  // Predicated region
  $region6: #{decoder_forward.21} parent=0 // pred_check
    _
  $region7: #{decoder_forward.21} parent=0 // pred_check_branch
    %16 = sbr.rel (0) target = $region9
  $region8: #{decoder_forward.21} parent=0 // pred_region
    _
  $region9: #{decoder_forward.21} parent=0 // pred_fallthru
    _
  // Predicated region
  $region10: #{decoder_forward.21} parent=0 // pred_check
    _
  $region11: #{decoder_forward.21} parent=0 // pred_check_branch
    %18 = sbr.rel (0) target = $region13
  $region12: #{decoder_forward.21} parent=0 // pred_region
    _
  $region13: #{decoder_forward.21} parent=0 // pred_fallthru
    _
  // Predicated region
  $region14: #{decoder_forward.21} parent=0 // pred_check
    _
  $region15: #{decoder_forward.21} parent=0 // pred_check_branch
    %20 = sbr.rel (0) target = $region17
  $region16: #{decoder_forward.21} parent=0 // pred_region
    _
  $region17: #{decoder_forward.21} parent=0 // pred_fallthru
    _
  // Predicated region
  $region18: #{decoder_forward.21} parent=0 // pred_check
    _
  $region19: #{decoder_forward.21} parent=0 // pred_check_branch
    %22 = sbr.rel (0) target = $region21
  $region20: #{decoder_forward.21} parent=0 // pred_region
    _
  $region21: #{decoder_forward.21} parent=0 // pred_fallthru
    _
  // Predicated region
  $region22: #{decoder_forward.21} parent=0 // pred_check
    _
  $region23: #{decoder_forward.21} parent=0 // pred_check_branch
    %24 = sbr.rel (0) target = $region25
  $region24: #{decoder_forward.21} parent=0 // pred_region
    _
  $region25: #{decoder_forward.21} parent=0 // pred_fallthru
    _
  %p26 = scmp.eq.s32.totalorder 0, 0
  // Predicated region
  $region26: #{decoder_forward.21} parent=0 // pred_check
    %p27 = pneg %p26
  $region27: #{decoder_forward.21} parent=0 // pred_check_branch
    %29 = sbr.rel (%p27) target = $region29
  $region28: #{decoder_forward.21} parent=0 // pred_region
    %vm30 = vcmask 261120
    %31 = vst.msk [vmem:[#allocation2] sm:$0xff] %vm30, 0.0
    %32 = vst.msk [vmem:[#allocation2 + $0x8] sm:$0xff] %vm30, 0.0
  $region29: #{decoder_forward.21} parent=0 // pred_fallthru
    _
  %v33 = vld [vmem:[#allocation2] sm:$0xff]
  %v34 = vld [vmem:[#allocation2 + $0x8] sm:$0xff]
  %v35 = vld [vmem:[%s0] sm:$0xf]
  %v36 = vld [vmem:[%s0 + $0x4] sm:$0xf]
  %v37 = vld [vmem:[%s1] sm:$0xf]
  %v38 = vld [vmem:[%s1 + $0x4] sm:$0xf]
  %v39 = vld [vmem:[%s1 + $0x8] sm:$0xf]
  %v40 = vld [vmem:[%s1 + $0xc] sm:$0xf]
  %v43 = vunpack.c.l.b16 %v35
  %v44 = vunpack.c.l.b16 %v36
  %v45 = vpack.c.b16 %v44, %v43
  %v50 = vunpack.c.l.b16 %v37
  %v51 = vunpack.c.l.b16 %v38
  %v52 = vunpack.c.l.b16 %v39
  %v53 = vunpack.c.l.b16 %v40
  %v54 = vpack.c.b16 %v51, %v50
  %v55 = vpack.c.b16 %v53, %v52
  %vm58 = vcmask 261120
  %v60 = vsel %vm58, %v45, 0
  %62 = vmatprep.subr.bf16.mxu0 0
  %63 = vmatpush1.bf16.msra.mxu0 %v54
  %64 = vmatprep.subr.bf16.mxu0 0
  %65 = vmatpush1.bf16.msra.mxu0 %v55
  %66 = vmatprep.subr.bf16.mxu0 0
  %67 = vmatpush1.bf16.msra.mxu0 0
  %68 = vmatprep.subr.bf16.mxu0 0
  %69 = vmatpush1.bf16.msra.mxu0 0
  %70 = vmatprep.subr.bf16.mxu0 0
  %71 = vmatpush1.bf16.msra.mxu0 0
  %72 = vmatprep.subr.bf16.mxu0 0
  %73 = vmatpush1.bf16.msra.mxu0 0
  %74 = vmatprep.subr.bf16.mxu0 0
  %75 = vmatpush1.bf16.msra.mxu0 0
  %76 = vmatprep.subr.bf16.mxu0 0
  %77 = vmatpush1.bf16.msra.mxu0 0
  %78 = vmatprep.subr.bf16.mxu0 0
  %79 = vmatpush1.bf16.msra.mxu0 0
  %80 = vmatprep.subr.bf16.mxu0 0
  %81 = vmatpush1.bf16.msra.mxu0 0
  %82 = vmatprep.subr.bf16.mxu0 0
  %83 = vmatpush1.bf16.msra.mxu0 0
  %84 = vmatprep.subr.bf16.mxu0 0
  %85 = vmatpush1.bf16.msra.mxu0 0
  %86 = vmatprep.subr.bf16.mxu0 0
  %87 = vmatpush1.bf16.msra.mxu0 0
  %88 = vmatprep.subr.bf16.mxu0 0
  %89 = vmatpush1.bf16.msra.mxu0 0
  %90 = vmatprep.subr.bf16.mxu0 0
  %91 = vmatpush1.bf16.msra.mxu0 0
  %92 = vmatprep.subr.bf16.mxu0 0
  %93 = vmatpush1.bf16.msra.mxu0 0
  %94 = vmatprep.mubr.bf16.mxu0 0
  %95 = vmatmul.mubr.bf16.gmra.mrb[0].mxu0 %v60
  %v96 = vpop.f32.mrb[0].mxu0
  %v97 = vadd.f32 0.0, %v96
  %v98 = vpop.f32.mrb[0].mxu0
  %v99 = vpop.f32.mrb[0].mxu0
  %v100 = vadd.f32 0.0, %v99
  %v101 = vpop.f32.mrb[0].mxu0
  %102 = vdwg.mxu0
  %v103 = vadd.f32 %v33, %v97
  %v104 = vadd.f32 %v34, %v100
  %105 = vst.msk [vmem:[#allocation2] sm:$0xff] %vm58, %v103
  %106 = vst.msk [vmem:[#allocation2 + $0x8] sm:$0xff] %vm58, %v104
  // Predicated region
  $region30: #{decoder_forward.21} parent=0 // pred_check
    %p107 = pneg %p26
  $region31: #{decoder_forward.21} parent=0 // pred_check_branch
    %109 = sbr.rel (%p107) target = $region33
  $region32: #{decoder_forward.21} parent=0 // pred_region
    %v110 = vld [vmem:[#allocation2] sm:$0xff]
    %v111 = vld [vmem:[#allocation2 + $0x8] sm:$0xff]
    %v112 = vld [vmem:[%s2] sm:$0x1]
    %v114 = vlaneseq
    %v115 = vshrl.u32 %v114, 7
    %v116 = vsub.s32 0, %v115
    %v117 = vrot.slane %v112, %v116
    %v119 = vadd.f32 %v110, %v117
    %v120 = vadd.f32 %v111, %v117
    %v121 = vld [vmem:[%s3] sm:$0xff]
    %v122 = vld [vmem:[%s3 + $0x8] sm:$0xff]
    %v123 = vadd.f32 %v119, %v121
    %v124 = vadd.f32 %v120, %v122
    %v125 = vsel %vm58, %v123, 0.0
    %126 = vadd.xlane.f32.xlu0 %v125
    %v127 = vpop.xlane.xlu0 %126
    %v128 = vsel %vm58, %v124, 0.0
    %129 = vadd.xlane.f32.xlu0 %v128
    %v130 = vpop.xlane.xlu0 %129
    %v131 = vrcp.pop 32.0
    %v132 = vmul.f32 %v127, %v131
    %v133 = vmul.f32 %v130, %v131
    %v134 = vsub.f32 %v123, %v132
    %v135 = vsub.f32 %v124, %v133
    %v136 = vmul.f32 %v134, %v134
    %v137 = vmul.f32 %v135, %v135
    %v138 = vsel %vm58, %v136, 0.0
    %139 = vadd.xlane.f32.xlu0 %v138
    %v140 = vpop.xlane.xlu0 %139
    %v141 = vsel %vm58, %v137, 0.0
    %142 = vadd.xlane.f32.xlu0 %v141
    %v143 = vpop.xlane.xlu0 %142
    %v144 = vmul.f32 %v140, %v131
    %v145 = vmul.f32 %v143, %v131
    %v146 = vadd.f32 %v144, 1e-05
    %v147 = vadd.f32 %v145, 1e-05
    %v148 = vrsqrt.pop %v146
    %v149 = vrsqrt.pop %v147
    %v150 = vmul.f32 %v134, %v148
    %v151 = vmul.f32 %v135, %v149
    %v152 = vld [vmem:[%s4] sm:$0x1]
    %v154 = vlaneseq
    %v155 = vshrl.u32 %v154, 7
    %v156 = vsub.s32 0, %v155
    %v157 = vrot.slane %v152, %v156
    %v159 = vmul.f32 %v150, %v157
    %v160 = vmul.f32 %v151, %v157
    %v161 = vld [vmem:[%s5] sm:$0x1]
    %v163 = vlaneseq
    %v164 = vshrl.u32 %v163, 7
    %v165 = vsub.s32 0, %v164
    %v166 = vrot.slane %v161, %v165
    %v168 = vadd.f32 %v159, %v166
    %v169 = vadd.f32 %v160, %v166
    %170 = vst.msk [vmem:[%s6] sm:$0xff] %vm58, %v168
    %171 = vst.msk [vmem:[%s6 + $0x8] sm:$0xff] %vm58, %v169
    %v172 = vpack.c.bf16 %v169, %v168
    %v174 = vunpack.c.l.b16 %v172
    %v175 = vunpack.c.h.b16 %v172
    %v176 = vpack.c.b16 %v174, %v174
    %v177 = vpack.c.b16 %v175, %v175
    %vm180 = vcmask 257024
    %181 = vst.msk [vmem:[%s7] sm:$0xf] %vm180, %v176
    %182 = vst.msk [vmem:[%s7 + $0x4] sm:$0xf] %vm180, %v177
  $region33: #{decoder_forward.21} parent=0 // pred_fallthru
    _
  // Predicated region
  $region34: #{decoder_forward.21} parent=0 // pred_check
    _
  $region35: #{decoder_forward.21} parent=0 // pred_check_branch
    %184 = sbr.rel (0) target = $region37
  $region36: #{decoder_forward.21} parent=0 // pred_region
    _
  $region37: #{decoder_forward.21} parent=0 // pred_fallthru
    _
  // Predicated region
  $region38: #{decoder_forward.21} parent=0 // pred_check
    _
  $region39: #{decoder_forward.21} parent=0 // pred_check_branch
    %186 = sbr.rel (0) target = $region41
  $region40: #{decoder_forward.21} parent=0 // pred_region
    _
  $region41: #{decoder_forward.21} parent=0 // pred_fallthru
    _
  // Predicated region
  $region42: #{decoder_forward.21} parent=0 // pred_check
    _
  $region43: #{decoder_forward.21} parent=0 // pred_check_branch
    %188 = sbr.rel (0) target = $region45
  $region44: #{decoder_forward.21} parent=0 // pred_region
    _
  $region45: #{decoder_forward.21} parent=0 // pred_fallthru
    _
  // Predicated region
  $region46: #{decoder_forward.21} parent=0 // pred_check
    _
  $region47: #{decoder_forward.21} parent=0 // pred_check_branch
    %190 = sbr.rel (0) target = $region49
  $region48: #{decoder_forward.21} parent=0 // pred_region
    _
  $region49: #{decoder_forward.21} parent=0 // pred_fallthru
    _

// kernel: decoder_forward.20
$region0: #{decoder_forward.20}
  #allocation0 [shape = 'u32[]', space=smem, size = 0x4, offset = 0x4, fixed_abs, tag = 'smem constant byte address 0x4 - core index']
  #allocation1 [shape = 'u32[144,128]{1,0:T(1,128)}', space=vmem, size = 0x12000, scoped, tag = 'internal scratch']
  #allocation2 [shape = 'f32[8,32]{1,0:T(8,128)}', space=vmem, size = 0x1000, scoped, tag = 'scratch operand']
  %s0 = inlined_call_operand.vmem [shape: bf16[2,8,96], index: 0, kind: input, shape index: {}]
  %s1 = inlined_call_operand.vmem [shape: bf16[2,8,32], index: 1, kind: output, shape index: {}]
  %s2 = sld [smem:[#allocation0]]
  $region37: #{decoder_forward.20} parent=0
    _
  %s4 = ssub.s32 1, %s2
  %s5 = scalar_select 0, %s4, %s2
  loop: start=0, step=1, limit=4
  $region2: #{decoder_forward.20} parent=0 // loop_pre_header
    _
  $region3: #{decoder_forward.20} parent=0 // loop_header
    %s7 = sphi 0, %s11
    %p8 = scmp.ge.s32.totalorder %s7, 4
    %s17 = sphi 0, %s19
    %s20 = sphi 0, %s17
    %s21 = sphi 0, %s20
    %s37 = sphi 0, %s21
    %s43 = sphi 0, %s45
    %s46 = sphi 0, %s43
    %s47 = sphi 0, %s46
    %s63 = sphi 0, %s47
  $region4: #{decoder_forward.20} parent=0 // loop_header_branch
    %10 = sbr.rel (%p8) target = $region8
  $region5: #{decoder_forward.20} parent=0 // loop_body
    %s12 = ssub.s32 %s7, 1
    %s13 = ssub.s32 %s7, 2
    %s14 = sadd.s32 %s7, 1
    %s15 = ssub.s32 %s7, %s14
    %p16 = scmp.eq.s32.totalorder %s15, 0
    %s18 = sadd.s32 %s17, 1
    %s19 = scalar_select %p16, %s17, %s18
    %p22 = pneg %p16
    %p23 = scmp.eq.s32.totalorder %s7, 1
    %p24 = por %p22, %p23
    %p25 = scmp.ne.s32.totalorder %s17, %s20
    %p26 = scmp.eq.s32.totalorder %s7, 0
    %p27 = por %p25, %p26
    %p28 = scmp.ne.s32.totalorder %s17, %s20
    %p29 = scmp.eq.s32.totalorder %s12, 1
    %p30 = por %p28, %p29
    %p31 = scmp.ne.s32.totalorder %s20, %s21
    %p32 = scmp.eq.s32.totalorder %s12, 0
    %p33 = por %p31, %p32
    %p34 = scmp.ne.s32.totalorder %s20, %s21
    %p35 = scmp.eq.s32.totalorder %s13, 1
    %p36 = por %p34, %p35
    %p38 = scmp.ne.s32.totalorder %s21, %s37
    %p39 = scmp.eq.s32.totalorder %s13, 0
    %p40 = por %p38, %p39
    %s41 = ssub.s32 %s7, %s14
    %p42 = scmp.eq.s32.totalorder %s41, 0
    %s44 = sadd.s32 %s43, 1
    %s45 = scalar_select %p42, %s43, %s44
    %p48 = pneg %p42
    %p49 = scmp.eq.s32.totalorder %s7, 1
    %p50 = por %p48, %p49
    %p51 = scmp.ne.s32.totalorder %s43, %s46
    %p52 = scmp.eq.s32.totalorder %s7, 0
    %p53 = por %p51, %p52
    %p54 = scmp.ne.s32.totalorder %s43, %s46
    %p55 = scmp.eq.s32.totalorder %s12, 1
    %p56 = por %p54, %p55
    %p57 = scmp.ne.s32.totalorder %s46, %s47
    %p58 = scmp.eq.s32.totalorder %s12, 0
    %p59 = por %p57, %p58
    %p60 = scmp.ne.s32.totalorder %s46, %s47
    %p61 = scmp.eq.s32.totalorder %s13, 1
    %p62 = por %p60, %p61
    %p64 = scmp.ne.s32.totalorder %s47, %s63
    %p65 = scmp.eq.s32.totalorder %s13, 0
    %p66 = por %p64, %p65
    %p67 = scmp.le.s32.totalorder 1, %s7
    %p68 = scmp.lt.s32.totalorder %s7, 3
    %p69 = pnand %p67, %p68
    %p70 = pneg %p69
    // Predicated region
    $region9: #{decoder_forward.20} parent=5 // pred_check
      _
    $region10: #{decoder_forward.20} parent=5 // pred_check_branch
      %72 = sbr.rel (%p69) target = $region12
    $region11: #{decoder_forward.20} parent=5 // pred_region
      %s73 = ssub.s32 %s7, 1
    $region12: #{decoder_forward.20} parent=5 // pred_fallthru
      _
    %p74 = scmp.lt.s32.totalorder %s7, 2
    // Predicated region
    $region13: #{decoder_forward.20} parent=5 // pred_check
      %p75 = pneg %p74
    $region14: #{decoder_forward.20} parent=5 // pred_check_branch
      %77 = sbr.rel (%p75) target = $region16
    $region15: #{decoder_forward.20} parent=5 // pred_region
      // Predicated region
      $region17: #{decoder_forward.20} parent=15 // pred_check
        %p78 = pneg %p27
      $region18: #{decoder_forward.20} parent=15 // pred_check_branch
        %80 = sbr.rel (%p78) target = $region20
      $region19: #{decoder_forward.20} parent=15 // pred_region
        %p81 = scmp.lt.s32.totalorder %s7, 1
        %s82 = scalar_select %p81, %s7, 1
        %s83 = smul.addr %s82, 4
        %s84 = scalar_lea.vmem %s0, %s83
      $region20: #{decoder_forward.20} parent=15 // pred_fallthru
        _
    $region16: #{decoder_forward.20} parent=5 // pred_fallthru
      _
    %p85 = scmp.le.s32.totalorder 1, %s7
    %p86 = scmp.lt.s32.totalorder %s7, 3
    %p87 = pnand %p85, %p86
    %p88 = pneg %p87
    // Predicated region
    $region21: #{decoder_forward.20} parent=5 // pred_check
      _
    $region22: #{decoder_forward.20} parent=5 // pred_check_branch
      %90 = sbr.rel (%p87) target = $region24
    $region23: #{decoder_forward.20} parent=5 // pred_region
      %s91 = ssub.s32 %s7, 1
      %p92 = scmp.lt.s32.totalorder %s12, 1
      %s93 = scalar_select %p92, %s12, 1
      %s94 = smul.addr %s93, 4
      %s95 = scalar_lea.vmem %s0, %s94
      %p96 = pneg %p33
      %p97 = pneg %p30
      %p98 = pneg %p59
      %p99 = pneg %p56
      %p100 = scmp.lt.s32.totalorder %s12, 1
      %s101 = scalar_select %p100, %s12, 1
      %s102 = smul.addr %s101, 4
      %s103 = scalar_lea.vmem %s1, %s102
      %p104 = scmp.lt.s32.totalorder %s12, 1
      %s105 = scalar_select %p104, %s12, 1
      %s106 = smul.addr %s105, 4
      %s107 = scalar_lea.vmem %s0, %s106
      %p108 = scmp.lt.s32.totalorder %s12, 1
      %s109 = scalar_select %p108, %s12, 1
      %s110 = smul.addr %s109, 4
      %s111 = scalar_lea.vmem %s1, %s110
      %v114 = vld [vmem:[%s107] sm:$0xf]
      %v115 = vlaneseq
      %v116 = vshrl.u32 %v115, 7
      %v117 = vlaneseq
      %v118 = vand.u32 %v117, 127
      %vm119 = vcmp.gt.s32.totalorder %v118, %v116
      %v120 = vsel %vm119, -1e+09, 0.0
      %v121 = vmul.bf16 %v114, 1052065461
      %v123 = vunpack.c.l.b16 %v114
      %v124 = vpack.c.b16 %v123, %v123
      %125 = vrot.lane.b32.xlu0 %v124, 96
      %v126 = vpop.permute.xlu0 %125
      %vm127 = vcmask 64512
      %v129 = vsel %vm127, %v121, 0
      %v132 = vsel %vm127, %v126, 0
      %134 = vmatprep.subr.bf16.mxu0 0
      %135 = vmatpush1.bf16.xpose.msra.mxu0 %v132
      %136 = vmatprep.subr.bf16.mxu0 0
      %137 = vmatpush1.bf16.xpose.msra.mxu0 0
      %138 = vmatprep.subr.bf16.mxu0 0
      %139 = vmatpush1.bf16.xpose.msra.mxu0 0
      %140 = vmatprep.subr.bf16.mxu0 0
      %141 = vmatpush1.bf16.xpose.msra.mxu0 0
      %142 = vmatprep.subr.bf16.mxu0 0
      %143 = vmatpush1.bf16.xpose.msra.mxu0 0
      %144 = vmatprep.subr.bf16.mxu0 0
      %145 = vmatpush1.bf16.xpose.msra.mxu0 0
      %146 = vmatprep.subr.bf16.mxu0 0
      %147 = vmatpush1.bf16.xpose.msra.mxu0 0
      %148 = vmatprep.subr.bf16.mxu0 0
      %149 = vmatpush1.bf16.xpose.msra.mxu0 0
      %150 = vmatprep.subr.bf16.mxu0 0
      %151 = vmatpush1.bf16.xpose.msra.mxu0 0
      %152 = vmatprep.subr.bf16.mxu0 0
      %153 = vmatpush1.bf16.xpose.msra.mxu0 0
      %154 = vmatprep.subr.bf16.mxu0 0
      %155 = vmatpush1.bf16.xpose.msra.mxu0 0
      %156 = vmatprep.subr.bf16.mxu0 0
      %157 = vmatpush1.bf16.xpose.msra.mxu0 0
      %158 = vmatprep.subr.bf16.mxu0 0
      %159 = vmatpush1.bf16.xpose.msra.mxu0 0
      %160 = vmatprep.subr.bf16.mxu0 0
      %161 = vmatpush1.bf16.xpose.msra.mxu0 0
      %162 = vmatprep.subr.bf16.mxu0 0
      %163 = vmatpush1.bf16.xpose.msra.mxu0 0
      %164 = vmatprep.subr.bf16.mxu0 0
      %165 = vmatpush1.bf16.xpose.msra.mxu0 0
      %166 = vmatprep.mubr.bf16.mxu0 0
      %167 = vmatmul.mubr.bf16.gmra.mrb[0].mxu0 %v129
      %v168 = vpop.f32.mrb[0].mxu0
      %v169 = vadd.f32 %v120, %v168
      %v170 = vpop.f32.mrb[0].mxu0
      %v171 = vpop.f32.mrb[0].mxu0
      %v172 = vpop.f32.mrb[0].mxu0
      %173 = vdwg.mxu0
      %v174 = vsel %vm127, %v169, -inf
      %175 = vmax.xlane.f32.xlu0 %v174
      %v176 = vpop.xlane.xlu0 %175
      %v177 = vsub.f32 %v169, %v176
      %v178 = vmul.f32 %v177, 1.442695
      %v179 = vpow.pop %v178
      %v180 = vsel %vm127, %v179, 0.0
      %181 = vadd.xlane.f32.xlu0 %v180
      %v182 = vpop.xlane.xlu0 %181
      %v183 = vrcp.pop %v182
      %v184 = vmul.f32 %v179, %v183
      %v185 = vpack.c.bf16 %v184, %v184
      %186 = vrot.lane.b32.xlu0 %v124, 64
      %v187 = vpop.permute.xlu0 %186
      %v189 = vsel %vm127, %v185, 0
      %vm191 = vcmask 1043456
      %v193 = vsel %vm191, %v187, 0
      %195 = vmatprep.subr.bf16.mxu0 0
      %196 = vmatpush1.bf16.msra.mxu0 %v193
      %197 = vmatprep.subr.bf16.mxu0 0
      %198 = vmatpush1.bf16.msra.mxu0 0
      %199 = vmatprep.subr.bf16.mxu0 0
      %200 = vmatpush1.bf16.msra.mxu0 0
      %201 = vmatprep.subr.bf16.mxu0 0
      %202 = vmatpush1.bf16.msra.mxu0 0
      %203 = vmatprep.subr.bf16.mxu0 0
      %204 = vmatpush1.bf16.msra.mxu0 0
      %205 = vmatprep.subr.bf16.mxu0 0
      %206 = vmatpush1.bf16.msra.mxu0 0
      %207 = vmatprep.subr.bf16.mxu0 0
      %208 = vmatpush1.bf16.msra.mxu0 0
      %209 = vmatprep.subr.bf16.mxu0 0
      %210 = vmatpush1.bf16.msra.mxu0 0
      %211 = vmatprep.subr.bf16.mxu0 0
      %212 = vmatpush1.bf16.msra.mxu0 0
      %213 = vmatprep.subr.bf16.mxu0 0
      %214 = vmatpush1.bf16.msra.mxu0 0
      %215 = vmatprep.subr.bf16.mxu0 0
      %216 = vmatpush1.bf16.msra.mxu0 0
      %217 = vmatprep.subr.bf16.mxu0 0
      %218 = vmatpush1.bf16.msra.mxu0 0
      %219 = vmatprep.subr.bf16.mxu0 0
      %220 = vmatpush1.bf16.msra.mxu0 0
      %221 = vmatprep.subr.bf16.mxu0 0
      %222 = vmatpush1.bf16.msra.mxu0 0
      %223 = vmatprep.subr.bf16.mxu0 0
      %224 = vmatpush1.bf16.msra.mxu0 0
      %225 = vmatprep.subr.bf16.mxu0 0
      %226 = vmatpush1.bf16.msra.mxu0 0
      %227 = vmatprep.mubr.bf16.mxu0 0
      %228 = vmatmul.mubr.bf16.gmra.mrb[0].mxu0 %v189
      %v229 = vpop.f32.mrb[0].mxu0
      %v230 = vadd.f32 0.0, %v229
      %v231 = vpop.f32.mrb[0].mxu0
      %v232 = vpop.f32.mrb[0].mxu0
      %v233 = vpop.f32.mrb[0].mxu0
      %234 = vdwg.mxu0
      %235 = vst.msk [vmem:[#allocation2] sm:$0xff] %vm127, %v230
      %v237 = vunpack.c.l.b16 %v121
      %v238 = vpack.c.b16 %v237, %v237
      %239 = vrot.lane.b32.xlu0 %v238, 120
      %v240 = vpop.permute.xlu0 %239
      %241 = vrot.lane.b32.xlu0 %v124, 88
      %v242 = vpop.permute.xlu0 %241
      %v244 = vsel %vm127, %v240, 0
      %v247 = vsel %vm127, %v242, 0
      %249 = vmatprep.subr.bf16.mxu0 0
      %250 = vmatpush1.bf16.xpose.msra.mxu0 %v247
      %251 = vmatprep.subr.bf16.mxu0 0
      %252 = vmatpush1.bf16.xpose.msra.mxu0 0
      %253 = vmatprep.subr.bf16.mxu0 0
      %254 = vmatpush1.bf16.xpose.msra.mxu0 0
      %255 = vmatprep.subr.bf16.mxu0 0
      %256 = vmatpush1.bf16.xpose.msra.mxu0 0
      %257 = vmatprep.subr.bf16.mxu0 0
      %258 = vmatpush1.bf16.xpose.msra.mxu0 0
      %259 = vmatprep.subr.bf16.mxu0 0
      %260 = vmatpush1.bf16.xpose.msra.mxu0 0
      %261 = vmatprep.subr.bf16.mxu0 0
      %262 = vmatpush1.bf16.xpose.msra.mxu0 0
      %263 = vmatprep.subr.bf16.mxu0 0
      %264 = vmatpush1.bf16.xpose.msra.mxu0 0
      %265 = vmatprep.subr.bf16.mxu0 0
      %266 = vmatpush1.bf16.xpose.msra.mxu0 0
      %267 = vmatprep.subr.bf16.mxu0 0
      %268 = vmatpush1.bf16.xpose.msra.mxu0 0
      %269 = vmatprep.subr.bf16.mxu0 0
      %270 = vmatpush1.bf16.xpose.msra.mxu0 0
      %271 = vmatprep.subr.bf16.mxu0 0
      %272 = vmatpush1.bf16.xpose.msra.mxu0 0
      %273 = vmatprep.subr.bf16.mxu0 0
      %274 = vmatpush1.bf16.xpose.msra.mxu0 0
      %275 = vmatprep.subr.bf16.mxu0 0
      %276 = vmatpush1.bf16.xpose.msra.mxu0 0
      %277 = vmatprep.subr.bf16.mxu0 0
      %278 = vmatpush1.bf16.xpose.msra.mxu0 0
      %279 = vmatprep.subr.bf16.mxu0 0
      %280 = vmatpush1.bf16.xpose.msra.mxu0 0
      %281 = vmatprep.mubr.bf16.mxu0 0
      %282 = vmatmul.mubr.bf16.gmra.mrb[0].mxu0 %v244
      %v283 = vpop.f32.mrb[0].mxu0
      %v284 = vadd.f32 %v120, %v283
      %v285 = vpop.f32.mrb[0].mxu0
      %v286 = vpop.f32.mrb[0].mxu0
      %v287 = vpop.f32.mrb[0].mxu0
      %288 = vdwg.mxu0
      %v289 = vsel %vm127, %v284, -inf
      %290 = vmax.xlane.f32.xlu0 %v289
      %v291 = vpop.xlane.xlu0 %290
      %v292 = vsub.f32 %v284, %v291
      %v293 = vmul.f32 %v292, 1.442695
      %v294 = vpow.pop %v293
      %v295 = vsel %vm127, %v294, 0.0
      %296 = vadd.xlane.f32.xlu0 %v295
      %v297 = vpop.xlane.xlu0 %296
      %v298 = vrcp.pop %v297
      %v299 = vmul.f32 %v294, %v298
      %v300 = vpack.c.bf16 %v299, %v299
      %301 = vrot.lane.b32.xlu0 %v124, 56
      %v302 = vpop.permute.xlu0 %301
      %v304 = vsel %vm127, %v300, 0
      %v307 = vsel %vm191, %v302, 0
      %309 = vmatprep.subr.bf16.mxu0 0
      %310 = vmatpush1.bf16.msra.mxu0 %v307
      %311 = vmatprep.subr.bf16.mxu0 0
      %312 = vmatpush1.bf16.msra.mxu0 0
      %313 = vmatprep.subr.bf16.mxu0 0
      %314 = vmatpush1.bf16.msra.mxu0 0
      %315 = vmatprep.subr.bf16.mxu0 0
      %316 = vmatpush1.bf16.msra.mxu0 0
      %317 = vmatprep.subr.bf16.mxu0 0
      %318 = vmatpush1.bf16.msra.mxu0 0
      %319 = vmatprep.subr.bf16.mxu0 0
      %320 = vmatpush1.bf16.msra.mxu0 0
      %321 = vmatprep.subr.bf16.mxu0 0
      %322 = vmatpush1.bf16.msra.mxu0 0
      %323 = vmatprep.subr.bf16.mxu0 0
      %324 = vmatpush1.bf16.msra.mxu0 0
      %325 = vmatprep.subr.bf16.mxu0 0
      %326 = vmatpush1.bf16.msra.mxu0 0
      %327 = vmatprep.subr.bf16.mxu0 0
      %328 = vmatpush1.bf16.msra.mxu0 0
      %329 = vmatprep.subr.bf16.mxu0 0
      %330 = vmatpush1.bf16.msra.mxu0 0
      %331 = vmatprep.subr.bf16.mxu0 0
      %332 = vmatpush1.bf16.msra.mxu0 0
      %333 = vmatprep.subr.bf16.mxu0 0
      %334 = vmatpush1.bf16.msra.mxu0 0
      %335 = vmatprep.subr.bf16.mxu0 0
      %336 = vmatpush1.bf16.msra.mxu0 0
      %337 = vmatprep.subr.bf16.mxu0 0
      %338 = vmatpush1.bf16.msra.mxu0 0
      %339 = vmatprep.subr.bf16.mxu0 0
      %340 = vmatpush1.bf16.msra.mxu0 0
      %341 = vmatprep.mubr.bf16.mxu0 0
      %342 = vmatmul.mubr.bf16.gmra.mrb[0].mxu0 %v304
      %v343 = vpop.f32.mrb[0].mxu0
      %v344 = vadd.f32 0.0, %v343
      %v345 = vpop.f32.mrb[0].mxu0
      %v346 = vpop.f32.mrb[0].mxu0
      %v347 = vpop.f32.mrb[0].mxu0
      %348 = vdwg.mxu0
      %350 = vrot.lane.b32.xlu0 %v344, 8
      %v351 = vpop.permute.xlu0 %350
      %vm353 = vcmask 130112
      %354 = vst.msk [vmem:[#allocation2] sm:$0xff] %vm353, %v351
      %355 = vrot.lane.b32.xlu0 %v238, 112
      %v356 = vpop.permute.xlu0 %355
      %357 = vrot.lane.b32.xlu0 %v124, 80
      %v358 = vpop.permute.xlu0 %357
      %v360 = vsel %vm127, %v356, 0
      %v363 = vsel %vm127, %v358, 0
      %365 = vmatprep.subr.bf16.mxu0 0
      %366 = vmatpush1.bf16.xpose.msra.mxu0 %v363
      %367 = vmatprep.subr.bf16.mxu0 0
      %368 = vmatpush1.bf16.xpose.msra.mxu0 0
      %369 = vmatprep.subr.bf16.mxu0 0
      %370 = vmatpush1.bf16.xpose.msra.mxu0 0
      %371 = vmatprep.subr.bf16.mxu0 0
      %372 = vmatpush1.bf16.xpose.msra.mxu0 0
      %373 = vmatprep.subr.bf16.mxu0 0
      %374 = vmatpush1.bf16.xpose.msra.mxu0 0
      %375 = vmatprep.subr.bf16.mxu0 0
      %376 = vmatpush1.bf16.xpose.msra.mxu0 0
      %377 = vmatprep.subr.bf16.mxu0 0
      %378 = vmatpush1.bf16.xpose.msra.mxu0 0
      %379 = vmatprep.subr.bf16.mxu0 0
      %380 = vmatpush1.bf16.xpose.msra.mxu0 0
      %381 = vmatprep.subr.bf16.mxu0 0
      %382 = vmatpush1.bf16.xpose.msra.mxu0 0
      %383 = vmatprep.subr.bf16.mxu0 0
      %384 = vmatpush1.bf16.xpose.msra.mxu0 0
      %385 = vmatprep.subr.bf16.mxu0 0
      %386 = vmatpush1.bf16.xpose.msra.mxu0 0
      %387 = vmatprep.subr.bf16.mxu0 0
      %388 = vmatpush1.bf16.xpose.msra.mxu0 0
      %389 = vmatprep.subr.bf16.mxu0 0
      %390 = vmatpush1.bf16.xpose.msra.mxu0 0
      %391 = vmatprep.subr.bf16.mxu0 0
      %392 = vmatpush1.bf16.xpose.msra.mxu0 0
      %393 = vmatprep.subr.bf16.mxu0 0
      %394 = vmatpush1.bf16.xpose.msra.mxu0 0
      %395 = vmatprep.subr.bf16.mxu0 0
      %396 = vmatpush1.bf16.xpose.msra.mxu0 0
      %397 = vmatprep.mubr.bf16.mxu0 0
      %398 = vmatmul.mubr.bf16.gmra.mrb[0].mxu0 %v360
      %v399 = vpop.f32.mrb[0].mxu0
      %v400 = vadd.f32 %v120, %v399
      %v401 = vpop.f32.mrb[0].mxu0
      %v402 = vpop.f32.mrb[0].mxu0
      %v403 = vpop.f32.mrb[0].mxu0
      %404 = vdwg.mxu0
      %v405 = vsel %vm127, %v400, -inf
      %406 = vmax.xlane.f32.xlu0 %v405
      %v407 = vpop.xlane.xlu0 %406
      %v408 = vsub.f32 %v400, %v407
      %v409 = vmul.f32 %v408, 1.442695
      %v410 = vpow.pop %v409
      %v411 = vsel %vm127, %v410, 0.0
      %412 = vadd.xlane.f32.xlu0 %v411
      %v413 = vpop.xlane.xlu0 %412
      %v414 = vrcp.pop %v413
      %v415 = vmul.f32 %v410, %v414
      %v416 = vpack.c.bf16 %v415, %v415
      %417 = vrot.lane.b32.xlu0 %v124, 48
      %v418 = vpop.permute.xlu0 %417
      %v420 = vsel %vm127, %v416, 0
      %v423 = vsel %vm191, %v418, 0
      %425 = vmatprep.subr.bf16.mxu0 0
      %426 = vmatpush1.bf16.msra.mxu0 %v423
      %427 = vmatprep.subr.bf16.mxu0 0
      %428 = vmatpush1.bf16.msra.mxu0 0
      %429 = vmatprep.subr.bf16.mxu0 0
      %430 = vmatpush1.bf16.msra.mxu0 0
      %431 = vmatprep.subr.bf16.mxu0 0
      %432 = vmatpush1.bf16.msra.mxu0 0
      %433 = vmatprep.subr.bf16.mxu0 0
      %434 = vmatpush1.bf16.msra.mxu0 0
      %435 = vmatprep.subr.bf16.mxu0 0
      %436 = vmatpush1.bf16.msra.mxu0 0
      %437 = vmatprep.subr.bf16.mxu0 0
      %438 = vmatpush1.bf16.msra.mxu0 0
      %439 = vmatprep.subr.bf16.mxu0 0
      %440 = vmatpush1.bf16.msra.mxu0 0
      %441 = vmatprep.subr.bf16.mxu0 0
      %442 = vmatpush1.bf16.msra.mxu0 0
      %443 = vmatprep.subr.bf16.mxu0 0
      %444 = vmatpush1.bf16.msra.mxu0 0
      %445 = vmatprep.subr.bf16.mxu0 0
      %446 = vmatpush1.bf16.msra.mxu0 0
      %447 = vmatprep.subr.bf16.mxu0 0
      %448 = vmatpush1.bf16.msra.mxu0 0
      %449 = vmatprep.subr.bf16.mxu0 0
      %450 = vmatpush1.bf16.msra.mxu0 0
      %451 = vmatprep.subr.bf16.mxu0 0
      %452 = vmatpush1.bf16.msra.mxu0 0
      %453 = vmatprep.subr.bf16.mxu0 0
      %454 = vmatpush1.bf16.msra.mxu0 0
      %455 = vmatprep.subr.bf16.mxu0 0
      %456 = vmatpush1.bf16.msra.mxu0 0
      %457 = vmatprep.mubr.bf16.mxu0 0
      %458 = vmatmul.mubr.bf16.gmra.mrb[0].mxu0 %v420
      %v459 = vpop.f32.mrb[0].mxu0
      %v460 = vadd.f32 0.0, %v459
      %v461 = vpop.f32.mrb[0].mxu0
      %v462 = vpop.f32.mrb[0].mxu0
      %v463 = vpop.f32.mrb[0].mxu0
      %464 = vdwg.mxu0
      %466 = vrot.lane.b32.xlu0 %v460, 16
      %v467 = vpop.permute.xlu0 %466
      %vm469 = vcmask 195712
      %470 = vst.msk [vmem:[#allocation2] sm:$0xff] %vm469, %v467
      %471 = vrot.lane.b32.xlu0 %v238, 104
      %v472 = vpop.permute.xlu0 %471
      %473 = vrot.lane.b32.xlu0 %v124, 72
      %v474 = vpop.permute.xlu0 %473
      %v476 = vsel %vm127, %v472, 0
      %v479 = vsel %vm127, %v474, 0
      %481 = vmatprep.subr.bf16.mxu0 0
      %482 = vmatpush1.bf16.xpose.msra.mxu0 %v479
      %483 = vmatprep.subr.bf16.mxu0 0
      %484 = vmatpush1.bf16.xpose.msra.mxu0 0
      %485 = vmatprep.subr.bf16.mxu0 0
      %486 = vmatpush1.bf16.xpose.msra.mxu0 0
      %487 = vmatprep.subr.bf16.mxu0 0
      %488 = vmatpush1.bf16.xpose.msra.mxu0 0
      %489 = vmatprep.subr.bf16.mxu0 0
      %490 = vmatpush1.bf16.xpose.msra.mxu0 0
      %491 = vmatprep.subr.bf16.mxu0 0
      %492 = vmatpush1.bf16.xpose.msra.mxu0 0
      %493 = vmatprep.subr.bf16.mxu0 0
      %494 = vmatpush1.bf16.xpose.msra.mxu0 0
      %495 = vmatprep.subr.bf16.mxu0 0
      %496 = vmatpush1.bf16.xpose.msra.mxu0 0
      %497 = vmatprep.subr.bf16.mxu0 0
      %498 = vmatpush1.bf16.xpose.msra.mxu0 0
      %499 = vmatprep.subr.bf16.mxu0 0
      %500 = vmatpush1.bf16.xpose.msra.mxu0 0
      %501 = vmatprep.subr.bf16.mxu0 0
      %502 = vmatpush1.bf16.xpose.msra.mxu0 0
      %503 = vmatprep.subr.bf16.mxu0 0
      %504 = vmatpush1.bf16.xpose.msra.mxu0 0
      %505 = vmatprep.subr.bf16.mxu0 0
      %506 = vmatpush1.bf16.xpose.msra.mxu0 0
      %507 = vmatprep.subr.bf16.mxu0 0
      %508 = vmatpush1.bf16.xpose.msra.mxu0 0
      %509 = vmatprep.subr.bf16.mxu0 0
      %510 = vmatpush1.bf16.xpose.msra.mxu0 0
      %511 = vmatprep.subr.bf16.mxu0 0
      %512 = vmatpush1.bf16.xpose.msra.mxu0 0
      %513 = vmatprep.mubr.bf16.mxu0 0
      %514 = vmatmul.mubr.bf16.gmra.mrb[0].mxu0 %v476
      %v515 = vpop.f32.mrb[0].mxu0
      %v516 = vadd.f32 %v120, %v515
      %v517 = vpop.f32.mrb[0].mxu0
      %v518 = vpop.f32.mrb[0].mxu0
      %v519 = vpop.f32.mrb[0].mxu0
      %520 = vdwg.mxu0
      %v521 = vsel %vm127, %v516, -inf
      %522 = vmax.xlane.f32.xlu0 %v521
      %v523 = vpop.xlane.xlu0 %522
      %v524 = vsub.f32 %v516, %v523
      %v525 = vmul.f32 %v524, 1.442695
      %v526 = vpow.pop %v525
      %v527 = vsel %vm127, %v526, 0.0
      %528 = vadd.xlane.f32.xlu0 %v527
      %v529 = vpop.xlane.xlu0 %528
      %v530 = vrcp.pop %v529
      %v531 = vmul.f32 %v526, %v530
      %v532 = vpack.c.bf16 %v531, %v531
      %533 = vrot.lane.b32.xlu0 %v124, 40
      %v534 = vpop.permute.xlu0 %533
      %v536 = vsel %vm127, %v532, 0
      %v539 = vsel %vm191, %v534, 0
      %541 = vmatprep.subr.bf16.mxu0 0
      %542 = vmatpush1.bf16.msra.mxu0 %v539
      %543 = vmatprep.subr.bf16.mxu0 0
      %544 = vmatpush1.bf16.msra.mxu0 0
      %545 = vmatprep.subr.bf16.mxu0 0
      %546 = vmatpush1.bf16.msra.mxu0 0
      %547 = vmatprep.subr.bf16.mxu0 0
      %548 = vmatpush1.bf16.msra.mxu0 0
      %549 = vmatprep.subr.bf16.mxu0 0
      %550 = vmatpush1.bf16.msra.mxu0 0
      %551 = vmatprep.subr.bf16.mxu0 0
      %552 = vmatpush1.bf16.msra.mxu0 0
      %553 = vmatprep.subr.bf16.mxu0 0
      %554 = vmatpush1.bf16.msra.mxu0 0
      %555 = vmatprep.subr.bf16.mxu0 0
      %556 = vmatpush1.bf16.msra.mxu0 0
      %557 = vmatprep.subr.bf16.mxu0 0
      %558 = vmatpush1.bf16.msra.mxu0 0
      %559 = vmatprep.subr.bf16.mxu0 0
      %560 = vmatpush1.bf16.msra.mxu0 0
      %561 = vmatprep.subr.bf16.mxu0 0
      %562 = vmatpush1.bf16.msra.mxu0 0
      %563 = vmatprep.subr.bf16.mxu0 0
      %564 = vmatpush1.bf16.msra.mxu0 0
      %565 = vmatprep.subr.bf16.mxu0 0
      %566 = vmatpush1.bf16.msra.mxu0 0
      %567 = vmatprep.subr.bf16.mxu0 0
      %568 = vmatpush1.bf16.msra.mxu0 0
      %569 = vmatprep.subr.bf16.mxu0 0
      %570 = vmatpush1.bf16.msra.mxu0 0
      %571 = vmatprep.subr.bf16.mxu0 0
      %572 = vmatpush1.bf16.msra.mxu0 0
      %573 = vmatprep.mubr.bf16.mxu0 0
      %574 = vmatmul.mubr.bf16.gmra.mrb[0].mxu0 %v536
      %v575 = vpop.f32.mrb[0].mxu0
      %v576 = vadd.f32 0.0, %v575
      %v577 = vpop.f32.mrb[0].mxu0
      %v578 = vpop.f32.mrb[0].mxu0
      %v579 = vpop.f32.mrb[0].mxu0
      %580 = vdwg.mxu0
      %582 = vrot.lane.b32.xlu0 %v576, 24
      %v583 = vpop.permute.xlu0 %582
      %vm585 = vcmask 261312
      %586 = vst.msk [vmem:[#allocation2] sm:$0xff] %vm585, %v583
      %v587 = vld [vmem:[#allocation2] sm:$0xff]
      %v588 = vpack.c.bf16 %v587, %v587
      %vm589 = vcmask 257024
      %590 = vst.msk [vmem:[%s111] sm:$0xf] %vm589, %v588
      %p591 = scmp.lt.s32.totalorder %s12, 1
      %s592 = scalar_select %p591, %s12, 1
      %s593 = smul.addr %s592, 4
      %s594 = scalar_lea.vmem %s1, %s593
      // Predicated region
      $region25: #{decoder_forward.20} parent=23 // pred_check
        %p595 = pneg %p56
      $region26: #{decoder_forward.20} parent=23 // pred_check_branch
        %597 = sbr.rel (%p595) target = $region28
      $region27: #{decoder_forward.20} parent=23 // pred_region
        _
      $region28: #{decoder_forward.20} parent=23 // pred_fallthru
        _
    $region24: #{decoder_forward.20} parent=5 // pred_fallthru
      _
    %p598 = scmp.le.s32.totalorder 2, %s7
    // Predicated region
    $region29: #{decoder_forward.20} parent=5 // pred_check
      %p599 = pneg %p598
    $region30: #{decoder_forward.20} parent=5 // pred_check_branch
      %601 = sbr.rel (%p599) target = $region32
    $region31: #{decoder_forward.20} parent=5 // pred_region
      %s602 = ssub.s32 %s7, 2
      // Predicated region
      $region33: #{decoder_forward.20} parent=31 // pred_check
        %p603 = pneg %p62
      $region34: #{decoder_forward.20} parent=31 // pred_check_branch
        %605 = sbr.rel (%p603) target = $region36
      $region35: #{decoder_forward.20} parent=31 // pred_region
        %p606 = scmp.lt.s32.totalorder %s13, 1
        %s607 = scalar_select %p606, %s13, 1
        %s608 = smul.addr %s607, 4
        %s609 = scalar_lea.vmem %s1, %s608
      $region36: #{decoder_forward.20} parent=31 // pred_fallthru
        _
    $region32: #{decoder_forward.20} parent=5 // pred_fallthru
      _
  $region6: #{decoder_forward.20} parent=0 // loop_footer
    %s11 = sadd.s32 1, %s7
  $region7: #{decoder_forward.20} parent=0 // loop_footer_branch
    %6 = sbr.rel target = $region3
  $region8: #{decoder_forward.20} parent=0 // loop_exit
    _

// kernel: decoder_forward.23
$region0: #{decoder_forward.23}
  #allocation0 [shape = 'u32[]', space=smem, size = 0x4, offset = 0x4, fixed_abs, tag = 'smem constant byte address 0x4 - core index']
  #allocation1 [shape = 'u32[144,128]{1,0:T(1,128)}', space=vmem, size = 0x12000, scoped, tag = 'internal scratch']
  #allocation2 [shape = 'f32[24,64]{1,0:T(8,128)}', space=vmem, size = 0x3000, scoped, tag = 'scratch operand']
  %s0 = inlined_call_operand.vmem [shape: bf16[24,32], index: 0, kind: input, shape index: {}]
  %s1 = inlined_call_operand.vmem [shape: bf16[32,64], index: 1, kind: input, shape index: {}]
  %s2 = inlined_call_operand.vmem [shape: f32[1,64], index: 2, kind: input, shape index: {}]
  %s3 = inlined_call_operand.vmem [shape: bf16[24,64], index: 3, kind: output, shape index: {}]
  %s4 = sld [smem:[#allocation0]]
  $region30: #{decoder_forward.23} parent=0
    _
  %s6 = ssub.s32 1, %s4
  %s7 = scalar_select 0, %s6, %s4
  // Predicated region
  $region2: #{decoder_forward.23} parent=0 // pred_check
    _
  $region3: #{decoder_forward.23} parent=0 // pred_check_branch
    %9 = sbr.rel (0) target = $region5
  $region4: #{decoder_forward.23} parent=0 // pred_region
    _
  $region5: #{decoder_forward.23} parent=0 // pred_fallthru
    _
  // Predicated region
  $region6: #{decoder_forward.23} parent=0 // pred_check
    _
  $region7: #{decoder_forward.23} parent=0 // pred_check_branch
    %11 = sbr.rel (0) target = $region9
  $region8: #{decoder_forward.23} parent=0 // pred_region
    _
  $region9: #{decoder_forward.23} parent=0 // pred_fallthru
    _
  // Predicated region
  $region10: #{decoder_forward.23} parent=0 // pred_check
    _
  $region11: #{decoder_forward.23} parent=0 // pred_check_branch
    %13 = sbr.rel (0) target = $region13
  $region12: #{decoder_forward.23} parent=0 // pred_region
    _
  $region13: #{decoder_forward.23} parent=0 // pred_fallthru
    _
  %p15 = scmp.eq.s32.totalorder 0, 0
  // Predicated region
  $region14: #{decoder_forward.23} parent=0 // pred_check
    %p16 = pneg %p15
  $region15: #{decoder_forward.23} parent=0 // pred_check_branch
    %18 = sbr.rel (%p16) target = $region17
  $region16: #{decoder_forward.23} parent=0 // pred_region
    %vm19 = vcmask 523264
    %20 = vst.msk [vmem:[#allocation2] sm:$0xff] %vm19, 0.0
    %21 = vst.msk [vmem:[#allocation2 + $0x8] sm:$0xff] %vm19, 0.0
    %22 = vst.msk [vmem:[#allocation2 + $0x10] sm:$0xff] %vm19, 0.0
  $region17: #{decoder_forward.23} parent=0 // pred_fallthru
    _
  %v23 = vld [vmem:[#allocation2] sm:$0xff]
  %v24 = vld [vmem:[#allocation2 + $0x8] sm:$0xff]
  %v25 = vld [vmem:[#allocation2 + $0x10] sm:$0xff]
  %v26 = vld [vmem:[%s0] sm:$0xf]
  %v27 = vld [vmem:[%s0 + $0x4] sm:$0xf]
  %v28 = vld [vmem:[%s0 + $0x8] sm:$0xf]
  %v29 = vld [vmem:[%s1] sm:$0xf]
  %v30 = vld [vmem:[%s1 + $0x4] sm:$0xf]
  %v31 = vld [vmem:[%s1 + $0x8] sm:$0xf]
  %v32 = vld [vmem:[%s1 + $0xc] sm:$0xf]
  %v36 = vunpack.c.l.b16 %v26
  %v37 = vunpack.c.l.b16 %v27
  %v38 = vunpack.c.l.b16 %v28
  %v39 = vpack.c.b16 %v37, %v36
  %v40 = vpack.c.b16 %v38, %v38
  %v45 = vunpack.c.l.b16 %v29
  %v46 = vunpack.c.l.b16 %v30
  %v47 = vunpack.c.l.b16 %v31
  %v48 = vunpack.c.l.b16 %v32
  %v49 = vpack.c.b16 %v46, %v45
  %v50 = vpack.c.b16 %v48, %v47
  %vm53 = vcmask 261120
  %v55 = vsel %vm53, %v39, 0
  %v58 = vsel %vm53, %v40, 0
  %60 = vmatprep.subr.bf16.mxu0 0
  %61 = vmatpush1.bf16.msra.mxu0 %v49
  %62 = vmatprep.subr.bf16.mxu0 0
  %63 = vmatpush1.bf16.msra.mxu0 %v50
  %64 = vmatprep.subr.bf16.mxu0 0
  %65 = vmatpush1.bf16.msra.mxu0 0
  %66 = vmatprep.subr.bf16.mxu0 0
  %67 = vmatpush1.bf16.msra.mxu0 0
  %68 = vmatprep.subr.bf16.mxu0 0
  %69 = vmatpush1.bf16.msra.mxu0 0
  %70 = vmatprep.subr.bf16.mxu0 0
  %71 = vmatpush1.bf16.msra.mxu0 0
  %72 = vmatprep.subr.bf16.mxu0 0
  %73 = vmatpush1.bf16.msra.mxu0 0
  %74 = vmatprep.subr.bf16.mxu0 0
  %75 = vmatpush1.bf16.msra.mxu0 0
  %76 = vmatprep.subr.bf16.mxu0 0
  %77 = vmatpush1.bf16.msra.mxu0 0
  %78 = vmatprep.subr.bf16.mxu0 0
  %79 = vmatpush1.bf16.msra.mxu0 0
  %80 = vmatprep.subr.bf16.mxu0 0
  %81 = vmatpush1.bf16.msra.mxu0 0
  %82 = vmatprep.subr.bf16.mxu0 0
  %83 = vmatpush1.bf16.msra.mxu0 0
  %84 = vmatprep.subr.bf16.mxu0 0
  %85 = vmatpush1.bf16.msra.mxu0 0
  %86 = vmatprep.subr.bf16.mxu0 0
  %87 = vmatpush1.bf16.msra.mxu0 0
  %88 = vmatprep.subr.bf16.mxu0 0
  %89 = vmatpush1.bf16.msra.mxu0 0
  %90 = vmatprep.subr.bf16.mxu0 0
  %91 = vmatpush1.bf16.msra.mxu0 0
  %92 = vmatprep.mubr.bf16.mxu0 0
  %93 = vmatmul.mubr.bf16.gmra.mrb[0].mxu0 %v55
  %v94 = vpop.f32.mrb[0].mxu0
  %v95 = vadd.f32 0.0, %v94
  %v96 = vpop.f32.mrb[0].mxu0
  %v97 = vpop.f32.mrb[0].mxu0
  %v98 = vadd.f32 0.0, %v97
  %v99 = vpop.f32.mrb[0].mxu0
  %100 = vmatprep.mubr.bf16.mxu0 0
  %101 = vmatmul.mubr.bf16.gmra.mrb[0].mxu0 %v58
  %v102 = vpop.f32.mrb[0].mxu0
  %v103 = vadd.f32 0.0, %v102
  %v104 = vpop.f32.mrb[0].mxu0
  %v105 = vpop.f32.mrb[0].mxu0
  %v106 = vpop.f32.mrb[0].mxu0
  %107 = vdwg.mxu0
  %v108 = vadd.f32 %v23, %v95
  %v109 = vadd.f32 %v24, %v98
  %v110 = vadd.f32 %v25, %v103
  %vm111 = vcmask 523264
  %112 = vst.msk [vmem:[#allocation2] sm:$0xff] %vm111, %v108
  %113 = vst.msk [vmem:[#allocation2 + $0x8] sm:$0xff] %vm111, %v109
  %114 = vst.msk [vmem:[#allocation2 + $0x10] sm:$0xff] %vm111, %v110
  // Predicated region
  $region18: #{decoder_forward.23} parent=0 // pred_check
    %p115 = pneg %p15
  $region19: #{decoder_forward.23} parent=0 // pred_check_branch
    %117 = sbr.rel (%p115) target = $region21
  $region20: #{decoder_forward.23} parent=0 // pred_region
    %v118 = vld [vmem:[#allocation2] sm:$0xff]
    %v119 = vld [vmem:[#allocation2 + $0x8] sm:$0xff]
    %v120 = vld [vmem:[#allocation2 + $0x10] sm:$0xff]
    %v121 = vld [vmem:[%s2] sm:$0x1]
    %v123 = vlaneseq
    %v124 = vshrl.u32 %v123, 7
    %v125 = vsub.s32 0, %v124
    %v126 = vrot.slane %v121, %v125
    %v128 = vadd.f32 %v118, %v126
    %v129 = vadd.f32 %v119, %v126
    %v130 = vadd.f32 %v120, %v126
    %v131 = vpack.c.bf16 %v129, %v128
    %v132 = vpack.c.bf16 %v130, %v130
    %v135 = vunpack.c.l.b16 %v131
    %v136 = vunpack.c.h.b16 %v131
    %v137 = vunpack.c.l.b16 %v132
    %v138 = vpack.c.b16 %v135, %v135
    %v139 = vpack.c.b16 %v136, %v136
    %v140 = vpack.c.b16 %v137, %v137
    %vm144 = vcmask 519168
    %145 = vst.msk [vmem:[%s3] sm:$0xf] %vm144, %v138
    %146 = vst.msk [vmem:[%s3 + $0x4] sm:$0xf] %vm144, %v139
    %147 = vst.msk [vmem:[%s3 + $0x8] sm:$0xf] %vm144, %v140
  $region21: #{decoder_forward.23} parent=0 // pred_fallthru
    _
  // Predicated region
  $region22: #{decoder_forward.23} parent=0 // pred_check
    _
  $region23: #{decoder_forward.23} parent=0 // pred_check_branch
    %149 = sbr.rel (0) target = $region25
  $region24: #{decoder_forward.23} parent=0 // pred_region
    _
  $region25: #{decoder_forward.23} parent=0 // pred_fallthru
    _
  // Predicated region
  $region26: #{decoder_forward.23} parent=0 // pred_check
    _
  $region27: #{decoder_forward.23} parent=0 // pred_check_branch
    %151 = sbr.rel (0) target = $region29
  $region28: #{decoder_forward.23} parent=0 // pred_region
    _
  $region29: #{decoder_forward.23} parent=0 // pred_fallthru
    _

// kernel: decoder_forward.26
$region0: #{decoder_forward.26}
  #allocation0 [shape = 'u32[]', space=smem, size = 0x4, offset = 0x4, fixed_abs, tag = 'smem constant byte address 0x4 - core index']
  #allocation1 [shape = 'u32[144,128]{1,0:T(1,128)}', space=vmem, size = 0x12000, scoped, tag = 'internal scratch']
  #allocation2 [shape = 'f32[16,64]{1,0:T(8,128)}', space=vmem, size = 0x2000, scoped, tag = 'scratch operand']
  %s0 = inlined_call_operand.vmem [shape: bf16[16,32], index: 0, kind: input, shape index: {}]
  %s1 = inlined_call_operand.vmem [shape: bf16[32,64], index: 1, kind: input, shape index: {}]
  %s2 = inlined_call_operand.vmem [shape: f32[1,64], index: 2, kind: input, shape index: {}]
  %s3 = inlined_call_operand.vmem [shape: bf16[16,64], index: 3, kind: output, shape index: {}]
  %s4 = sld [smem:[#allocation0]]
  $region30: #{decoder_forward.26} parent=0
    _
  %s6 = ssub.s32 1, %s4
  %s7 = scalar_select 0, %s6, %s4
  // Predicated region
  $region2: #{decoder_forward.26} parent=0 // pred_check
    _
  $region3: #{decoder_forward.26} parent=0 // pred_check_branch
    %9 = sbr.rel (0) target = $region5
  $region4: #{decoder_forward.26} parent=0 // pred_region
    _
  $region5: #{decoder_forward.26} parent=0 // pred_fallthru
    _
  // Predicated region
  $region6: #{decoder_forward.26} parent=0 // pred_check
    _
  $region7: #{decoder_forward.26} parent=0 // pred_check_branch
    %11 = sbr.rel (0) target = $region9
  $region8: #{decoder_forward.26} parent=0 // pred_region
    _
  $region9: #{decoder_forward.26} parent=0 // pred_fallthru
    _
  // Predicated region
  $region10: #{decoder_forward.26} parent=0 // pred_check
    _
  $region11: #{decoder_forward.26} parent=0 // pred_check_branch
    %13 = sbr.rel (0) target = $region13
  $region12: #{decoder_forward.26} parent=0 // pred_region
    _
  $region13: #{decoder_forward.26} parent=0 // pred_fallthru
    _
  %p15 = scmp.eq.s32.totalorder 0, 0
  // Predicated region
  $region14: #{decoder_forward.26} parent=0 // pred_check
    %p16 = pneg %p15
  $region15: #{decoder_forward.26} parent=0 // pred_check_branch
    %18 = sbr.rel (%p16) target = $region17
  $region16: #{decoder_forward.26} parent=0 // pred_region
    %vm19 = vcmask 523264
    %20 = vst.msk [vmem:[#allocation2] sm:$0xff] %vm19, 0.0
    %21 = vst.msk [vmem:[#allocation2 + $0x8] sm:$0xff] %vm19, 0.0
  $region17: #{decoder_forward.26} parent=0 // pred_fallthru
    _
  %v22 = vld [vmem:[#allocation2] sm:$0xff]
  %v23 = vld [vmem:[#allocation2 + $0x8] sm:$0xff]
  %v24 = vld [vmem:[%s0] sm:$0xf]
  %v25 = vld [vmem:[%s0 + $0x4] sm:$0xf]
  %v26 = vld [vmem:[%s1] sm:$0xf]
  %v27 = vld [vmem:[%s1 + $0x4] sm:$0xf]
  %v28 = vld [vmem:[%s1 + $0x8] sm:$0xf]
  %v29 = vld [vmem:[%s1 + $0xc] sm:$0xf]
  %v32 = vunpack.c.l.b16 %v24
  %v33 = vunpack.c.l.b16 %v25
  %v34 = vpack.c.b16 %v33, %v32
  %v39 = vunpack.c.l.b16 %v26
  %v40 = vunpack.c.l.b16 %v27
  %v41 = vunpack.c.l.b16 %v28
  %v42 = vunpack.c.l.b16 %v29
  %v43 = vpack.c.b16 %v40, %v39
  %v44 = vpack.c.b16 %v42, %v41
  %vm47 = vcmask 261120
  %v49 = vsel %vm47, %v34, 0
  %51 = vmatprep.subr.bf16.mxu0 0
  %52 = vmatpush1.bf16.msra.mxu0 %v43
  %53 = vmatprep.subr.bf16.mxu0 0
  %54 = vmatpush1.bf16.msra.mxu0 %v44
  %55 = vmatprep.subr.bf16.mxu0 0
  %56 = vmatpush1.bf16.msra.mxu0 0
  %57 = vmatprep.subr.bf16.mxu0 0
  %58 = vmatpush1.bf16.msra.mxu0 0
  %59 = vmatprep.subr.bf16.mxu0 0
  %60 = vmatpush1.bf16.msra.mxu0 0
  %61 = vmatprep.subr.bf16.mxu0 0
  %62 = vmatpush1.bf16.msra.mxu0 0
  %63 = vmatprep.subr.bf16.mxu0 0
  %64 = vmatpush1.bf16.msra.mxu0 0
  %65 = vmatprep.subr.bf16.mxu0 0
  %66 = vmatpush1.bf16.msra.mxu0 0
  %67 = vmatprep.subr.bf16.mxu0 0
  %68 = vmatpush1.bf16.msra.mxu0 0
  %69 = vmatprep.subr.bf16.mxu0 0
  %70 = vmatpush1.bf16.msra.mxu0 0
  %71 = vmatprep.subr.bf16.mxu0 0
  %72 = vmatpush1.bf16.msra.mxu0 0
  %73 = vmatprep.subr.bf16.mxu0 0
  %74 = vmatpush1.bf16.msra.mxu0 0
  %75 = vmatprep.subr.bf16.mxu0 0
  %76 = vmatpush1.bf16.msra.mxu0 0
  %77 = vmatprep.subr.bf16.mxu0 0
  %78 = vmatpush1.bf16.msra.mxu0 0
  %79 = vmatprep.subr.bf16.mxu0 0
  %80 = vmatpush1.bf16.msra.mxu0 0
  %81 = vmatprep.subr.bf16.mxu0 0
  %82 = vmatpush1.bf16.msra.mxu0 0
  %83 = vmatprep.mubr.bf16.mxu0 0
  %84 = vmatmul.mubr.bf16.gmra.mrb[0].mxu0 %v49
  %v85 = vpop.f32.mrb[0].mxu0
  %v86 = vadd.f32 0.0, %v85
  %v87 = vpop.f32.mrb[0].mxu0
  %v88 = vpop.f32.mrb[0].mxu0
  %v89 = vadd.f32 0.0, %v88
  %v90 = vpop.f32.mrb[0].mxu0
  %91 = vdwg.mxu0
  %v92 = vadd.f32 %v22, %v86
  %v93 = vadd.f32 %v23, %v89
  %vm94 = vcmask 523264
  %95 = vst.msk [vmem:[#allocation2] sm:$0xff] %vm94, %v92
  %96 = vst.msk [vmem:[#allocation2 + $0x8] sm:$0xff] %vm94, %v93
  // Predicated region
  $region18: #{decoder_forward.26} parent=0 // pred_check
    %p97 = pneg %p15
  $region19: #{decoder_forward.26} parent=0 // pred_check_branch
    %99 = sbr.rel (%p97) target = $region21
  $region20: #{decoder_forward.26} parent=0 // pred_region
    %v100 = vld [vmem:[#allocation2] sm:$0xff]
    %v101 = vld [vmem:[#allocation2 + $0x8] sm:$0xff]
    %v102 = vld [vmem:[%s2] sm:$0x1]
    %v104 = vlaneseq
    %v105 = vshrl.u32 %v104, 7
    %v106 = vsub.s32 0, %v105
    %v107 = vrot.slane %v102, %v106
    %v109 = vadd.f32 %v100, %v107
    %v110 = vadd.f32 %v101, %v107
    %v111 = vmax.f32 %v109, 0.0
    %v112 = vmax.f32 %v110, 0.0
    %v113 = vpack.c.bf16 %v112, %v111
    %v115 = vunpack.c.l.b16 %v113
    %v116 = vunpack.c.h.b16 %v113
    %v117 = vpack.c.b16 %v115, %v115
    %v118 = vpack.c.b16 %v116, %v116
    %vm121 = vcmask 519168
    %122 = vst.msk [vmem:[%s3] sm:$0xf] %vm121, %v117
    %123 = vst.msk [vmem:[%s3 + $0x4] sm:$0xf] %vm121, %v118
  $region21: #{decoder_forward.26} parent=0 // pred_fallthru
    _
  // Predicated region
  $region22: #{decoder_forward.26} parent=0 // pred_check
    _
  $region23: #{decoder_forward.26} parent=0 // pred_check_branch
    %125 = sbr.rel (0) target = $region25
  $region24: #{decoder_forward.26} parent=0 // pred_region
    _
  $region25: #{decoder_forward.26} parent=0 // pred_fallthru
    _
  // Predicated region
  $region26: #{decoder_forward.26} parent=0 // pred_check
    _
  $region27: #{decoder_forward.26} parent=0 // pred_check_branch
    %127 = sbr.rel (0) target = $region29
  $region28: #{decoder_forward.26} parent=0 // pred_region
    _
  $region29: #{decoder_forward.26} parent=0 // pred_fallthru
    _

// kernel: decoder_forward.27
$region0: #{decoder_forward.27}
  #allocation0 [shape = 'u32[]', space=smem, size = 0x4, offset = 0x4, fixed_abs, tag = 'smem constant byte address 0x4 - core index']
  #allocation1 [shape = 'u32[144,128]{1,0:T(1,128)}', space=vmem, size = 0x12000, scoped, tag = 'internal scratch']
  #allocation2 [shape = 'f32[16,32]{1,0:T(8,128)}', space=vmem, size = 0x2000, scoped, tag = 'scratch operand']
  %s0 = inlined_call_operand.vmem [shape: bf16[16,64], index: 0, kind: input, shape index: {}]
  %s1 = inlined_call_operand.vmem [shape: bf16[64,32], index: 1, kind: input, shape index: {}]
  %s2 = inlined_call_operand.vmem [shape: f32[1,32], index: 2, kind: input, shape index: {}]
  %s3 = inlined_call_operand.vmem [shape: f32[16,32], index: 3, kind: input, shape index: {}]
  %s4 = inlined_call_operand.vmem [shape: f32[1,32], index: 4, kind: input, shape index: {}]
  %s5 = inlined_call_operand.vmem [shape: f32[1,32], index: 5, kind: input, shape index: {}]
  %s6 = inlined_call_operand.vmem [shape: f32[16,32], index: 6, kind: output, shape index: {0}]
  %s7 = inlined_call_operand.vmem [shape: bf16[16,32], index: 7, kind: output, shape index: {1}]
  %8 = xla_tuple %s6, %s7
  %s9 = sld [smem:[#allocation0]]
  $region50: #{decoder_forward.27} parent=0
    _
  %s11 = ssub.s32 1, %s9
  %s12 = scalar_select 0, %s11, %s9
  // Predicated region
  $region2: #{decoder_forward.27} parent=0 // pred_check
    _
  $region3: #{decoder_forward.27} parent=0 // pred_check_branch
    %14 = sbr.rel (0) target = $region5
  $region4: #{decoder_forward.27} parent=0 // pred_region
    _
  $region5: #{decoder_forward.27} parent=0 // pred_fallthru
    _
  // Predicated region
  $region6: #{decoder_forward.27} parent=0 // pred_check
    _
  $region7: #{decoder_forward.27} parent=0 // pred_check_branch
    %16 = sbr.rel (0) target = $region9
  $region8: #{decoder_forward.27} parent=0 // pred_region
    _
  $region9: #{decoder_forward.27} parent=0 // pred_fallthru
    _
  // Predicated region
  $region10: #{decoder_forward.27} parent=0 // pred_check
    _
  $region11: #{decoder_forward.27} parent=0 // pred_check_branch
    %18 = sbr.rel (0) target = $region13
  $region12: #{decoder_forward.27} parent=0 // pred_region
    _
  $region13: #{decoder_forward.27} parent=0 // pred_fallthru
    _
  // Predicated region
  $region14: #{decoder_forward.27} parent=0 // pred_check
    _
  $region15: #{decoder_forward.27} parent=0 // pred_check_branch
    %20 = sbr.rel (0) target = $region17
  $region16: #{decoder_forward.27} parent=0 // pred_region
    _
  $region17: #{decoder_forward.27} parent=0 // pred_fallthru
    _
  // Predicated region
  $region18: #{decoder_forward.27} parent=0 // pred_check
    _
  $region19: #{decoder_forward.27} parent=0 // pred_check_branch
    %22 = sbr.rel (0) target = $region21
  $region20: #{decoder_forward.27} parent=0 // pred_region
    _
  $region21: #{decoder_forward.27} parent=0 // pred_fallthru
    _
  // Predicated region
  $region22: #{decoder_forward.27} parent=0 // pred_check
    _
  $region23: #{decoder_forward.27} parent=0 // pred_check_branch
    %24 = sbr.rel (0) target = $region25
  $region24: #{decoder_forward.27} parent=0 // pred_region
    _
  $region25: #{decoder_forward.27} parent=0 // pred_fallthru
    _
  %p26 = scmp.eq.s32.totalorder 0, 0
  // Predicated region
  $region26: #{decoder_forward.27} parent=0 // pred_check
    %p27 = pneg %p26
  $region27: #{decoder_forward.27} parent=0 // pred_check_branch
    %29 = sbr.rel (%p27) target = $region29
  $region28: #{decoder_forward.27} parent=0 // pred_region
    %vm30 = vcmask 261120
    %31 = vst.msk [vmem:[#allocation2] sm:$0xff] %vm30, 0.0
    %32 = vst.msk [vmem:[#allocation2 + $0x8] sm:$0xff] %vm30, 0.0
  $region29: #{decoder_forward.27} parent=0 // pred_fallthru
    _
  %v33 = vld [vmem:[#allocation2] sm:$0xff]
  %v34 = vld [vmem:[#allocation2 + $0x8] sm:$0xff]
  %v35 = vld [vmem:[%s0] sm:$0xf]
  %v36 = vld [vmem:[%s0 + $0x4] sm:$0xf]
  %v37 = vld [vmem:[%s1] sm:$0xf]
  %v38 = vld [vmem:[%s1 + $0x4] sm:$0xf]
  %v39 = vld [vmem:[%s1 + $0x8] sm:$0xf]
  %v40 = vld [vmem:[%s1 + $0xc] sm:$0xf]
  %v41 = vld [vmem:[%s1 + $0x10] sm:$0xf]
  %v42 = vld [vmem:[%s1 + $0x14] sm:$0xf]
  %v43 = vld [vmem:[%s1 + $0x18] sm:$0xf]
  %v44 = vld [vmem:[%s1 + $0x1c] sm:$0xf]
  %v47 = vunpack.c.l.b16 %v35
  %v48 = vunpack.c.l.b16 %v36
  %v49 = vpack.c.b16 %v48, %v47
  %v58 = vunpack.c.l.b16 %v37
  %v59 = vunpack.c.l.b16 %v38
  %v60 = vunpack.c.l.b16 %v39
  %v61 = vunpack.c.l.b16 %v40
  %v62 = vunpack.c.l.b16 %v41
  %v63 = vunpack.c.l.b16 %v42
  %v64 = vunpack.c.l.b16 %v43
  %v65 = vunpack.c.l.b16 %v44
  %v66 = vpack.c.b16 %v59, %v58
  %v67 = vpack.c.b16 %v61, %v60
  %v68 = vpack.c.b16 %v63, %v62
  %v69 = vpack.c.b16 %v65, %v64
  %vm74 = vcmask 523264
  %v76 = vsel %vm74, %v49, 0
  %78 = vmatprep.subr.bf16.mxu0 0
  %79 = vmatpush1.bf16.msra.mxu0 %v66
  %80 = vmatprep.subr.bf16.mxu0 0
  %81 = vmatpush1.bf16.msra.mxu0 %v67
  %82 = vmatprep.subr.bf16.mxu0 0
  %83 = vmatpush1.bf16.msra.mxu0 %v68
  %84 = vmatprep.subr.bf16.mxu0 0
  %85 = vmatpush1.bf16.msra.mxu0 %v69
  %86 = vmatprep.subr.bf16.mxu0 0
  %87 = vmatpush1.bf16.msra.mxu0 0
  %88 = vmatprep.subr.bf16.mxu0 0
  %89 = vmatpush1.bf16.msra.mxu0 0
  %90 = vmatprep.subr.bf16.mxu0 0
  %91 = vmatpush1.bf16.msra.mxu0 0
  %92 = vmatprep.subr.bf16.mxu0 0
  %93 = vmatpush1.bf16.msra.mxu0 0
  %94 = vmatprep.subr.bf16.mxu0 0
  %95 = vmatpush1.bf16.msra.mxu0 0
  %96 = vmatprep.subr.bf16.mxu0 0
  %97 = vmatpush1.bf16.msra.mxu0 0
  %98 = vmatprep.subr.bf16.mxu0 0
  %99 = vmatpush1.bf16.msra.mxu0 0
  %100 = vmatprep.subr.bf16.mxu0 0
  %101 = vmatpush1.bf16.msra.mxu0 0
  %102 = vmatprep.subr.bf16.mxu0 0
  %103 = vmatpush1.bf16.msra.mxu0 0
  %104 = vmatprep.subr.bf16.mxu0 0
  %105 = vmatpush1.bf16.msra.mxu0 0
  %106 = vmatprep.subr.bf16.mxu0 0
  %107 = vmatpush1.bf16.msra.mxu0 0
  %108 = vmatprep.subr.bf16.mxu0 0
  %109 = vmatpush1.bf16.msra.mxu0 0
  %110 = vmatprep.mubr.bf16.mxu0 0
  %111 = vmatmul.mubr.bf16.gmra.mrb[0].mxu0 %v76
  %v112 = vpop.f32.mrb[0].mxu0
  %v113 = vadd.f32 0.0, %v112
  %v114 = vpop.f32.mrb[0].mxu0
  %v115 = vpop.f32.mrb[0].mxu0
  %v116 = vadd.f32 0.0, %v115
  %v117 = vpop.f32.mrb[0].mxu0
  %118 = vdwg.mxu0
  %v119 = vadd.f32 %v33, %v113
  %v120 = vadd.f32 %v34, %v116
  %vm121 = vcmask 261120
  %122 = vst.msk [vmem:[#allocation2] sm:$0xff] %vm121, %v119
  %123 = vst.msk [vmem:[#allocation2 + $0x8] sm:$0xff] %vm121, %v120
  // Predicated region
  $region30: #{decoder_forward.27} parent=0 // pred_check
    %p124 = pneg %p26
  $region31: #{decoder_forward.27} parent=0 // pred_check_branch
    %126 = sbr.rel (%p124) target = $region33
  $region32: #{decoder_forward.27} parent=0 // pred_region
    %v127 = vld [vmem:[#allocation2] sm:$0xff]
    %v128 = vld [vmem:[#allocation2 + $0x8] sm:$0xff]
    %v129 = vld [vmem:[%s2] sm:$0x1]
    %v131 = vlaneseq
    %v132 = vshrl.u32 %v131, 7
    %v133 = vsub.s32 0, %v132
    %v134 = vrot.slane %v129, %v133
    %v136 = vadd.f32 %v127, %v134
    %v137 = vadd.f32 %v128, %v134
    %v138 = vld [vmem:[%s3] sm:$0xff]
    %v139 = vld [vmem:[%s3 + $0x8] sm:$0xff]
    %v140 = vadd.f32 %v136, %v138
    %v141 = vadd.f32 %v137, %v139
    %v142 = vsel %vm121, %v140, 0.0
    %143 = vadd.xlane.f32.xlu0 %v142
    %v144 = vpop.xlane.xlu0 %143
    %v145 = vsel %vm121, %v141, 0.0
    %146 = vadd.xlane.f32.xlu0 %v145
    %v147 = vpop.xlane.xlu0 %146
    %v148 = vrcp.pop 32.0
    %v149 = vmul.f32 %v144, %v148
    %v150 = vmul.f32 %v147, %v148
    %v151 = vsub.f32 %v140, %v149
    %v152 = vsub.f32 %v141, %v150
    %v153 = vmul.f32 %v151, %v151
    %v154 = vmul.f32 %v152, %v152
    %v155 = vsel %vm121, %v153, 0.0
    %156 = vadd.xlane.f32.xlu0 %v155
    %v157 = vpop.xlane.xlu0 %156
    %v158 = vsel %vm121, %v154, 0.0
    %159 = vadd.xlane.f32.xlu0 %v158
    %v160 = vpop.xlane.xlu0 %159
    %v161 = vmul.f32 %v157, %v148
    %v162 = vmul.f32 %v160, %v148
    %v163 = vadd.f32 %v161, 1e-05
    %v164 = vadd.f32 %v162, 1e-05
    %v165 = vrsqrt.pop %v163
    %v166 = vrsqrt.pop %v164
    %v167 = vmul.f32 %v151, %v165
    %v168 = vmul.f32 %v152, %v166
    %v169 = vld [vmem:[%s4] sm:$0x1]
    %v171 = vlaneseq
    %v172 = vshrl.u32 %v171, 7
    %v173 = vsub.s32 0, %v172
    %v174 = vrot.slane %v169, %v173
    %v176 = vmul.f32 %v167, %v174
    %v177 = vmul.f32 %v168, %v174
    %v178 = vld [vmem:[%s5] sm:$0x1]
    %v180 = vlaneseq
    %v181 = vshrl.u32 %v180, 7
    %v182 = vsub.s32 0, %v181
    %v183 = vrot.slane %v178, %v182
    %v185 = vadd.f32 %v176, %v183
    %v186 = vadd.f32 %v177, %v183
    %187 = vst.msk [vmem:[%s6] sm:$0xff] %vm121, %v185
    %188 = vst.msk [vmem:[%s6 + $0x8] sm:$0xff] %vm121, %v186
    %v189 = vpack.c.bf16 %v186, %v185
    %v191 = vunpack.c.l.b16 %v189
    %v192 = vunpack.c.h.b16 %v189
    %v193 = vpack.c.b16 %v191, %v191
    %v194 = vpack.c.b16 %v192, %v192
    %vm197 = vcmask 257024
    %198 = vst.msk [vmem:[%s7] sm:$0xf] %vm197, %v193
    %199 = vst.msk [vmem:[%s7 + $0x4] sm:$0xf] %vm197, %v194
  $region33: #{decoder_forward.27} parent=0 // pred_fallthru
    _
  // Predicated region
  $region34: #{decoder_forward.27} parent=0 // pred_check
    _
  $region35: #{decoder_forward.27} parent=0 // pred_check_branch
    %201 = sbr.rel (0) target = $region37
  $region36: #{decoder_forward.27} parent=0 // pred_region
    _
  $region37: #{decoder_forward.27} parent=0 // pred_fallthru
    _
  // Predicated region
  $region38: #{decoder_forward.27} parent=0 // pred_check
    _
  $region39: #{decoder_forward.27} parent=0 // pred_check_branch
    %203 = sbr.rel (0) target = $region41
  $region40: #{decoder_forward.27} parent=0 // pred_region
    _
  $region41: #{decoder_forward.27} parent=0 // pred_fallthru
    _
  // Predicated region
  $region42: #{decoder_forward.27} parent=0 // pred_check
    _
  $region43: #{decoder_forward.27} parent=0 // pred_check_branch
    %205 = sbr.rel (0) target = $region45
  $region44: #{decoder_forward.27} parent=0 // pred_region
    _
  $region45: #{decoder_forward.27} parent=0 // pred_fallthru
    _
  // Predicated region
  $region46: #{decoder_forward.27} parent=0 // pred_check
    _
  $region47: #{decoder_forward.27} parent=0 // pred_check_branch
    %207 = sbr.rel (0) target = $region49
  $region48: #{decoder_forward.27} parent=0 // pred_region
    _
  $region49: #{decoder_forward.27} parent=0 // pred_fallthru
    _

// kernel: decoder_forward.24
$region0: #{decoder_forward.24}
  #allocation0 [shape = 'u32[]', space=smem, size = 0x4, offset = 0x4, fixed_abs, tag = 'smem constant byte address 0x4 - core index']
  #allocation1 [shape = 'u32[144,128]{1,0:T(1,128)}', space=vmem, size = 0x12000, scoped, tag = 'internal scratch']
  #allocation2 [shape = 'f32[8,32]{1,0:T(8,128)}', space=vmem, size = 0x1000, scoped, tag = 'scratch operand']
  %s0 = inlined_call_operand.vmem [shape: bf16[2,8,32], index: 0, kind: input, shape index: {}]
  %s1 = inlined_call_operand.vmem [shape: bf16[2,12,64], index: 1, kind: input, shape index: {}]
  %s2 = inlined_call_operand.vmem [shape: s32[2,1,12], index: 2, kind: input, shape index: {}]
  %s3 = inlined_call_operand.vmem [shape: bf16[2,8,32], index: 3, kind: output, shape index: {}]
  %s4 = sld [smem:[#allocation0]]
  $region45: #{decoder_forward.24} parent=0
    _
  %s6 = ssub.s32 1, %s4
  %s7 = scalar_select 0, %s6, %s4
  loop: start=0, step=1, limit=4
  $region2: #{decoder_forward.24} parent=0 // loop_pre_header
    _
  $region3: #{decoder_forward.24} parent=0 // loop_header
    %s9 = sphi 0, %s13
    %p10 = scmp.ge.s32.totalorder %s9, 4
    %s19 = sphi 0, %s21
    %s22 = sphi 0, %s19
    %s23 = sphi 0, %s22
    %s39 = sphi 0, %s23
    %s45 = sphi 0, %s47
    %s48 = sphi 0, %s45
    %s49 = sphi 0, %s48
    %s65 = sphi 0, %s49
    %s71 = sphi 0, %s73
    %s74 = sphi 0, %s71
    %s75 = sphi 0, %s74
    %s91 = sphi 0, %s75
    %s97 = sphi 0, %s99
    %s100 = sphi 0, %s97
    %s101 = sphi 0, %s100
    %s117 = sphi 0, %s101
  $region4: #{decoder_forward.24} parent=0 // loop_header_branch
    %12 = sbr.rel (%p10) target = $region8
  $region5: #{decoder_forward.24} parent=0 // loop_body
    %s14 = ssub.s32 %s9, 1
    %s15 = ssub.s32 %s9, 2
    %s16 = sadd.s32 %s9, 1
    %s17 = ssub.s32 %s9, %s16
    %p18 = scmp.eq.s32.totalorder %s17, 0
    %s20 = sadd.s32 %s19, 1
    %s21 = scalar_select %p18, %s19, %s20
    %p24 = pneg %p18
    %p25 = scmp.eq.s32.totalorder %s9, 1
    %p26 = por %p24, %p25
    %p27 = scmp.ne.s32.totalorder %s19, %s22
    %p28 = scmp.eq.s32.totalorder %s9, 0
    %p29 = por %p27, %p28
    %p30 = scmp.ne.s32.totalorder %s19, %s22
    %p31 = scmp.eq.s32.totalorder %s14, 1
    %p32 = por %p30, %p31
    %p33 = scmp.ne.s32.totalorder %s22, %s23
    %p34 = scmp.eq.s32.totalorder %s14, 0
    %p35 = por %p33, %p34
    %p36 = scmp.ne.s32.totalorder %s22, %s23
    %p37 = scmp.eq.s32.totalorder %s15, 1
    %p38 = por %p36, %p37
    %p40 = scmp.ne.s32.totalorder %s23, %s39
    %p41 = scmp.eq.s32.totalorder %s15, 0
    %p42 = por %p40, %p41
    %s43 = ssub.s32 %s9, %s16
    %p44 = scmp.eq.s32.totalorder %s43, 0
    %s46 = sadd.s32 %s45, 1
    %s47 = scalar_select %p44, %s45, %s46
    %p50 = pneg %p44
    %p51 = scmp.eq.s32.totalorder %s9, 1
    %p52 = por %p50, %p51
    %p53 = scmp.ne.s32.totalorder %s45, %s48
    %p54 = scmp.eq.s32.totalorder %s9, 0
    %p55 = por %p53, %p54
    %p56 = scmp.ne.s32.totalorder %s45, %s48
    %p57 = scmp.eq.s32.totalorder %s14, 1
    %p58 = por %p56, %p57
    %p59 = scmp.ne.s32.totalorder %s48, %s49
    %p60 = scmp.eq.s32.totalorder %s14, 0
    %p61 = por %p59, %p60
    %p62 = scmp.ne.s32.totalorder %s48, %s49
    %p63 = scmp.eq.s32.totalorder %s15, 1
    %p64 = por %p62, %p63
    %p66 = scmp.ne.s32.totalorder %s49, %s65
    %p67 = scmp.eq.s32.totalorder %s15, 0
    %p68 = por %p66, %p67
    %s69 = ssub.s32 %s9, %s16
    %p70 = scmp.eq.s32.totalorder %s69, 0
    %s72 = sadd.s32 %s71, 1
    %s73 = scalar_select %p70, %s71, %s72
    %p76 = pneg %p70
    %p77 = scmp.eq.s32.totalorder %s9, 1
    %p78 = por %p76, %p77
    %p79 = scmp.ne.s32.totalorder %s71, %s74
    %p80 = scmp.eq.s32.totalorder %s9, 0
    %p81 = por %p79, %p80
    %p82 = scmp.ne.s32.totalorder %s71, %s74
    %p83 = scmp.eq.s32.totalorder %s14, 1
    %p84 = por %p82, %p83
    %p85 = scmp.ne.s32.totalorder %s74, %s75
    %p86 = scmp.eq.s32.totalorder %s14, 0
    %p87 = por %p85, %p86
    %p88 = scmp.ne.s32.totalorder %s74, %s75
    %p89 = scmp.eq.s32.totalorder %s15, 1
    %p90 = por %p88, %p89
    %p92 = scmp.ne.s32.totalorder %s75, %s91
    %p93 = scmp.eq.s32.totalorder %s15, 0
    %p94 = por %p92, %p93
    %s95 = ssub.s32 %s9, %s16
    %p96 = scmp.eq.s32.totalorder %s95, 0
    %s98 = sadd.s32 %s97, 1
    %s99 = scalar_select %p96, %s97, %s98
    %p102 = pneg %p96
    %p103 = scmp.eq.s32.totalorder %s9, 1
    %p104 = por %p102, %p103
    %p105 = scmp.ne.s32.totalorder %s97, %s100
    %p106 = scmp.eq.s32.totalorder %s9, 0
    %p107 = por %p105, %p106
    %p108 = scmp.ne.s32.totalorder %s97, %s100
    %p109 = scmp.eq.s32.totalorder %s14, 1
    %p110 = por %p108, %p109
    %p111 = scmp.ne.s32.totalorder %s100, %s101
    %p112 = scmp.eq.s32.totalorder %s14, 0
    %p113 = por %p111, %p112
    %p114 = scmp.ne.s32.totalorder %s100, %s101
    %p115 = scmp.eq.s32.totalorder %s15, 1
    %p116 = por %p114, %p115
    %p118 = scmp.ne.s32.totalorder %s101, %s117
    %p119 = scmp.eq.s32.totalorder %s15, 0
    %p120 = por %p118, %p119
    %p121 = scmp.le.s32.totalorder 1, %s9
    %p122 = scmp.lt.s32.totalorder %s9, 3
    %p123 = pnand %p121, %p122
    %p124 = pneg %p123
    // Predicated region
    $region9: #{decoder_forward.24} parent=5 // pred_check
      _
    $region10: #{decoder_forward.24} parent=5 // pred_check_branch
      %126 = sbr.rel (%p123) target = $region12
    $region11: #{decoder_forward.24} parent=5 // pred_region
      %s127 = ssub.s32 %s9, 1
    $region12: #{decoder_forward.24} parent=5 // pred_fallthru
      _
    %p128 = scmp.lt.s32.totalorder %s9, 2
    // Predicated region
    $region13: #{decoder_forward.24} parent=5 // pred_check
      %p129 = pneg %p128
    $region14: #{decoder_forward.24} parent=5 // pred_check_branch
      %131 = sbr.rel (%p129) target = $region16
    $region15: #{decoder_forward.24} parent=5 // pred_region
      // Predicated region
      $region17: #{decoder_forward.24} parent=15 // pred_check
        %p132 = pneg %p29
      $region18: #{decoder_forward.24} parent=15 // pred_check_branch
        %134 = sbr.rel (%p132) target = $region20
      $region19: #{decoder_forward.24} parent=15 // pred_region
        %p135 = scmp.lt.s32.totalorder %s9, 1
        %s136 = scalar_select %p135, %s9, 1
        %s137 = smul.addr %s136, 4
        %s138 = scalar_lea.vmem %s0, %s137
      $region20: #{decoder_forward.24} parent=15 // pred_fallthru
        _
      // Predicated region
      $region21: #{decoder_forward.24} parent=15 // pred_check
        %p139 = pneg %p55
      $region22: #{decoder_forward.24} parent=15 // pred_check_branch
        %141 = sbr.rel (%p139) target = $region24
      $region23: #{decoder_forward.24} parent=15 // pred_region
        %p142 = scmp.lt.s32.totalorder %s9, 1
        %s143 = scalar_select %p142, %s9, 1
        %s144 = smul.addr %s143, 2
        %s145 = smul.addr %s144, 4
        %s146 = scalar_lea.vmem %s1, %s145
      $region24: #{decoder_forward.24} parent=15 // pred_fallthru
        _
      // Predicated region
      $region25: #{decoder_forward.24} parent=15 // pred_check
        %p147 = pneg %p81
      $region26: #{decoder_forward.24} parent=15 // pred_check_branch
        %149 = sbr.rel (%p147) target = $region28
      $region27: #{decoder_forward.24} parent=15 // pred_region
        %p150 = scmp.lt.s32.totalorder %s9, 1
        %s151 = scalar_select %p150, %s9, 1
        %s152 = scalar_lea.vmem %s2, %s151
      $region28: #{decoder_forward.24} parent=15 // pred_fallthru
        _
    $region16: #{decoder_forward.24} parent=5 // pred_fallthru
      _
    %p153 = scmp.le.s32.totalorder 1, %s9
    %p154 = scmp.lt.s32.totalorder %s9, 3
    %p155 = pnand %p153, %p154
    %p156 = pneg %p155
    // Predicated region
    $region29: #{decoder_forward.24} parent=5 // pred_check
      _
    $region30: #{decoder_forward.24} parent=5 // pred_check_branch
      %158 = sbr.rel (%p155) target = $region32
    $region31: #{decoder_forward.24} parent=5 // pred_region
      %s159 = ssub.s32 %s9, 1
      %p160 = scmp.lt.s32.totalorder %s14, 1
      %s161 = scalar_select %p160, %s14, 1
      %s162 = smul.addr %s161, 4
      %s163 = scalar_lea.vmem %s0, %s162
      %p164 = pneg %p35
      %p165 = pneg %p32
      %p166 = scmp.lt.s32.totalorder %s14, 1
      %s167 = scalar_select %p166, %s14, 1
      %s168 = smul.addr %s167, 2
      %s169 = smul.addr %s168, 4
      %s170 = scalar_lea.vmem %s1, %s169
      %p171 = pneg %p61
      %p172 = pneg %p58
      %p173 = scmp.lt.s32.totalorder %s14, 1
      %s174 = scalar_select %p173, %s14, 1
      %s175 = scalar_lea.vmem %s2, %s174
      %p176 = pneg %p87
      %p177 = pneg %p84
      %p178 = pneg %p113
      %p179 = pneg %p110
      %p180 = scmp.lt.s32.totalorder %s14, 1
      %s181 = scalar_select %p180, %s14, 1
      %s182 = smul.addr %s181, 4
      %s183 = scalar_lea.vmem %s3, %s182
      %p184 = scmp.lt.s32.totalorder %s14, 1
      %s185 = scalar_select %p184, %s14, 1
      %s186 = smul.addr %s185, 4
      %s187 = scalar_lea.vmem %s0, %s186
      %p188 = scmp.lt.s32.totalorder %s14, 1
      %s189 = scalar_select %p188, %s14, 1
      %s190 = smul.addr %s189, 2
      %s191 = smul.addr %s190, 4
      %s192 = scalar_lea.vmem %s1, %s191
      %p193 = scmp.lt.s32.totalorder %s14, 1
      %s194 = scalar_select %p193, %s14, 1
      %s195 = scalar_lea.vmem %s2, %s194
      %p196 = scmp.lt.s32.totalorder %s14, 1
      %s197 = scalar_select %p196, %s14, 1
      %s198 = smul.addr %s197, 4
      %s199 = scalar_lea.vmem %s3, %s198
      %v202 = vld [vmem:[%s187] sm:$0xf]
      %v203 = vld [vmem:[%s192] sm:$0xf]
      %v204 = vld [vmem:[%s192 + $0x4] sm:$0x3]
      %v205 = vld [vmem:[%s195] sm:$0x1]
      %vm206 = vcmp.eq.s32.totalorder %v205, 0
      %v207 = vsel %vm206, -1e+09, 0.0
      %v208 = vmul.bf16 %v202, 1052065461
      %v210 = vlaneseq
      %v211 = vshrl.u32 %v210, 7
      %v212 = vsub.s32 0, %v211
      %v213 = vrot.slane %v207, %v212
      %v217 = vunpack.c.l.b16 %v203
      %v218 = vunpack.c.l.b16 %v204
      %v219 = vpack.c.b16 %v218, %v217
      %vm220 = vcmask 64512
      %v222 = vsel %vm220, %v208, 0
      %v225 = vsel %vm220, %v219, 0
      %227 = vmatprep.subr.bf16.mxu0 0
      %228 = vmatpush1.bf16.xpose.msra.mxu0 %v225
      %229 = vmatprep.subr.bf16.mxu0 0
      %230 = vmatpush1.bf16.xpose.msra.mxu0 0
      %231 = vmatprep.subr.bf16.mxu0 0
      %232 = vmatpush1.bf16.xpose.msra.mxu0 0
      %233 = vmatprep.subr.bf16.mxu0 0
      %234 = vmatpush1.bf16.xpose.msra.mxu0 0
      %235 = vmatprep.subr.bf16.mxu0 0
      %236 = vmatpush1.bf16.xpose.msra.mxu0 0
      %237 = vmatprep.subr.bf16.mxu0 0
      %238 = vmatpush1.bf16.xpose.msra.mxu0 0
      %239 = vmatprep.subr.bf16.mxu0 0
      %240 = vmatpush1.bf16.xpose.msra.mxu0 0
      %241 = vmatprep.subr.bf16.mxu0 0
      %242 = vmatpush1.bf16.xpose.msra.mxu0 0
      %243 = vmatprep.subr.bf16.mxu0 0
      %244 = vmatpush1.bf16.xpose.msra.mxu0 0
      %245 = vmatprep.subr.bf16.mxu0 0
      %246 = vmatpush1.bf16.xpose.msra.mxu0 0
      %247 = vmatprep.subr.bf16.mxu0 0
      %248 = vmatpush1.bf16.xpose.msra.mxu0 0
      %249 = vmatprep.subr.bf16.mxu0 0
      %250 = vmatpush1.bf16.xpose.msra.mxu0 0
      %251 = vmatprep.subr.bf16.mxu0 0
      %252 = vmatpush1.bf16.xpose.msra.mxu0 0
      %253 = vmatprep.subr.bf16.mxu0 0
      %254 = vmatpush1.bf16.xpose.msra.mxu0 0
      %255 = vmatprep.subr.bf16.mxu0 0
      %256 = vmatpush1.bf16.xpose.msra.mxu0 0
      %257 = vmatprep.subr.bf16.mxu0 0
      %258 = vmatpush1.bf16.xpose.msra.mxu0 0
      %259 = vmatprep.mubr.bf16.mxu0 0
      %260 = vmatmul.mubr.bf16.gmra.mrb[0].mxu0 %v222
      %v261 = vpop.f32.mrb[0].mxu0
      %v262 = vadd.f32 %v213, %v261
      %v263 = vpop.f32.mrb[0].mxu0
      %v264 = vpop.f32.mrb[0].mxu0
      %v265 = vpop.f32.mrb[0].mxu0
      %266 = vdwg.mxu0
      %vm267 = vcmask 97280
      %v268 = vsel %vm267, %v262, -inf
      %269 = vmax.xlane.f32.xlu0 %v268
      %v270 = vpop.xlane.xlu0 %269
      %v271 = vsub.f32 %v262, %v270
      %v272 = vmul.f32 %v271, 1.442695
      %v273 = vpow.pop %v272
      %v274 = vsel %vm267, %v273, 0.0
      %275 = vadd.xlane.f32.xlu0 %v274
      %v276 = vpop.xlane.xlu0 %275
      %v277 = vrcp.pop %v276
      %v278 = vmul.f32 %v273, %v277
      %v279 = vpack.c.bf16 %v278, %v278
      %280 = vrot.lane.b32.xlu0 %v219, 96
      %v281 = vpop.permute.xlu0 %280
      %v283 = vsel %vm267, %v279, 0
      %vm285 = vcmask 1045504
      %v287 = vsel %vm285, %v281, 0
      %289 = vmatprep.subr.bf16.mxu0 0
      %290 = vmatpush1.bf16.msra.mxu0 %v287
      %291 = vmatprep.subr.bf16.mxu0 0
      %292 = vmatpush1.bf16.msra.mxu0 0
      %293 = vmatprep.subr.bf16.mxu0 0
      %294 = vmatpush1.bf16.msra.mxu0 0
      %295 = vmatprep.subr.bf16.mxu0 0
      %296 = vmatpush1.bf16.msra.mxu0 0
      %297 = vmatprep.subr.bf16.mxu0 0
      %298 = vmatpush1.bf16.msra.mxu0 0
      %299 = vmatprep.subr.bf16.mxu0 0
      %300 = vmatpush1.bf16.msra.mxu0 0
      %301 = vmatprep.subr.bf16.mxu0 0
      %302 = vmatpush1.bf16.msra.mxu0 0
      %303 = vmatprep.subr.bf16.mxu0 0
      %304 = vmatpush1.bf16.msra.mxu0 0
      %305 = vmatprep.subr.bf16.mxu0 0
      %306 = vmatpush1.bf16.msra.mxu0 0
      %307 = vmatprep.subr.bf16.mxu0 0
      %308 = vmatpush1.bf16.msra.mxu0 0
      %309 = vmatprep.subr.bf16.mxu0 0
      %310 = vmatpush1.bf16.msra.mxu0 0
      %311 = vmatprep.subr.bf16.mxu0 0
      %312 = vmatpush1.bf16.msra.mxu0 0
      %313 = vmatprep.subr.bf16.mxu0 0
      %314 = vmatpush1.bf16.msra.mxu0 0
      %315 = vmatprep.subr.bf16.mxu0 0
      %316 = vmatpush1.bf16.msra.mxu0 0
      %317 = vmatprep.subr.bf16.mxu0 0
      %318 = vmatpush1.bf16.msra.mxu0 0
      %319 = vmatprep.subr.bf16.mxu0 0
      %320 = vmatpush1.bf16.msra.mxu0 0
      %321 = vmatprep.mubr.bf16.mxu0 0
      %322 = vmatmul.mubr.bf16.gmra.mrb[0].mxu0 %v283
      %v323 = vpop.f32.mrb[0].mxu0
      %v324 = vadd.f32 0.0, %v323
      %v325 = vpop.f32.mrb[0].mxu0
      %v326 = vpop.f32.mrb[0].mxu0
      %v327 = vpop.f32.mrb[0].mxu0
      %328 = vdwg.mxu0
      %329 = vst.msk [vmem:[#allocation2] sm:$0xff] %vm220, %v324
      %v331 = vunpack.c.l.b16 %v208
      %v332 = vpack.c.b16 %v331, %v331
      %333 = vrot.lane.b32.xlu0 %v332, 120
      %v334 = vpop.permute.xlu0 %333
      %335 = vrot.lane.b32.xlu0 %v219, 120
      %v336 = vpop.permute.xlu0 %335
      %v338 = vsel %vm220, %v334, 0
      %v341 = vsel %vm220, %v336, 0
      %343 = vmatprep.subr.bf16.mxu0 0
      %344 = vmatpush1.bf16.xpose.msra.mxu0 %v341
      %345 = vmatprep.subr.bf16.mxu0 0
      %346 = vmatpush1.bf16.xpose.msra.mxu0 0
      %347 = vmatprep.subr.bf16.mxu0 0
      %348 = vmatpush1.bf16.xpose.msra.mxu0 0
      %349 = vmatprep.subr.bf16.mxu0 0
      %350 = vmatpush1.bf16.xpose.msra.mxu0 0
      %351 = vmatprep.subr.bf16.mxu0 0
      %352 = vmatpush1.bf16.xpose.msra.mxu0 0
      %353 = vmatprep.subr.bf16.mxu0 0
      %354 = vmatpush1.bf16.xpose.msra.mxu0 0
      %355 = vmatprep.subr.bf16.mxu0 0
      %356 = vmatpush1.bf16.xpose.msra.mxu0 0
      %357 = vmatprep.subr.bf16.mxu0 0
      %358 = vmatpush1.bf16.xpose.msra.mxu0 0
      %359 = vmatprep.subr.bf16.mxu0 0
      %360 = vmatpush1.bf16.xpose.msra.mxu0 0
      %361 = vmatprep.subr.bf16.mxu0 0
      %362 = vmatpush1.bf16.xpose.msra.mxu0 0
      %363 = vmatprep.subr.bf16.mxu0 0
      %364 = vmatpush1.bf16.xpose.msra.mxu0 0
      %365 = vmatprep.subr.bf16.mxu0 0
      %366 = vmatpush1.bf16.xpose.msra.mxu0 0
      %367 = vmatprep.subr.bf16.mxu0 0
      %368 = vmatpush1.bf16.xpose.msra.mxu0 0
      %369 = vmatprep.subr.bf16.mxu0 0
      %370 = vmatpush1.bf16.xpose.msra.mxu0 0
      %371 = vmatprep.subr.bf16.mxu0 0
      %372 = vmatpush1.bf16.xpose.msra.mxu0 0
      %373 = vmatprep.subr.bf16.mxu0 0
      %374 = vmatpush1.bf16.xpose.msra.mxu0 0
      %375 = vmatprep.mubr.bf16.mxu0 0
      %376 = vmatmul.mubr.bf16.gmra.mrb[0].mxu0 %v338
      %v377 = vpop.f32.mrb[0].mxu0
      %v378 = vadd.f32 %v213, %v377
      %v379 = vpop.f32.mrb[0].mxu0
      %v380 = vpop.f32.mrb[0].mxu0
      %v381 = vpop.f32.mrb[0].mxu0
      %382 = vdwg.mxu0
      %v383 = vsel %vm267, %v378, -inf
      %384 = vmax.xlane.f32.xlu0 %v383
      %v385 = vpop.xlane.xlu0 %384
      %v386 = vsub.f32 %v378, %v385
      %v387 = vmul.f32 %v386, 1.442695
      %v388 = vpow.pop %v387
      %v389 = vsel %vm267, %v388, 0.0
      %390 = vadd.xlane.f32.xlu0 %v389
      %v391 = vpop.xlane.xlu0 %390
      %v392 = vrcp.pop %v391
      %v393 = vmul.f32 %v388, %v392
      %v394 = vpack.c.bf16 %v393, %v393
      %395 = vrot.lane.b32.xlu0 %v219, 88
      %v396 = vpop.permute.xlu0 %395
      %v398 = vsel %vm267, %v394, 0
      %v401 = vsel %vm285, %v396, 0
      %403 = vmatprep.subr.bf16.mxu0 0
      %404 = vmatpush1.bf16.msra.mxu0 %v401
      %405 = vmatprep.subr.bf16.mxu0 0
      %406 = vmatpush1.bf16.msra.mxu0 0
      %407 = vmatprep.subr.bf16.mxu0 0
      %408 = vmatpush1.bf16.msra.mxu0 0
      %409 = vmatprep.subr.bf16.mxu0 0
      %410 = vmatpush1.bf16.msra.mxu0 0
      %411 = vmatprep.subr.bf16.mxu0 0
      %412 = vmatpush1.bf16.msra.mxu0 0
      %413 = vmatprep.subr.bf16.mxu0 0
      %414 = vmatpush1.bf16.msra.mxu0 0
      %415 = vmatprep.subr.bf16.mxu0 0
      %416 = vmatpush1.bf16.msra.mxu0 0
      %417 = vmatprep.subr.bf16.mxu0 0
      %418 = vmatpush1.bf16.msra.mxu0 0
      %419 = vmatprep.subr.bf16.mxu0 0
      %420 = vmatpush1.bf16.msra.mxu0 0
      %421 = vmatprep.subr.bf16.mxu0 0
      %422 = vmatpush1.bf16.msra.mxu0 0
      %423 = vmatprep.subr.bf16.mxu0 0
      %424 = vmatpush1.bf16.msra.mxu0 0
      %425 = vmatprep.subr.bf16.mxu0 0
      %426 = vmatpush1.bf16.msra.mxu0 0
      %427 = vmatprep.subr.bf16.mxu0 0
      %428 = vmatpush1.bf16.msra.mxu0 0
      %429 = vmatprep.subr.bf16.mxu0 0
      %430 = vmatpush1.bf16.msra.mxu0 0
      %431 = vmatprep.subr.bf16.mxu0 0
      %432 = vmatpush1.bf16.msra.mxu0 0
      %433 = vmatprep.subr.bf16.mxu0 0
      %434 = vmatpush1.bf16.msra.mxu0 0
      %435 = vmatprep.mubr.bf16.mxu0 0
      %436 = vmatmul.mubr.bf16.gmra.mrb[0].mxu0 %v398
      %v437 = vpop.f32.mrb[0].mxu0
      %v438 = vadd.f32 0.0, %v437
      %v439 = vpop.f32.mrb[0].mxu0
      %v440 = vpop.f32.mrb[0].mxu0
      %v441 = vpop.f32.mrb[0].mxu0
      %442 = vdwg.mxu0
      %444 = vrot.lane.b32.xlu0 %v438, 8
      %v445 = vpop.permute.xlu0 %444
      %vm447 = vcmask 130112
      %448 = vst.msk [vmem:[#allocation2] sm:$0xff] %vm447, %v445
      %449 = vrot.lane.b32.xlu0 %v332, 112
      %v450 = vpop.permute.xlu0 %449
      %451 = vrot.lane.b32.xlu0 %v219, 112
      %v452 = vpop.permute.xlu0 %451
      %v454 = vsel %vm220, %v450, 0
      %v457 = vsel %vm220, %v452, 0
      %459 = vmatprep.subr.bf16.mxu0 0
      %460 = vmatpush1.bf16.xpose.msra.mxu0 %v457
      %461 = vmatprep.subr.bf16.mxu0 0
      %462 = vmatpush1.bf16.xpose.msra.mxu0 0
      %463 = vmatprep.subr.bf16.mxu0 0
      %464 = vmatpush1.bf16.xpose.msra.mxu0 0
      %465 = vmatprep.subr.bf16.mxu0 0
      %466 = vmatpush1.bf16.xpose.msra.mxu0 0
      %467 = vmatprep.subr.bf16.mxu0 0
      %468 = vmatpush1.bf16.xpose.msra.mxu0 0
      %469 = vmatprep.subr.bf16.mxu0 0
      %470 = vmatpush1.bf16.xpose.msra.mxu0 0
      %471 = vmatprep.subr.bf16.mxu0 0
      %472 = vmatpush1.bf16.xpose.msra.mxu0 0
      %473 = vmatprep.subr.bf16.mxu0 0
      %474 = vmatpush1.bf16.xpose.msra.mxu0 0
      %475 = vmatprep.subr.bf16.mxu0 0
      %476 = vmatpush1.bf16.xpose.msra.mxu0 0
      %477 = vmatprep.subr.bf16.mxu0 0
      %478 = vmatpush1.bf16.xpose.msra.mxu0 0
      %479 = vmatprep.subr.bf16.mxu0 0
      %480 = vmatpush1.bf16.xpose.msra.mxu0 0
      %481 = vmatprep.subr.bf16.mxu0 0
      %482 = vmatpush1.bf16.xpose.msra.mxu0 0
      %483 = vmatprep.subr.bf16.mxu0 0
      %484 = vmatpush1.bf16.xpose.msra.mxu0 0
      %485 = vmatprep.subr.bf16.mxu0 0
      %486 = vmatpush1.bf16.xpose.msra.mxu0 0
      %487 = vmatprep.subr.bf16.mxu0 0
      %488 = vmatpush1.bf16.xpose.msra.mxu0 0
      %489 = vmatprep.subr.bf16.mxu0 0
      %490 = vmatpush1.bf16.xpose.msra.mxu0 0
      %491 = vmatprep.mubr.bf16.mxu0 0
      %492 = vmatmul.mubr.bf16.gmra.mrb[0].mxu0 %v454
      %v493 = vpop.f32.mrb[0].mxu0
      %v494 = vadd.f32 %v213, %v493
      %v495 = vpop.f32.mrb[0].mxu0
      %v496 = vpop.f32.mrb[0].mxu0
      %v497 = vpop.f32.mrb[0].mxu0
      %498 = vdwg.mxu0
      %v499 = vsel %vm267, %v494, -inf
      %500 = vmax.xlane.f32.xlu0 %v499
      %v501 = vpop.xlane.xlu0 %500
      %v502 = vsub.f32 %v494, %v501
      %v503 = vmul.f32 %v502, 1.442695
      %v504 = vpow.pop %v503
      %v505 = vsel %vm267, %v504, 0.0
      %506 = vadd.xlane.f32.xlu0 %v505
      %v507 = vpop.xlane.xlu0 %506
      %v508 = vrcp.pop %v507
      %v509 = vmul.f32 %v504, %v508
      %v510 = vpack.c.bf16 %v509, %v509
      %511 = vrot.lane.b32.xlu0 %v219, 80
      %v512 = vpop.permute.xlu0 %511
      %v514 = vsel %vm267, %v510, 0
      %v517 = vsel %vm285, %v512, 0
      %519 = vmatprep.subr.bf16.mxu0 0
      %520 = vmatpush1.bf16.msra.mxu0 %v517
      %521 = vmatprep.subr.bf16.mxu0 0
      %522 = vmatpush1.bf16.msra.mxu0 0
      %523 = vmatprep.subr.bf16.mxu0 0
      %524 = vmatpush1.bf16.msra.mxu0 0
      %525 = vmatprep.subr.bf16.mxu0 0
      %526 = vmatpush1.bf16.msra.mxu0 0
      %527 = vmatprep.subr.bf16.mxu0 0
      %528 = vmatpush1.bf16.msra.mxu0 0
      %529 = vmatprep.subr.bf16.mxu0 0
      %530 = vmatpush1.bf16.msra.mxu0 0
      %531 = vmatprep.subr.bf16.mxu0 0
      %532 = vmatpush1.bf16.msra.mxu0 0
      %533 = vmatprep.subr.bf16.mxu0 0
      %534 = vmatpush1.bf16.msra.mxu0 0
      %535 = vmatprep.subr.bf16.mxu0 0
      %536 = vmatpush1.bf16.msra.mxu0 0
      %537 = vmatprep.subr.bf16.mxu0 0
      %538 = vmatpush1.bf16.msra.mxu0 0
      %539 = vmatprep.subr.bf16.mxu0 0
      %540 = vmatpush1.bf16.msra.mxu0 0
      %541 = vmatprep.subr.bf16.mxu0 0
      %542 = vmatpush1.bf16.msra.mxu0 0
      %543 = vmatprep.subr.bf16.mxu0 0
      %544 = vmatpush1.bf16.msra.mxu0 0
      %545 = vmatprep.subr.bf16.mxu0 0
      %546 = vmatpush1.bf16.msra.mxu0 0
      %547 = vmatprep.subr.bf16.mxu0 0
      %548 = vmatpush1.bf16.msra.mxu0 0
      %549 = vmatprep.subr.bf16.mxu0 0
      %550 = vmatpush1.bf16.msra.mxu0 0
      %551 = vmatprep.mubr.bf16.mxu0 0
      %552 = vmatmul.mubr.bf16.gmra.mrb[0].mxu0 %v514
      %v553 = vpop.f32.mrb[0].mxu0
      %v554 = vadd.f32 0.0, %v553
      %v555 = vpop.f32.mrb[0].mxu0
      %v556 = vpop.f32.mrb[0].mxu0
      %v557 = vpop.f32.mrb[0].mxu0
      %558 = vdwg.mxu0
      %560 = vrot.lane.b32.xlu0 %v554, 16
      %v561 = vpop.permute.xlu0 %560
      %vm563 = vcmask 195712
      %564 = vst.msk [vmem:[#allocation2] sm:$0xff] %vm563, %v561
      %565 = vrot.lane.b32.xlu0 %v332, 104
      %v566 = vpop.permute.xlu0 %565
      %567 = vrot.lane.b32.xlu0 %v219, 104
      %v568 = vpop.permute.xlu0 %567
      %v570 = vsel %vm220, %v566, 0
      %v573 = vsel %vm220, %v568, 0
      %575 = vmatprep.subr.bf16.mxu0 0
      %576 = vmatpush1.bf16.xpose.msra.mxu0 %v573
      %577 = vmatprep.subr.bf16.mxu0 0
      %578 = vmatpush1.bf16.xpose.msra.mxu0 0
      %579 = vmatprep.subr.bf16.mxu0 0
      %580 = vmatpush1.bf16.xpose.msra.mxu0 0
      %581 = vmatprep.subr.bf16.mxu0 0
      %582 = vmatpush1.bf16.xpose.msra.mxu0 0
      %583 = vmatprep.subr.bf16.mxu0 0
      %584 = vmatpush1.bf16.xpose.msra.mxu0 0
      %585 = vmatprep.subr.bf16.mxu0 0
      %586 = vmatpush1.bf16.xpose.msra.mxu0 0
      %587 = vmatprep.subr.bf16.mxu0 0
      %588 = vmatpush1.bf16.xpose.msra.mxu0 0
      %589 = vmatprep.subr.bf16.mxu0 0
      %590 = vmatpush1.bf16.xpose.msra.mxu0 0
      %591 = vmatprep.subr.bf16.mxu0 0
      %592 = vmatpush1.bf16.xpose.msra.mxu0 0
      %593 = vmatprep.subr.bf16.mxu0 0
      %594 = vmatpush1.bf16.xpose.msra.mxu0 0
      %595 = vmatprep.subr.bf16.mxu0 0
      %596 = vmatpush1.bf16.xpose.msra.mxu0 0
      %597 = vmatprep.subr.bf16.mxu0 0
      %598 = vmatpush1.bf16.xpose.msra.mxu0 0
      %599 = vmatprep.subr.bf16.mxu0 0
      %600 = vmatpush1.bf16.xpose.msra.mxu0 0
      %601 = vmatprep.subr.bf16.mxu0 0
      %602 = vmatpush1.bf16.xpose.msra.mxu0 0
      %603 = vmatprep.subr.bf16.mxu0 0
      %604 = vmatpush1.bf16.xpose.msra.mxu0 0
      %605 = vmatprep.subr.bf16.mxu0 0
      %606 = vmatpush1.bf16.xpose.msra.mxu0 0
      %607 = vmatprep.mubr.bf16.mxu0 0
      %608 = vmatmul.mubr.bf16.gmra.mrb[0].mxu0 %v570
      %v609 = vpop.f32.mrb[0].mxu0
      %v610 = vadd.f32 %v213, %v609
      %v611 = vpop.f32.mrb[0].mxu0
      %v612 = vpop.f32.mrb[0].mxu0
      %v613 = vpop.f32.mrb[0].mxu0
      %614 = vdwg.mxu0
      %v615 = vsel %vm267, %v610, -inf
      %616 = vmax.xlane.f32.xlu0 %v615
      %v617 = vpop.xlane.xlu0 %616
      %v618 = vsub.f32 %v610, %v617
      %v619 = vmul.f32 %v618, 1.442695
      %v620 = vpow.pop %v619
      %v621 = vsel %vm267, %v620, 0.0
      %622 = vadd.xlane.f32.xlu0 %v621
      %v623 = vpop.xlane.xlu0 %622
      %v624 = vrcp.pop %v623
      %v625 = vmul.f32 %v620, %v624
      %v626 = vpack.c.bf16 %v625, %v625
      %627 = vrot.lane.b32.xlu0 %v219, 72
      %v628 = vpop.permute.xlu0 %627
      %v630 = vsel %vm267, %v626, 0
      %v633 = vsel %vm285, %v628, 0
      %635 = vmatprep.subr.bf16.mxu0 0
      %636 = vmatpush1.bf16.msra.mxu0 %v633
      %637 = vmatprep.subr.bf16.mxu0 0
      %638 = vmatpush1.bf16.msra.mxu0 0
      %639 = vmatprep.subr.bf16.mxu0 0
      %640 = vmatpush1.bf16.msra.mxu0 0
      %641 = vmatprep.subr.bf16.mxu0 0
      %642 = vmatpush1.bf16.msra.mxu0 0
      %643 = vmatprep.subr.bf16.mxu0 0
      %644 = vmatpush1.bf16.msra.mxu0 0
      %645 = vmatprep.subr.bf16.mxu0 0
      %646 = vmatpush1.bf16.msra.mxu0 0
      %647 = vmatprep.subr.bf16.mxu0 0
      %648 = vmatpush1.bf16.msra.mxu0 0
      %649 = vmatprep.subr.bf16.mxu0 0
      %650 = vmatpush1.bf16.msra.mxu0 0
      %651 = vmatprep.subr.bf16.mxu0 0
      %652 = vmatpush1.bf16.msra.mxu0 0
      %653 = vmatprep.subr.bf16.mxu0 0
      %654 = vmatpush1.bf16.msra.mxu0 0
      %655 = vmatprep.subr.bf16.mxu0 0
      %656 = vmatpush1.bf16.msra.mxu0 0
      %657 = vmatprep.subr.bf16.mxu0 0
      %658 = vmatpush1.bf16.msra.mxu0 0
      %659 = vmatprep.subr.bf16.mxu0 0
      %660 = vmatpush1.bf16.msra.mxu0 0
      %661 = vmatprep.subr.bf16.mxu0 0
      %662 = vmatpush1.bf16.msra.mxu0 0
      %663 = vmatprep.subr.bf16.mxu0 0
      %664 = vmatpush1.bf16.msra.mxu0 0
      %665 = vmatprep.subr.bf16.mxu0 0
      %666 = vmatpush1.bf16.msra.mxu0 0
      %667 = vmatprep.mubr.bf16.mxu0 0
      %668 = vmatmul.mubr.bf16.gmra.mrb[0].mxu0 %v630
      %v669 = vpop.f32.mrb[0].mxu0
      %v670 = vadd.f32 0.0, %v669
      %v671 = vpop.f32.mrb[0].mxu0
      %v672 = vpop.f32.mrb[0].mxu0
      %v673 = vpop.f32.mrb[0].mxu0
      %674 = vdwg.mxu0
      %676 = vrot.lane.b32.xlu0 %v670, 24
      %v677 = vpop.permute.xlu0 %676
      %vm679 = vcmask 261312
      %680 = vst.msk [vmem:[#allocation2] sm:$0xff] %vm679, %v677
      %v681 = vld [vmem:[#allocation2] sm:$0xff]
      %v682 = vpack.c.bf16 %v681, %v681
      %vm683 = vcmask 257024
      %684 = vst.msk [vmem:[%s199] sm:$0xf] %vm683, %v682
      %p685 = scmp.lt.s32.totalorder %s14, 1
      %s686 = scalar_select %p685, %s14, 1
      %s687 = smul.addr %s686, 4
      %s688 = scalar_lea.vmem %s3, %s687
      // Predicated region
      $region33: #{decoder_forward.24} parent=31 // pred_check
        %p689 = pneg %p110
      $region34: #{decoder_forward.24} parent=31 // pred_check_branch
        %691 = sbr.rel (%p689) target = $region36
      $region35: #{decoder_forward.24} parent=31 // pred_region
        _
      $region36: #{decoder_forward.24} parent=31 // pred_fallthru
        _
    $region32: #{decoder_forward.24} parent=5 // pred_fallthru
      _
    %p692 = scmp.le.s32.totalorder 2, %s9
    // Predicated region
    $region37: #{decoder_forward.24} parent=5 // pred_check
      %p693 = pneg %p692
    $region38: #{decoder_forward.24} parent=5 // pred_check_branch
      %695 = sbr.rel (%p693) target = $region40
    $region39: #{decoder_forward.24} parent=5 // pred_region
      %s696 = ssub.s32 %s9, 2
      // Predicated region
      $region41: #{decoder_forward.24} parent=39 // pred_check
        %p697 = pneg %p116
      $region42: #{decoder_forward.24} parent=39 // pred_check_branch
        %699 = sbr.rel (%p697) target = $region44
      $region43: #{decoder_forward.24} parent=39 // pred_region
        %p700 = scmp.lt.s32.totalorder %s15, 1
        %s701 = scalar_select %p700, %s15, 1
        %s702 = smul.addr %s701, 4
        %s703 = scalar_lea.vmem %s3, %s702
      $region44: #{decoder_forward.24} parent=39 // pred_fallthru
        _
    $region40: #{decoder_forward.24} parent=5 // pred_fallthru
      _
  $region6: #{decoder_forward.24} parent=0 // loop_footer
    %s13 = sadd.s32 1, %s9
  $region7: #{decoder_forward.24} parent=0 // loop_footer_branch
    %8 = sbr.rel target = $region3
  $region8: #{decoder_forward.24} parent=0 // loop_exit
    _

// kernel: decoder_forward.36
$region0: #{decoder_forward.36}
  #allocation0 [shape = 'u32[]', space=smem, size = 0x4, offset = 0x4, fixed_abs, tag = 'smem constant byte address 0x4 - core index']
  #allocation1 [shape = 'u32[144,128]{1,0:T(1,128)}', space=vmem, size = 0x12000, scoped, tag = 'internal scratch']
  #allocation2 [shape = 'f32[16,32]{1,0:T(8,128)}', space=vmem, size = 0x2000, scoped, tag = 'scratch operand']
  %s0 = inlined_call_operand.vmem [shape: bf16[16,64], index: 0, kind: input, shape index: {}]
  %s1 = inlined_call_operand.vmem [shape: bf16[64,32], index: 1, kind: input, shape index: {}]
  %s2 = inlined_call_operand.vmem [shape: f32[1,32], index: 2, kind: input, shape index: {}]
  %s3 = inlined_call_operand.vmem [shape: f32[16,32], index: 3, kind: input, shape index: {}]
  %s4 = inlined_call_operand.vmem [shape: f32[1,32], index: 4, kind: input, shape index: {}]
  %s5 = inlined_call_operand.vmem [shape: f32[1,32], index: 5, kind: input, shape index: {}]
  %s6 = inlined_call_operand.vmem [shape: f32[16,32], index: 6, kind: output, shape index: {0}]
  %s7 = inlined_call_operand.hbm [shape: bf16[16,32], index: 7, kind: output, shape index: {1}]
  %8 = xla_tuple %s6, %s7
  %s9 = sld [smem:[#allocation0]]
  $region50: #{decoder_forward.36} parent=0
    _
  %s11 = ssub.s32 1, %s9
  %s12 = scalar_select 0, %s11, %s9
  $region1: #{decoder_forward.36} parent=0
    #allocation3 [shape = 'u8[4096]{0}', space=vmem, size = 0x1000, scoped, tag = 'output window, operand 1, single buffered']
    #allocation4 [shape = 's32[1]{0}', space=sflag, size = 0x4, scoped, tag = 'scoped memory for decoder_forward.36']
    %13 = vsyncpa [#allocation4], 0
    // Predicated region
    $region2: #{decoder_forward.36} parent=1 // pred_check
      _
    $region3: #{decoder_forward.36} parent=1 // pred_check_branch
      %15 = sbr.rel (0) target = $region5
    $region4: #{decoder_forward.36} parent=1 // pred_region
      _
    $region5: #{decoder_forward.36} parent=1 // pred_fallthru
      _
    // Predicated region
    $region6: #{decoder_forward.36} parent=1 // pred_check
      _
    $region7: #{decoder_forward.36} parent=1 // pred_check_branch
      %17 = sbr.rel (0) target = $region9
    $region8: #{decoder_forward.36} parent=1 // pred_region
      _
    $region9: #{decoder_forward.36} parent=1 // pred_fallthru
      _
    // Predicated region
    $region10: #{decoder_forward.36} parent=1 // pred_check
      _
    $region11: #{decoder_forward.36} parent=1 // pred_check_branch
      %19 = sbr.rel (0) target = $region13
    $region12: #{decoder_forward.36} parent=1 // pred_region
      _
    $region13: #{decoder_forward.36} parent=1 // pred_fallthru
      _
    // Predicated region
    $region14: #{decoder_forward.36} parent=1 // pred_check
      _
    $region15: #{decoder_forward.36} parent=1 // pred_check_branch
      %21 = sbr.rel (0) target = $region17
    $region16: #{decoder_forward.36} parent=1 // pred_region
      _
    $region17: #{decoder_forward.36} parent=1 // pred_fallthru
      _
    // Predicated region
    $region18: #{decoder_forward.36} parent=1 // pred_check
      _
    $region19: #{decoder_forward.36} parent=1 // pred_check_branch
      %23 = sbr.rel (0) target = $region21
    $region20: #{decoder_forward.36} parent=1 // pred_region
      _
    $region21: #{decoder_forward.36} parent=1 // pred_fallthru
      _
    // Predicated region
    $region22: #{decoder_forward.36} parent=1 // pred_check
      _
    $region23: #{decoder_forward.36} parent=1 // pred_check_branch
      %25 = sbr.rel (0) target = $region25
    $region24: #{decoder_forward.36} parent=1 // pred_region
      _
    $region25: #{decoder_forward.36} parent=1 // pred_fallthru
      _
    %p27 = scmp.eq.s32.totalorder 0, 0
    // Predicated region
    $region26: #{decoder_forward.36} parent=1 // pred_check
      %p28 = pneg %p27
    $region27: #{decoder_forward.36} parent=1 // pred_check_branch
      %30 = sbr.rel (%p28) target = $region29
    $region28: #{decoder_forward.36} parent=1 // pred_region
      %vm31 = vcmask 261120
      %32 = vst.msk [vmem:[#allocation2] sm:$0xff] %vm31, 0.0
      %33 = vst.msk [vmem:[#allocation2 + $0x8] sm:$0xff] %vm31, 0.0
    $region29: #{decoder_forward.36} parent=1 // pred_fallthru
      _
    %v34 = vld [vmem:[#allocation2] sm:$0xff]
    %v35 = vld [vmem:[#allocation2 + $0x8] sm:$0xff]
    %v36 = vld [vmem:[%s0] sm:$0xf]
    %v37 = vld [vmem:[%s0 + $0x4] sm:$0xf]
    %v38 = vld [vmem:[%s1] sm:$0xf]
    %v39 = vld [vmem:[%s1 + $0x4] sm:$0xf]
    %v40 = vld [vmem:[%s1 + $0x8] sm:$0xf]
    %v41 = vld [vmem:[%s1 + $0xc] sm:$0xf]
    %v42 = vld [vmem:[%s1 + $0x10] sm:$0xf]
    %v43 = vld [vmem:[%s1 + $0x14] sm:$0xf]
    %v44 = vld [vmem:[%s1 + $0x18] sm:$0xf]
    %v45 = vld [vmem:[%s1 + $0x1c] sm:$0xf]
    %v48 = vunpack.c.l.b16 %v36
    %v49 = vunpack.c.l.b16 %v37
    %v50 = vpack.c.b16 %v49, %v48
    %v59 = vunpack.c.l.b16 %v38
    %v60 = vunpack.c.l.b16 %v39
    %v61 = vunpack.c.l.b16 %v40
    %v62 = vunpack.c.l.b16 %v41
    %v63 = vunpack.c.l.b16 %v42
    %v64 = vunpack.c.l.b16 %v43
    %v65 = vunpack.c.l.b16 %v44
    %v66 = vunpack.c.l.b16 %v45
    %v67 = vpack.c.b16 %v60, %v59
    %v68 = vpack.c.b16 %v62, %v61
    %v69 = vpack.c.b16 %v64, %v63
    %v70 = vpack.c.b16 %v66, %v65
    %vm75 = vcmask 523264
    %v77 = vsel %vm75, %v50, 0
    %79 = vmatprep.subr.bf16.mxu0 0
    %80 = vmatpush1.bf16.msra.mxu0 %v67
    %81 = vmatprep.subr.bf16.mxu0 0
    %82 = vmatpush1.bf16.msra.mxu0 %v68
    %83 = vmatprep.subr.bf16.mxu0 0
    %84 = vmatpush1.bf16.msra.mxu0 %v69
    %85 = vmatprep.subr.bf16.mxu0 0
    %86 = vmatpush1.bf16.msra.mxu0 %v70
    %87 = vmatprep.subr.bf16.mxu0 0
    %88 = vmatpush1.bf16.msra.mxu0 0
    %89 = vmatprep.subr.bf16.mxu0 0
    %90 = vmatpush1.bf16.msra.mxu0 0
    %91 = vmatprep.subr.bf16.mxu0 0
    %92 = vmatpush1.bf16.msra.mxu0 0
    %93 = vmatprep.subr.bf16.mxu0 0
    %94 = vmatpush1.bf16.msra.mxu0 0
    %95 = vmatprep.subr.bf16.mxu0 0
    %96 = vmatpush1.bf16.msra.mxu0 0
    %97 = vmatprep.subr.bf16.mxu0 0
    %98 = vmatpush1.bf16.msra.mxu0 0
    %99 = vmatprep.subr.bf16.mxu0 0
    %100 = vmatpush1.bf16.msra.mxu0 0
    %101 = vmatprep.subr.bf16.mxu0 0
    %102 = vmatpush1.bf16.msra.mxu0 0
    %103 = vmatprep.subr.bf16.mxu0 0
    %104 = vmatpush1.bf16.msra.mxu0 0
    %105 = vmatprep.subr.bf16.mxu0 0
    %106 = vmatpush1.bf16.msra.mxu0 0
    %107 = vmatprep.subr.bf16.mxu0 0
    %108 = vmatpush1.bf16.msra.mxu0 0
    %109 = vmatprep.subr.bf16.mxu0 0
    %110 = vmatpush1.bf16.msra.mxu0 0
    %111 = vmatprep.mubr.bf16.mxu0 0
    %112 = vmatmul.mubr.bf16.gmra.mrb[0].mxu0 %v77
    %v113 = vpop.f32.mrb[0].mxu0
    %v114 = vadd.f32 0.0, %v113
    %v115 = vpop.f32.mrb[0].mxu0
    %v116 = vpop.f32.mrb[0].mxu0
    %v117 = vadd.f32 0.0, %v116
    %v118 = vpop.f32.mrb[0].mxu0
    %119 = vdwg.mxu0
    %v120 = vadd.f32 %v34, %v114
    %v121 = vadd.f32 %v35, %v117
    %vm122 = vcmask 261120
    %123 = vst.msk [vmem:[#allocation2] sm:$0xff] %vm122, %v120
    %124 = vst.msk [vmem:[#allocation2 + $0x8] sm:$0xff] %vm122, %v121
    // Predicated region
    $region30: #{decoder_forward.36} parent=1 // pred_check
      %p125 = pneg %p27
    $region31: #{decoder_forward.36} parent=1 // pred_check_branch
      %127 = sbr.rel (%p125) target = $region33
    $region32: #{decoder_forward.36} parent=1 // pred_region
      %v128 = vld [vmem:[#allocation2] sm:$0xff]
      %v129 = vld [vmem:[#allocation2 + $0x8] sm:$0xff]
      %v130 = vld [vmem:[%s2] sm:$0x1]
      %v132 = vlaneseq
      %v133 = vshrl.u32 %v132, 7
      %v134 = vsub.s32 0, %v133
      %v135 = vrot.slane %v130, %v134
      %v137 = vadd.f32 %v128, %v135
      %v138 = vadd.f32 %v129, %v135
      %v139 = vld [vmem:[%s3] sm:$0xff]
      %v140 = vld [vmem:[%s3 + $0x8] sm:$0xff]
      %v141 = vadd.f32 %v137, %v139
      %v142 = vadd.f32 %v138, %v140
      %v143 = vsel %vm122, %v141, 0.0
      %144 = vadd.xlane.f32.xlu0 %v143
      %v145 = vpop.xlane.xlu0 %144
      %v146 = vsel %vm122, %v142, 0.0
      %147 = vadd.xlane.f32.xlu0 %v146
      %v148 = vpop.xlane.xlu0 %147
      %v149 = vrcp.pop 32.0
      %v150 = vmul.f32 %v145, %v149
      %v151 = vmul.f32 %v148, %v149
      %v152 = vsub.f32 %v141, %v150
      %v153 = vsub.f32 %v142, %v151
      %v154 = vmul.f32 %v152, %v152
      %v155 = vmul.f32 %v153, %v153
      %v156 = vsel %vm122, %v154, 0.0
      %157 = vadd.xlane.f32.xlu0 %v156
      %v158 = vpop.xlane.xlu0 %157
      %v159 = vsel %vm122, %v155, 0.0
      %160 = vadd.xlane.f32.xlu0 %v159
      %v161 = vpop.xlane.xlu0 %160
      %v162 = vmul.f32 %v158, %v149
      %v163 = vmul.f32 %v161, %v149
      %v164 = vadd.f32 %v162, 1e-05
      %v165 = vadd.f32 %v163, 1e-05
      %v166 = vrsqrt.pop %v164
      %v167 = vrsqrt.pop %v165
      %v168 = vmul.f32 %v152, %v166
      %v169 = vmul.f32 %v153, %v167
      %v170 = vld [vmem:[%s4] sm:$0x1]
      %v172 = vlaneseq
      %v173 = vshrl.u32 %v172, 7
      %v174 = vsub.s32 0, %v173
      %v175 = vrot.slane %v170, %v174
      %v177 = vmul.f32 %v168, %v175
      %v178 = vmul.f32 %v169, %v175
      %v179 = vld [vmem:[%s5] sm:$0x1]
      %v181 = vlaneseq
      %v182 = vshrl.u32 %v181, 7
      %v183 = vsub.s32 0, %v182
      %v184 = vrot.slane %v179, %v183
      %v186 = vadd.f32 %v177, %v184
      %v187 = vadd.f32 %v178, %v184
      %188 = vst.msk [vmem:[%s6] sm:$0xff] %vm122, %v186
      %189 = vst.msk [vmem:[%s6 + $0x8] sm:$0xff] %vm122, %v187
      %v190 = vpack.c.bf16 %v187, %v186
      %v192 = vunpack.c.l.b16 %v190
      %v193 = vunpack.c.h.b16 %v190
      %v194 = vpack.c.b16 %v192, %v192
      %v195 = vpack.c.b16 %v193, %v193
      %vm198 = vcmask 257024
      %199 = vst.msk [vmem:[#allocation3] sm:$0xf] %vm198, %v194
      %200 = vst.msk [vmem:[#allocation3 + $0x4] sm:$0xf] %vm198, %v195
    $region33: #{decoder_forward.36} parent=1 // pred_fallthru
      _
    // Predicated region
    $region34: #{decoder_forward.36} parent=1 // pred_check
      _
    $region35: #{decoder_forward.36} parent=1 // pred_check_branch
      %202 = sbr.rel (0) target = $region37
    $region36: #{decoder_forward.36} parent=1 // pred_region
      _
    $region37: #{decoder_forward.36} parent=1 // pred_fallthru
      _
    // Predicated region
    $region38: #{decoder_forward.36} parent=1 // pred_check
      _
    $region39: #{decoder_forward.36} parent=1 // pred_check_branch
      %204 = sbr.rel (0) target = $region41
    $region40: #{decoder_forward.36} parent=1 // pred_region
      %s206 = ssub.s32 128, 128
      %207 = vsyncadd [#allocation4], %s206
      %s208 = sshll.u32 [#allocation3], 4
      %s209 = int_to_ptr.vmem [resolvable:$true] %s208
      %214 = dma.vmem_to_hbm [thread:$0]  %s209, 128, %s7, [#allocation4], 64, 64, 4
    $region41: #{decoder_forward.36} parent=1 // pred_fallthru
      _
    // Predicated region
    $region42: #{decoder_forward.36} parent=1 // pred_check
      _
    $region43: #{decoder_forward.36} parent=1 // pred_check_branch
      %216 = sbr.rel (0) target = $region45
    $region44: #{decoder_forward.36} parent=1 // pred_region
      _
    $region45: #{decoder_forward.36} parent=1 // pred_fallthru
      _
    // Predicated region
    $region46: #{decoder_forward.36} parent=1 // pred_check
      _
    $region47: #{decoder_forward.36} parent=1 // pred_check_branch
      %218 = sbr.rel (0) target = $region49
    $region48: #{decoder_forward.36} parent=1 // pred_region
      %219 = dma.done [#allocation4], 128
    $region49: #{decoder_forward.36} parent=1 // pred_fallthru
      _
    %220 = vsyncpa [#allocation4], 1

// kernel: decoder_forward.37
$region0: #{decoder_forward.37}
  #allocation0 [shape = 'u32[]', space=smem, size = 0x4, offset = 0x4, fixed_abs, tag = 'smem constant byte address 0x4 - core index']
  #allocation1 [shape = 'u32[144,128]{1,0:T(1,128)}', space=vmem, size = 0x12000, scoped, tag = 'internal scratch']
  %s0 = inlined_call_operand.vmem [shape: f32[16,32], index: 0, kind: input, shape index: {}]
  %s1 = inlined_call_operand.vmem [shape: f32[1,32], index: 1, kind: input, shape index: {}]
  %s2 = inlined_call_operand.vmem [shape: f32[1,32], index: 2, kind: input, shape index: {}]
  %s3 = inlined_call_operand.hbm [shape: f32[16,32], index: 3, kind: output, shape index: {}]
  %s4 = sld [smem:[#allocation0]]
  $region22: #{decoder_forward.37} parent=0
    _
  %s6 = ssub.s32 1, %s4
  %s7 = scalar_select 0, %s6, %s4
  $region1: #{decoder_forward.37} parent=0
    #allocation2 [shape = 'u8[8192]{0}', space=vmem, size = 0x2000, scoped, tag = 'output window, operand 0, single buffered']
    #allocation3 [shape = 's32[1]{0}', space=sflag, size = 0x4, scoped, tag = 'scoped memory for decoder_forward.37']
    %8 = vsyncpa [#allocation3], 0
    // Predicated region
    $region2: #{decoder_forward.37} parent=1 // pred_check
      _
    $region3: #{decoder_forward.37} parent=1 // pred_check_branch
      %10 = sbr.rel (0) target = $region5
    $region4: #{decoder_forward.37} parent=1 // pred_region
      _
    $region5: #{decoder_forward.37} parent=1 // pred_fallthru
      _
    // Predicated region
    $region6: #{decoder_forward.37} parent=1 // pred_check
      _
    $region7: #{decoder_forward.37} parent=1 // pred_check_branch
      %12 = sbr.rel (0) target = $region9
    $region8: #{decoder_forward.37} parent=1 // pred_region
      _
    $region9: #{decoder_forward.37} parent=1 // pred_fallthru
      _
    // Predicated region
    $region10: #{decoder_forward.37} parent=1 // pred_check
      _
    $region11: #{decoder_forward.37} parent=1 // pred_check_branch
      %14 = sbr.rel (0) target = $region13
    $region12: #{decoder_forward.37} parent=1 // pred_region
      _
    $region13: #{decoder_forward.37} parent=1 // pred_fallthru
      _
    %v15 = vld [vmem:[%s0] sm:$0xff]
    %v16 = vld [vmem:[%s0 + $0x8] sm:$0xff]
    %vm17 = vcmask 261120
    %v18 = vsel %vm17, %v15, 0.0
    %19 = vadd.xlane.f32.xlu0 %v18
    %v20 = vpop.xlane.xlu0 %19
    %v21 = vsel %vm17, %v16, 0.0
    %22 = vadd.xlane.f32.xlu0 %v21
    %v23 = vpop.xlane.xlu0 %22
    %v24 = vrcp.pop 32.0
    %v25 = vmul.f32 %v20, %v24
    %v26 = vmul.f32 %v23, %v24
    %v27 = vsub.f32 %v15, %v25
    %v28 = vsub.f32 %v16, %v26
    %v29 = vmul.f32 %v27, %v27
    %v30 = vmul.f32 %v28, %v28
    %v31 = vsel %vm17, %v29, 0.0
    %32 = vadd.xlane.f32.xlu0 %v31
    %v33 = vpop.xlane.xlu0 %32
    %v34 = vsel %vm17, %v30, 0.0
    %35 = vadd.xlane.f32.xlu0 %v34
    %v36 = vpop.xlane.xlu0 %35
    %v37 = vmul.f32 %v33, %v24
    %v38 = vmul.f32 %v36, %v24
    %v39 = vadd.f32 %v37, 1e-05
    %v40 = vadd.f32 %v38, 1e-05
    %v41 = vrsqrt.pop %v39
    %v42 = vrsqrt.pop %v40
    %v43 = vmul.f32 %v27, %v41
    %v44 = vmul.f32 %v28, %v42
    %v45 = vld [vmem:[%s1] sm:$0x1]
    %v47 = vlaneseq
    %v48 = vshrl.u32 %v47, 7
    %v49 = vsub.s32 0, %v48
    %v50 = vrot.slane %v45, %v49
    %v52 = vmul.f32 %v43, %v50
    %v53 = vmul.f32 %v44, %v50
    %v54 = vld [vmem:[%s2] sm:$0x1]
    %v56 = vlaneseq
    %v57 = vshrl.u32 %v56, 7
    %v58 = vsub.s32 0, %v57
    %v59 = vrot.slane %v54, %v58
    %v61 = vadd.f32 %v52, %v59
    %v62 = vadd.f32 %v53, %v59
    %63 = vst.msk [vmem:[#allocation2] sm:$0xff] %vm17, %v61
    %64 = vst.msk [vmem:[#allocation2 + $0x8] sm:$0xff] %vm17, %v62
    // Predicated region
    $region14: #{decoder_forward.37} parent=1 // pred_check
      _
    $region15: #{decoder_forward.37} parent=1 // pred_check_branch
      %66 = sbr.rel (0) target = $region17
    $region16: #{decoder_forward.37} parent=1 // pred_region
      %s68 = ssub.s32 256, 256
      %69 = vsyncadd [#allocation3], %s68
      %s70 = sshll.u32 [#allocation2], 4
      %s71 = int_to_ptr.vmem [resolvable:$true] %s70
      %76 = dma.vmem_to_hbm [thread:$0]  %s71, 256, %s3, [#allocation3], 128, 128, 8
    $region17: #{decoder_forward.37} parent=1 // pred_fallthru
      _
    // Predicated region
    $region18: #{decoder_forward.37} parent=1 // pred_check
      _
    $region19: #{decoder_forward.37} parent=1 // pred_check_branch
      %78 = sbr.rel (0) target = $region21
    $region20: #{decoder_forward.37} parent=1 // pred_region
      %79 = dma.done [#allocation3], 256
    $region21: #{decoder_forward.37} parent=1 // pred_fallthru
      _
    %80 = vsyncpa [#allocation3], 1

</llo_original>
